<compile_context>
chip_gen: v5e
topology: v5e:2x2
jax: 0.10.0
libtpu: 0.0.40
codegen_flags: <defaults>
</compile_context>

<pallas_src>
import functools

import jax
import jax.numpy as jnp
from jax.experimental import pallas as pl
from jax.experimental.pallas import tpu as pltpu


def _mutan_kernel(q_ref, v_ref, w_ref, b_ref, o_ref, *, num_layers, block_out):
    # q_ref, v_ref : (B, D)        full input embeddings (resident in VMEM)
    # w_ref        : (2L, D, TN)   packed weight tile: rows [0..L-1]=Wq, [L..2L-1]=Wv
    # b_ref        : (2L, O_pad)   packed biases, full array resident in VMEM
    # o_ref        : (B, TN)       output tile
    col0 = pl.multiple_of(pl.program_id(0) * block_out, block_out)
    q = q_ref[...]
    v = v_ref[...]
    acc = jnp.zeros(o_ref.shape, jnp.float32)
    for layer in range(num_layers):  # static, small trip-count
        bq = b_ref[pl.ds(layer, 1), pl.ds(col0, block_out)]               # (1, TN)
        bv = b_ref[pl.ds(num_layers + layer, 1), pl.ds(col0, block_out)]  # (1, TN)
        hq = jnp.tanh(
            jnp.dot(q, w_ref[layer], preferred_element_type=jnp.float32) + bq)
        hv = jnp.tanh(
            jnp.dot(v, w_ref[num_layers + layer],
                    preferred_element_type=jnp.float32) + bv)
        acc = acc + hq * hv
    o_ref[...] = jnp.tanh(acc).astype(o_ref.dtype)


def _pick_block_out(out_dim, num_layers, in_dim, itemsize,
                    requested=None, weight_vmem_budget=24 << 20):
    """Largest multiple-of-128 out tile whose double-buffered packed weight tile
    fits `weight_vmem_budget` (conservative for v7x's 64 MiB VMEM), while
    keeping >= 2 grid steps whenever out_dim allows (v7x has 2 TensorCores)."""
    if requested is None:
        # q+v weights (2x), double-buffered (2x)
        bytes_per_out_col = 2 * 2 * num_layers * in_dim * itemsize
        bo = (weight_vmem_budget // bytes_per_out_col) // 128 * 128
        bo = int(max(128, min(bo, 2048)))
    else:
        assert requested % 128 == 0, "block_out must be a multiple of 128"
        bo = int(requested)
    while bo > 128 and pl.cdiv(out_dim, bo) < 2:
        bo -= 128
    return bo


def mutan_fusion(ques_emb, img_emb, wq, bq, wv, bv, *, block_out=None):
    """ques_emb, img_emb: (B, D); wq, wv: (L, D, O) (pre-transposed for x @ W);
    bq, bv: (L, O)."""
    B, D = ques_emb.shape
    L, _, O = wq.shape
    w_itemsize = jnp.dtype(wq.dtype).itemsize
    x_itemsize = jnp.dtype(ques_emb.dtype).itemsize

    bo = _pick_block_out(O, L, D, w_itemsize, requested=block_out)
    n_tiles = int(pl.cdiv(O, bo))
    O_pad = n_tiles * bo

    # Pack parameters: one weight DMA stream + one resident bias array.
    w = jnp.concatenate([wq, wv], axis=0)              # (2L, D, O)
    b = jnp.concatenate([bq, bv], axis=0)              # (2L, O)
    if O_pad != O:
        w = jnp.pad(w, ((0, 0), (0, 0), (0, O_pad - O)))
        b = jnp.pad(b, ((0, 0), (0, O_pad - O)))

    # Explicit VMEM budget (don't rely on the scoped default, esp. on v7x).
    vmem_est = (
        2 * (2 * L * D * bo * w_itemsize)     # double-buffered packed weight tile
        + 2 * (2 * L * O_pad * w_itemsize)    # resident packed biases
        + 2 * 2 * (B * D * x_itemsize)        # resident ques/img embeddings
        + 2 * (B * bo * x_itemsize)           # double-buffered output tile
        + (4 << 20))                          # headroom
    vmem_limit = int(min(max(vmem_est, 32 << 20), 64 << 20))

    kernel = functools.partial(_mutan_kernel, num_layers=L, block_out=bo)

    out = pl.pallas_call(
        kernel,
        out_shape=jax.ShapeDtypeStruct((B, O_pad), ques_emb.dtype),
        grid_spec=pltpu.PrefetchScalarGridSpec(
            num_scalar_prefetch=0,
            grid=(n_tiles,),
            in_specs=[
                pl.BlockSpec((B, D), lambda j: (0, 0)),              # ques_emb (resident)
                pl.BlockSpec((B, D), lambda j: (0, 0)),              # img_emb  (resident)
                pl.BlockSpec((2 * L, D, bo), lambda j: (0, 0, j)),   # packed Wq|Wv tile
                pl.BlockSpec((2 * L, O_pad), lambda j: (0, 0)),      # packed biases (resident)
            ],
            out_specs=pl.BlockSpec((B, bo), lambda j: (0, j)),
        ),
        compiler_params=pltpu.CompilerParams(
            dimension_semantics=("parallel",),
            vmem_limit_bytes=vmem_limit),
    )(ques_emb, img_emb, w, b)

    return out[:, :O] if O_pad != O else out


def mutan_fusion_ref(ques_emb, img_emb, wq, bq, wv, bv):
    # Pure-JAX reference (eval-mode semantics).
    hq = jnp.tanh(jnp.einsum("bd,ldo->lbo", ques_emb, wq) + bq[:, None, :])
    hv = jnp.tanh(jnp.einsum("bd,ldo->lbo", img_emb, wv) + bv[:, None, :])
    return jnp.tanh(jnp.sum(hq * hv, axis=0))


if __name__ == "__main__":
    # Small shapes consistent with the module (defaults input_dim=1024,
    # out_dim=5000, num_layers=5, scaled down): B=8, D=256, O=1024, L=3.
    B, D, O, L = 8, 256, 1024, 3

    key = jax.random.PRNGKey(0)
    k_q, k_v, k_wq, k_bq, k_wv, k_bv = jax.random.split(key, 6)

    ques_emb = jax.random.normal(k_q, (B, D), dtype=jnp.float32)
    img_emb = jax.random.normal(k_v, (B, D), dtype=jnp.float32)

    # Deterministic nn.Linear-like init, stored as (L, D, O) i.e. already
    # transposed for x @ W.
    scale = 1.0 / jnp.sqrt(jnp.float32(D))
    wq = jax.random.uniform(k_wq, (L, D, O), jnp.float32, -scale, scale)
    bq = jax.random.uniform(k_bq, (L, O), jnp.float32, -scale, scale)
    wv = jax.random.uniform(k_wv, (L, D, O), jnp.float32, -scale, scale)
    bv = jax.random.uniform(k_bv, (L, O), jnp.float32, -scale, scale)

    out = jax.block_until_ready(mutan_fusion(ques_emb, img_emb, wq, bq, wv, bv))

    ref = mutan_fusion_ref(ques_emb, img_emb, wq, bq, wv, bv)
    assert out.shape == (B, O)
    assert jnp.allclose(out, ref, atol=1e-4, rtol=1e-4), "mismatch vs reference"

    print("KERNEL_OK")
</pallas_src>

<mosaic_0001>
module attributes {stable_mosaic.version = 11 : i64} {
  func.func @_mutan_kernel(%arg0: i32, %arg1: memref<8x256xf32, #tpu.memory_space<vmem>>, %arg2: memref<8x256xf32, #tpu.memory_space<vmem>>, %arg3: memref<6x256x896xf32, #tpu.memory_space<vmem>>, %arg4: memref<6x1792xf32, #tpu.memory_space<vmem>>, %arg5: memref<8x896xf32, #tpu.memory_space<vmem>>) attributes {dimension_semantics = [#tpu.dimension_semantics<parallel>], iteration_bounds = array<i64: 2>, scalar_prefetch = 0 : i64, scratch_operands = 0 : i64, tpu.core_type = #tpu.core_type<tc>, window_params = [{pipeline_mode = #tpu.pipeline_mode<synchronous>, transform_indices = @transform_0, window_bounds = array<i64: 8, 256>}, {pipeline_mode = #tpu.pipeline_mode<synchronous>, transform_indices = @transform_1, window_bounds = array<i64: 8, 256>}, {transform_indices = @transform_2, window_bounds = array<i64: 6, 256, 896>}, {pipeline_mode = #tpu.pipeline_mode<synchronous>, transform_indices = @transform_3, window_bounds = array<i64: 6, 1792>}, {transform_indices = @transform_4, window_bounds = array<i64: 8, 896>}]} {
    %c896_i32 = arith.constant 896 : i32
    %0 = arith.muli %arg0, %c896_i32 : i32
    %1 = tpu.assume_multiple %0, 896 : i32
    %c0 = arith.constant 0 : index
    %c0_0 = arith.constant 0 : index
    %2 = vector.load %arg1[%c0, %c0_0] : memref<8x256xf32, #tpu.memory_space<vmem>>, vector<8x256xf32>
    %c0_1 = arith.constant 0 : index
    %c0_2 = arith.constant 0 : index
    %3 = vector.load %arg2[%c0_1, %c0_2] : memref<8x256xf32, #tpu.memory_space<vmem>>, vector<8x256xf32>
    %cst = arith.constant 0.000000e+00 : f32
    %4 = vector.broadcast %cst : f32 to vector<8x896xf32>
    %c0_3 = arith.constant 0 : index
    %5 = arith.index_cast %1 : i32 to index
    %6 = vector.load %arg4[%c0_3, %5] : memref<6x1792xf32, #tpu.memory_space<vmem>>, vector<1x896xf32>
    %c3 = arith.constant 3 : index
    %7 = arith.index_cast %1 : i32 to index
    %8 = vector.load %arg4[%c3, %7] : memref<6x1792xf32, #tpu.memory_space<vmem>>, vector<1x896xf32>
    %c0_4 = arith.constant 0 : index
    %c0_5 = arith.constant 0 : index
    %c0_6 = arith.constant 0 : index
    %9 = vector.load %arg3[%c0_4, %c0_5, %c0_6] : memref<6x256x896xf32, #tpu.memory_space<vmem>>, vector<1x256x896xf32>
    %10 = vector.shape_cast %9 : vector<1x256x896xf32> to vector<256x896xf32>
    %cst_7 = arith.constant dense<0.000000e+00> : vector<8x896xf32>
    %11 = tpu.matmul %2, %10, %cst_7 {dimension_numbers = #tpu.dot_dimension_numbers<[1], [0], [0], [1], [0, 0, 1, 1], [], []>} : vector<8x256xf32>, vector<256x896xf32>, vector<8x896xf32> -> vector<8x896xf32>
    %12 = vector.broadcast %6 : vector<1x896xf32> to vector<8x896xf32>
    %13 = arith.addf %11, %12 : vector<8x896xf32>
    %14 = math.tanh %13 : vector<8x896xf32>
    %c3_8 = arith.constant 3 : index
    %c0_9 = arith.constant 0 : index
    %c0_10 = arith.constant 0 : index
    %15 = vector.load %arg3[%c3_8, %c0_9, %c0_10] : memref<6x256x896xf32, #tpu.memory_space<vmem>>, vector<1x256x896xf32>
    %16 = vector.shape_cast %15 : vector<1x256x896xf32> to vector<256x896xf32>
    %cst_11 = arith.constant dense<0.000000e+00> : vector<8x896xf32>
    %17 = tpu.matmul %3, %16, %cst_11 {dimension_numbers = #tpu.dot_dimension_numbers<[1], [0], [0], [1], [0, 0, 1, 1], [], []>} : vector<8x256xf32>, vector<256x896xf32>, vector<8x896xf32> -> vector<8x896xf32>
    %18 = vector.broadcast %8 : vector<1x896xf32> to vector<8x896xf32>
    %19 = arith.addf %17, %18 : vector<8x896xf32>
    %20 = math.tanh %19 : vector<8x896xf32>
    %21 = arith.mulf %14, %20 : vector<8x896xf32>
    %22 = arith.addf %4, %21 : vector<8x896xf32>
    %c1 = arith.constant 1 : index
    %23 = arith.index_cast %1 : i32 to index
    %24 = vector.load %arg4[%c1, %23] : memref<6x1792xf32, #tpu.memory_space<vmem>>, vector<1x896xf32>
    %c4 = arith.constant 4 : index
    %25 = arith.index_cast %1 : i32 to index
    %26 = vector.load %arg4[%c4, %25] : memref<6x1792xf32, #tpu.memory_space<vmem>>, vector<1x896xf32>
    %c1_12 = arith.constant 1 : index
    %c0_13 = arith.constant 0 : index
    %c0_14 = arith.constant 0 : index
    %27 = vector.load %arg3[%c1_12, %c0_13, %c0_14] : memref<6x256x896xf32, #tpu.memory_space<vmem>>, vector<1x256x896xf32>
    %28 = vector.shape_cast %27 : vector<1x256x896xf32> to vector<256x896xf32>
    %cst_15 = arith.constant dense<0.000000e+00> : vector<8x896xf32>
    %29 = tpu.matmul %2, %28, %cst_15 {dimension_numbers = #tpu.dot_dimension_numbers<[1], [0], [0], [1], [0, 0, 1, 1], [], []>} : vector<8x256xf32>, vector<256x896xf32>, vector<8x896xf32> -> vector<8x896xf32>
    %30 = vector.broadcast %24 : vector<1x896xf32> to vector<8x896xf32>
    %31 = arith.addf %29, %30 : vector<8x896xf32>
    %32 = math.tanh %31 : vector<8x896xf32>
    %c4_16 = arith.constant 4 : index
    %c0_17 = arith.constant 0 : index
    %c0_18 = arith.constant 0 : index
    %33 = vector.load %arg3[%c4_16, %c0_17, %c0_18] : memref<6x256x896xf32, #tpu.memory_space<vmem>>, vector<1x256x896xf32>
    %34 = vector.shape_cast %33 : vector<1x256x896xf32> to vector<256x896xf32>
    %cst_19 = arith.constant dense<0.000000e+00> : vector<8x896xf32>
    %35 = tpu.matmul %3, %34, %cst_19 {dimension_numbers = #tpu.dot_dimension_numbers<[1], [0], [0], [1], [0, 0, 1, 1], [], []>} : vector<8x256xf32>, vector<256x896xf32>, vector<8x896xf32> -> vector<8x896xf32>
    %36 = vector.broadcast %26 : vector<1x896xf32> to vector<8x896xf32>
    %37 = arith.addf %35, %36 : vector<8x896xf32>
    %38 = math.tanh %37 : vector<8x896xf32>
    %39 = arith.mulf %32, %38 : vector<8x896xf32>
    %40 = arith.addf %22, %39 : vector<8x896xf32>
    %c2 = arith.constant 2 : index
    %41 = arith.index_cast %1 : i32 to index
    %42 = vector.load %arg4[%c2, %41] : memref<6x1792xf32, #tpu.memory_space<vmem>>, vector<1x896xf32>
    %c5 = arith.constant 5 : index
    %43 = arith.index_cast %1 : i32 to index
    %44 = vector.load %arg4[%c5, %43] : memref<6x1792xf32, #tpu.memory_space<vmem>>, vector<1x896xf32>
    %c2_20 = arith.constant 2 : index
    %c0_21 = arith.constant 0 : index
    %c0_22 = arith.constant 0 : index
    %45 = vector.load %arg3[%c2_20, %c0_21, %c0_22] : memref<6x256x896xf32, #tpu.memory_space<vmem>>, vector<1x256x896xf32>
    %46 = vector.shape_cast %45 : vector<1x256x896xf32> to vector<256x896xf32>
    %cst_23 = arith.constant dense<0.000000e+00> : vector<8x896xf32>
    %47 = tpu.matmul %2, %46, %cst_23 {dimension_numbers = #tpu.dot_dimension_numbers<[1], [0], [0], [1], [0, 0, 1, 1], [], []>} : vector<8x256xf32>, vector<256x896xf32>, vector<8x896xf32> -> vector<8x896xf32>
    %48 = vector.broadcast %42 : vector<1x896xf32> to vector<8x896xf32>
    %49 = arith.addf %47, %48 : vector<8x896xf32>
    %50 = math.tanh %49 : vector<8x896xf32>
    %c5_24 = arith.constant 5 : index
    %c0_25 = arith.constant 0 : index
    %c0_26 = arith.constant 0 : index
    %51 = vector.load %arg3[%c5_24, %c0_25, %c0_26] : memref<6x256x896xf32, #tpu.memory_space<vmem>>, vector<1x256x896xf32>
    %52 = vector.shape_cast %51 : vector<1x256x896xf32> to vector<256x896xf32>
    %cst_27 = arith.constant dense<0.000000e+00> : vector<8x896xf32>
    %53 = tpu.matmul %3, %52, %cst_27 {dimension_numbers = #tpu.dot_dimension_numbers<[1], [0], [0], [1], [0, 0, 1, 1], [], []>} : vector<8x256xf32>, vector<256x896xf32>, vector<8x896xf32> -> vector<8x896xf32>
    %54 = vector.broadcast %44 : vector<1x896xf32> to vector<8x896xf32>
    %55 = arith.addf %53, %54 : vector<8x896xf32>
    %56 = math.tanh %55 : vector<8x896xf32>
    %57 = arith.mulf %50, %56 : vector<8x896xf32>
    %58 = arith.addf %40, %57 : vector<8x896xf32>
    %59 = math.tanh %58 : vector<8x896xf32>
    %c0_28 = arith.constant 0 : index
    %c0_29 = arith.constant 0 : index
    %60 = vector.load %arg5[%c0_28, %c0_29] : memref<8x896xf32, #tpu.memory_space<vmem>>, vector<8x896xf32>
    tpu.vector_store %arg5[%c0_28, %c0_29], %59 {strides = array<i32>} : memref<8x896xf32, #tpu.memory_space<vmem>>, vector<8x896xf32>,
    return
  }
  func.func @transform_0(%arg0: i32) -> (i32, i32) {
    %c0_i32 = arith.constant 0 : i32
    %c0_i32_0 = arith.constant 0 : i32
    %c0_i32_1 = arith.constant 0 : i32
    return %c0_i32, %c0_i32_0 : i32, i32
  }
  func.func @transform_1(%arg0: i32) -> (i32, i32) {
    %c0_i32 = arith.constant 0 : i32
    %c0_i32_0 = arith.constant 0 : i32
    %c0_i32_1 = arith.constant 0 : i32
    return %c0_i32, %c0_i32_0 : i32, i32
  }
  func.func @transform_2(%arg0: i32) -> (i32, i32, i32) {
    %c0_i32 = arith.constant 0 : i32
    %c0_i32_0 = arith.constant 0 : i32
    %c0_i32_1 = arith.constant 0 : i32
    return %c0_i32, %c0_i32_0, %arg0 : i32, i32, i32
  }
  func.func @transform_3(%arg0: i32) -> (i32, i32) {
    %c0_i32 = arith.constant 0 : i32
    %c0_i32_0 = arith.constant 0 : i32
    %c0_i32_1 = arith.constant 0 : i32
    return %c0_i32, %c0_i32_0 : i32, i32
  }
  func.func @transform_4(%arg0: i32) -> (i32, i32) {
    %c0_i32 = arith.constant 0 : i32
    %c0_i32_0 = arith.constant 0 : i32
    return %c0_i32, %arg0 : i32, i32
  }
}

</mosaic_0001>

<llo_original>
// kernel: tpu_custom_call.1
$region0: #{tpu_custom_call.1}
  #allocation0 [shape = 'u32[]', space=smem, size = 0x4, offset = 0x4, fixed_abs, tag = 'smem constant byte address 0x4 - core index']
  #allocation1 [shape = 'u32[72,128]{1,0:T(1,128)}', space=vmem, size = 0x9000, scoped, tag = 'internal scratch']
  %s0 = inlined_call_operand.hbm [shape: f32[8,256], index: 0, kind: input, shape index: {}]
  %s1 = inlined_call_operand.hbm [shape: f32[8,256], index: 1, kind: input, shape index: {}]
  %s2 = inlined_call_operand.hbm [shape: f32[6,256,1792], index: 2, kind: input, shape index: {}]
  %s3 = inlined_call_operand.hbm [shape: f32[6,1792], index: 3, kind: input, shape index: {}]
  %s4 = inlined_call_operand.hbm [shape: f32[8,1792], index: 4, kind: output, shape index: {}]
  %s5 = sld [smem:[#allocation0]]
  $region65: #{tpu_custom_call.1} parent=0
    _
  %s7 = ssub.s32 1, %s5
  %s8 = scalar_select 0, %s7, %s5
  $region1: #{tpu_custom_call.1} parent=0
    #allocation2 [shape = 'u8[8192]{0}', space=vmem, size = 0x2000, scoped, tag = 'input window, operand 0, single buffered']
    #allocation3 [shape = 's32[2]{0}', space=sflag, size = 0x8, scoped, tag = 'scoped memory for tpu_custom_call.1']
    #allocation4 [shape = 's32[2]{0}', space=sflag, size = 0x8, scoped, tag = 'scoped memory for tpu_custom_call.1']
    #allocation5 [shape = 'u8[8192]{0}', space=vmem, size = 0x2000, scoped, tag = 'input window, operand 1, single buffered']
    #allocation6 [shape = 's32[1]{0}', space=sflag, size = 0x4, scoped, tag = 'scoped memory for tpu_custom_call.1']
    #allocation7 [shape = 'u8[11010048]{0}', space=vmem, size = 0xa80000, scoped, tag = 'input window, operand 2']
    #allocation8 [shape = 'u8[57344]{0}', space=vmem, size = 0xe000, scoped, tag = 'input window, operand 3, single buffered']
    #allocation9 [shape = 'u8[57344]{0}', space=vmem, size = 0xe000, scoped, tag = 'output window, operand 0']
    %9 = vsyncpa [#allocation3], 0
    %10 = vsyncpa [#allocation6], 0
    %11 = vsyncpa [#allocation4], 0
    %s12 = scalar_lea.sflag [#allocation4], 1
    %13 = vsyncpa %s12, 0
    loop: start=0, step=1, limit=4
    $region2: #{tpu_custom_call.1} parent=1 // loop_pre_header
      _
    $region3: #{tpu_custom_call.1} parent=1 // loop_header
      %s15 = sphi 0, %s19
      %p16 = scmp.ge.s32.totalorder %s15, 4
      %s23 = sphi 0, %s23
      %s25 = sphi 0, %s23
      %s26 = sphi 0, %s25
      %s40 = sphi 0, %s26
      %s44 = sphi 0, %s44
      %s46 = sphi 0, %s44
      %s47 = sphi 0, %s46
      %s61 = sphi 0, %s47
      %s67 = sphi 0, %s69
      %s70 = sphi 0, %s67
      %s71 = sphi 0, %s70
      %s87 = sphi 0, %s71
      %s91 = sphi 0, %s91
      %s93 = sphi 0, %s91
      %s94 = sphi 0, %s93
      %s108 = sphi 0, %s94
      %s114 = sphi 0, %s116
      %s117 = sphi 0, %s114
      %s118 = sphi 0, %s117
      %s134 = sphi 0, %s118
    $region4: #{tpu_custom_call.1} parent=1 // loop_header_branch
      %18 = sbr.rel (%p16) target = $region8
    $region5: #{tpu_custom_call.1} parent=1 // loop_body
      %s20 = ssub.s32 %s15, 1
      %s21 = ssub.s32 %s15, 2
      %s22 = sadd.s32 %s15, 1
      %s24 = sadd.s32 %s23, 1
      %p27 = scmp.eq.s32.totalorder %s15, 1
      %p28 = scmp.ne.s32.totalorder %s23, %s25
      %p29 = scmp.eq.s32.totalorder %s15, 0
      %p30 = por %p28, %p29
      %p31 = scmp.ne.s32.totalorder %s23, %s25
      %p32 = scmp.eq.s32.totalorder %s20, 1
      %p33 = por %p31, %p32
      %p34 = scmp.ne.s32.totalorder %s25, %s26
      %p35 = scmp.eq.s32.totalorder %s20, 0
      %p36 = por %p34, %p35
      %p37 = scmp.ne.s32.totalorder %s25, %s26
      %p38 = scmp.eq.s32.totalorder %s21, 1
      %p39 = por %p37, %p38
      %p41 = scmp.ne.s32.totalorder %s26, %s40
      %p42 = scmp.eq.s32.totalorder %s21, 0
      %p43 = por %p41, %p42
      %s45 = sadd.s32 %s44, 1
      %p48 = scmp.eq.s32.totalorder %s15, 1
      %p49 = scmp.ne.s32.totalorder %s44, %s46
      %p50 = scmp.eq.s32.totalorder %s15, 0
      %p51 = por %p49, %p50
      %p52 = scmp.ne.s32.totalorder %s44, %s46
      %p53 = scmp.eq.s32.totalorder %s20, 1
      %p54 = por %p52, %p53
      %p55 = scmp.ne.s32.totalorder %s46, %s47
      %p56 = scmp.eq.s32.totalorder %s20, 0
      %p57 = por %p55, %p56
      %p58 = scmp.ne.s32.totalorder %s46, %s47
      %p59 = scmp.eq.s32.totalorder %s21, 1
      %p60 = por %p58, %p59
      %p62 = scmp.ne.s32.totalorder %s47, %s61
      %p63 = scmp.eq.s32.totalorder %s21, 0
      %p64 = por %p62, %p63
      %s65 = ssub.s32 %s15, %s22
      %p66 = scmp.eq.s32.totalorder %s65, 0
      %s68 = sadd.s32 %s67, 1
      %s69 = scalar_select %p66, %s67, %s68
      %p72 = pneg %p66
      %p73 = scmp.eq.s32.totalorder %s15, 1
      %p74 = por %p72, %p73
      %p75 = scmp.ne.s32.totalorder %s67, %s70
      %p76 = scmp.eq.s32.totalorder %s15, 0
      %p77 = por %p75, %p76
      %p78 = scmp.ne.s32.totalorder %s67, %s70
      %p79 = scmp.eq.s32.totalorder %s20, 1
      %p80 = por %p78, %p79
      %p81 = scmp.ne.s32.totalorder %s70, %s71
      %p82 = scmp.eq.s32.totalorder %s20, 0
      %p83 = por %p81, %p82
      %p84 = scmp.ne.s32.totalorder %s70, %s71
      %p85 = scmp.eq.s32.totalorder %s21, 1
      %p86 = por %p84, %p85
      %p88 = scmp.ne.s32.totalorder %s71, %s87
      %p89 = scmp.eq.s32.totalorder %s21, 0
      %p90 = por %p88, %p89
      %s92 = sadd.s32 %s91, 1
      %p95 = scmp.eq.s32.totalorder %s15, 1
      %p96 = scmp.ne.s32.totalorder %s91, %s93
      %p97 = scmp.eq.s32.totalorder %s15, 0
      %p98 = por %p96, %p97
      %p99 = scmp.ne.s32.totalorder %s91, %s93
      %p100 = scmp.eq.s32.totalorder %s20, 1
      %p101 = por %p99, %p100
      %p102 = scmp.ne.s32.totalorder %s93, %s94
      %p103 = scmp.eq.s32.totalorder %s20, 0
      %p104 = por %p102, %p103
      %p105 = scmp.ne.s32.totalorder %s93, %s94
      %p106 = scmp.eq.s32.totalorder %s21, 1
      %p107 = por %p105, %p106
      %p109 = scmp.ne.s32.totalorder %s94, %s108
      %p110 = scmp.eq.s32.totalorder %s21, 0
      %p111 = por %p109, %p110
      %s112 = ssub.s32 %s15, %s22
      %p113 = scmp.eq.s32.totalorder %s112, 0
      %s115 = sadd.s32 %s114, 1
      %s116 = scalar_select %p113, %s114, %s115
      %p119 = pneg %p113
      %p120 = scmp.eq.s32.totalorder %s15, 1
      %p121 = por %p119, %p120
      %p122 = scmp.ne.s32.totalorder %s114, %s117
      %p123 = scmp.eq.s32.totalorder %s15, 0
      %p124 = por %p122, %p123
      %p125 = scmp.ne.s32.totalorder %s114, %s117
      %p126 = scmp.eq.s32.totalorder %s20, 1
      %p127 = por %p125, %p126
      %p128 = scmp.ne.s32.totalorder %s117, %s118
      %p129 = scmp.eq.s32.totalorder %s20, 0
      %p130 = por %p128, %p129
      %p131 = scmp.ne.s32.totalorder %s117, %s118
      %p132 = scmp.eq.s32.totalorder %s21, 1
      %p133 = por %p131, %p132
      %p135 = scmp.ne.s32.totalorder %s118, %s134
      %p136 = scmp.eq.s32.totalorder %s21, 0
      %p137 = por %p135, %p136
      %p138 = scmp.le.s32.totalorder 1, %s15
      %p139 = scmp.lt.s32.totalorder %s15, 3
      %p140 = pnand %p138, %p139
      %p141 = pneg %p140
      // Predicated region
      $region9: #{tpu_custom_call.1} parent=5 // pred_check
        _
      $region10: #{tpu_custom_call.1} parent=5 // pred_check_branch
        %143 = sbr.rel (%p140) target = $region12
      $region11: #{tpu_custom_call.1} parent=5 // pred_region
        %s144 = ssub.s32 %s15, 1
        // Predicated region
        $region13: #{tpu_custom_call.1} parent=11 // pred_check
          %p145 = pneg %p36
        $region14: #{tpu_custom_call.1} parent=11 // pred_check_branch
          %147 = sbr.rel (%p145) target = $region16
        $region15: #{tpu_custom_call.1} parent=11 // pred_region
          %149 = vsyncadd [#allocation3], 0
          %s151 = sshll.u32 %s0, 4
          %s152 = int_to_ptr.hbm [resolvable:$true] %s151
          %s153 = sshll.u32 [#allocation2], 4
          %s154 = int_to_ptr.vmem [resolvable:$true] %s153
          %156 = dma.hbm_to_vmem [thread:$0]  %s152, 256, %s154, [#allocation3]
        $region16: #{tpu_custom_call.1} parent=11 // pred_fallthru
          _
        // Predicated region
        $region17: #{tpu_custom_call.1} parent=11 // pred_check
          %p157 = pneg %p57
        $region18: #{tpu_custom_call.1} parent=11 // pred_check_branch
          %159 = sbr.rel (%p157) target = $region20
        $region19: #{tpu_custom_call.1} parent=11 // pred_region
          %161 = vsyncadd [#allocation6], 0
          %s163 = sshll.u32 %s1, 4
          %s164 = int_to_ptr.hbm [resolvable:$true] %s163
          %s165 = sshll.u32 [#allocation5], 4
          %s166 = int_to_ptr.vmem [resolvable:$true] %s165
          %168 = dma.hbm_to_vmem [thread:$0]  %s164, 256, %s166, [#allocation6]
        $region20: #{tpu_custom_call.1} parent=11 // pred_fallthru
          _
        // Predicated region
        $region21: #{tpu_custom_call.1} parent=11 // pred_check
          %p169 = pneg %p104
        $region22: #{tpu_custom_call.1} parent=11 // pred_check_branch
          %171 = sbr.rel (%p169) target = $region24
        $region23: #{tpu_custom_call.1} parent=11 // pred_region
          %173 = vsyncadd [#allocation6], 0
          %s175 = sshll.u32 %s3, 4
          %s176 = int_to_ptr.hbm [resolvable:$true] %s175
          %s177 = sshll.u32 [#allocation8], 4
          %s178 = int_to_ptr.vmem [resolvable:$true] %s177
          %180 = dma.hbm_to_vmem [thread:$0]  %s176, 1792, %s178, [#allocation6]
        $region24: #{tpu_custom_call.1} parent=11 // pred_fallthru
          _
      $region12: #{tpu_custom_call.1} parent=5 // pred_fallthru
        _
      %p181 = scmp.lt.s32.totalorder %s15, 2
      // Predicated region
      $region25: #{tpu_custom_call.1} parent=5 // pred_check
        %p182 = pneg %p181
      $region26: #{tpu_custom_call.1} parent=5 // pred_check_branch
        %184 = sbr.rel (%p182) target = $region28
      $region27: #{tpu_custom_call.1} parent=5 // pred_region
        // Predicated region
        $region29: #{tpu_custom_call.1} parent=27 // pred_check
          %p185 = pneg %p77
        $region30: #{tpu_custom_call.1} parent=27 // pred_check_branch
          %187 = sbr.rel (%p185) target = $region32
        $region31: #{tpu_custom_call.1} parent=27 // pred_region
          %s188 = sand.u32 %s15, 1
          %s189 = scalar_lea.sflag [#allocation3], %s188
          %s190 = sand.u32 %s67, 1
          %s191 = smul.addr %s190, 10752
          %s192 = scalar_lea.vmem [#allocation7], %s191
          %s193 = smul.u32 7, %s15
          %195 = vsyncadd %s189, 0
          %s196 = smul.addr %s193, 8
          %s197 = scalar_lea.hbm %s2, %s196
          %s198 = sshll.u32 %s197, 4
          %s199 = int_to_ptr.hbm [resolvable:$true] %s198
          %s200 = sshll.u32 %s192, 4
          %s201 = int_to_ptr.vmem [resolvable:$true] %s200
          %206 = dma.hbm_to_vmem [thread:$0]  %s199, 172032, %s201, %s189, 1792, 896, 56
        $region32: #{tpu_custom_call.1} parent=27 // pred_fallthru
          _
      $region28: #{tpu_custom_call.1} parent=5 // pred_fallthru
        _
      %p207 = scmp.le.s32.totalorder 1, %s15
      %p208 = scmp.lt.s32.totalorder %s15, 3
      %p209 = pnand %p207, %p208
      %p210 = pneg %p209
      // Predicated region
      $region33: #{tpu_custom_call.1} parent=5 // pred_check
        _
      $region34: #{tpu_custom_call.1} parent=5 // pred_check_branch
        %212 = sbr.rel (%p209) target = $region36
      $region35: #{tpu_custom_call.1} parent=5 // pred_region
        %s213 = ssub.s32 %s15, 1
        // Predicated region
        $region37: #{tpu_custom_call.1} parent=35 // pred_check
          %p214 = pneg %p36
        $region38: #{tpu_custom_call.1} parent=35 // pred_check_branch
          %216 = sbr.rel (%p214) target = $region40
        $region39: #{tpu_custom_call.1} parent=35 // pred_region
          %218 = dma.done [#allocation3], 256
        $region40: #{tpu_custom_call.1} parent=35 // pred_fallthru
          _
        // Predicated region
        $region41: #{tpu_custom_call.1} parent=35 // pred_check
          %p219 = pneg %p57
        $region42: #{tpu_custom_call.1} parent=35 // pred_check_branch
          %221 = sbr.rel (%p219) target = $region44
        $region43: #{tpu_custom_call.1} parent=35 // pred_region
          %223 = dma.done [#allocation6], 256
        $region44: #{tpu_custom_call.1} parent=35 // pred_fallthru
          _
        %s224 = sand.u32 %s20, 1
        %s225 = scalar_lea.sflag [#allocation3], %s224
        %s226 = sand.u32 %s70, 1
        %s227 = smul.addr %s226, 10752
        %s228 = scalar_lea.vmem [#allocation7], %s227
        // Predicated region
        $region45: #{tpu_custom_call.1} parent=35 // pred_check
          %p229 = pneg %p83
        $region46: #{tpu_custom_call.1} parent=35 // pred_check_branch
          %231 = sbr.rel (%p229) target = $region48
        $region47: #{tpu_custom_call.1} parent=35 // pred_region
          %233 = dma.done %s225, 172032
        $region48: #{tpu_custom_call.1} parent=35 // pred_fallthru
          _
        // Predicated region
        $region49: #{tpu_custom_call.1} parent=35 // pred_check
          %p234 = pneg %p104
        $region50: #{tpu_custom_call.1} parent=35 // pred_check_branch
          %236 = sbr.rel (%p234) target = $region52
        $region51: #{tpu_custom_call.1} parent=35 // pred_region
          %238 = dma.done [#allocation6], 1792
        $region52: #{tpu_custom_call.1} parent=35 // pred_fallthru
          _
        %p239 = pneg %p36
        %p240 = pneg %p33
        %p241 = pneg %p57
        %p242 = pneg %p54
        %s243 = sand.u32 %s20, 1
        %s244 = scalar_lea.sflag [#allocation3], %s243
        %s245 = sand.u32 %s70, 1
        %s246 = smul.addr %s245, 10752
        %s247 = scalar_lea.vmem [#allocation7], %s246
        %p248 = pneg %p83
        %p249 = pneg %p80
        %p250 = pneg %p104
        %p251 = pneg %p101
        %p252 = pneg %p130
        %p253 = pneg %p127
        %s254 = sand.u32 %s117, 1
        %s255 = scalar_lea.sflag [#allocation4], %s254
        %s256 = sand.u32 %s117, 1
        %s257 = smul.addr %s256, 56
        %s258 = scalar_lea.vmem [#allocation9], %s257
        %s259 = smul.u32 7, %s20
        %s260 = smul.u32 7, %s20
        %s261 = smul.u32 %s20, 896
        %v262 = vld [vmem:[#allocation2] sm:$0xff]
        %v263 = vld [vmem:[#allocation2 + $0x8] sm:$0xff]
        %v264 = vld [vmem:[#allocation5] sm:$0xff]
        %v265 = vld [vmem:[#allocation5 + $0x8] sm:$0xff]
        %s266 = sshra.s32 %s261, 7
        %s267 = sand.u32 %s261, 127
        %s268 = smul.addr %s266, 8
        %s269 = scalar_lea.vmem [#allocation8], %s268
        %v270 = vld [vmem:[%s269] ss:$8 sm:$0xf]
        %v271 = vld [vmem:[%s269] ss:$8 sm:$0xf0]
        %v272 = vor.u32 %v270, %v271
        %s273 = scalar_lea.vmem %s269, 3 [#allocation8]
        %v274 = vld [vmem:[%s273] ss:$8 sm:$0xf]
        %v275 = vld [vmem:[%s273] ss:$8 sm:$0xf0]
        %v276 = vor.u32 %v274, %v275
        %v277 = vld [vmem:[%s228] sm:$0xff]
        %v278 = vld [vmem:[%s228 + $0x8] sm:$0xff]
        %v279 = vld [vmem:[%s228 + $0x10] sm:$0xff]
        %v280 = vld [vmem:[%s228 + $0x18] sm:$0xff]
        %v281 = vld [vmem:[%s228 + $0x20] sm:$0xff]
        %v282 = vld [vmem:[%s228 + $0x28] sm:$0xff]
        %v283 = vld [vmem:[%s228 + $0x30] sm:$0xff]
        %v284 = vld [vmem:[%s228 + $0x38] sm:$0xff]
        %v285 = vld [vmem:[%s228 + $0x40] sm:$0xff]
        %v286 = vld [vmem:[%s228 + $0x48] sm:$0xff]
        %v287 = vld [vmem:[%s228 + $0x50] sm:$0xff]
        %v288 = vld [vmem:[%s228 + $0x58] sm:$0xff]
        %v289 = vld [vmem:[%s228 + $0x60] sm:$0xff]
        %v290 = vld [vmem:[%s228 + $0x68] sm:$0xff]
        %v291 = vld [vmem:[%s228 + $0x70] sm:$0xff]
        %v292 = vld [vmem:[%s228 + $0x78] sm:$0xff]
        %v293 = vld [vmem:[%s228 + $0x80] sm:$0xff]
        %v294 = vld [vmem:[%s228 + $0x88] sm:$0xff]
        %v295 = vld [vmem:[%s228 + $0x90] sm:$0xff]
        %v296 = vld [vmem:[%s228 + $0x98] sm:$0xff]
        %v297 = vld [vmem:[%s228 + $0xa0] sm:$0xff]
        %v298 = vld [vmem:[%s228 + $0xa8] sm:$0xff]
        %v299 = vld [vmem:[%s228 + $0xb0] sm:$0xff]
        %v300 = vld [vmem:[%s228 + $0xb8] sm:$0xff]
        %v301 = vld [vmem:[%s228 + $0xc0] sm:$0xff]
        %v302 = vld [vmem:[%s228 + $0xc8] sm:$0xff]
        %v303 = vld [vmem:[%s228 + $0xd0] sm:$0xff]
        %v304 = vld [vmem:[%s228 + $0xd8] sm:$0xff]
        %v305 = vld [vmem:[%s228 + $0xe0] sm:$0xff]
        %v306 = vld [vmem:[%s228 + $0xe8] sm:$0xff]
        %v307 = vld [vmem:[%s228 + $0xf0] sm:$0xff]
        %v308 = vld [vmem:[%s228 + $0xf8] sm:$0xff]
        %v309 = vld [vmem:[%s228 + $0x100] sm:$0xff]
        %v310 = vld [vmem:[%s228 + $0x108] sm:$0xff]
        %v311 = vld [vmem:[%s228 + $0x110] sm:$0xff]
        %v312 = vld [vmem:[%s228 + $0x118] sm:$0xff]
        %v313 = vld [vmem:[%s228 + $0x120] sm:$0xff]
        %v314 = vld [vmem:[%s228 + $0x128] sm:$0xff]
        %v315 = vld [vmem:[%s228 + $0x130] sm:$0xff]
        %v316 = vld [vmem:[%s228 + $0x138] sm:$0xff]
        %v317 = vld [vmem:[%s228 + $0x140] sm:$0xff]
        %v318 = vld [vmem:[%s228 + $0x148] sm:$0xff]
        %v319 = vld [vmem:[%s228 + $0x150] sm:$0xff]
        %v320 = vld [vmem:[%s228 + $0x158] sm:$0xff]
        %v321 = vld [vmem:[%s228 + $0x160] sm:$0xff]
        %v322 = vld [vmem:[%s228 + $0x168] sm:$0xff]
        %v323 = vld [vmem:[%s228 + $0x170] sm:$0xff]
        %v324 = vld [vmem:[%s228 + $0x178] sm:$0xff]
        %v325 = vld [vmem:[%s228 + $0x180] sm:$0xff]
        %v326 = vld [vmem:[%s228 + $0x188] sm:$0xff]
        %v327 = vld [vmem:[%s228 + $0x190] sm:$0xff]
        %v328 = vld [vmem:[%s228 + $0x198] sm:$0xff]
        %v329 = vld [vmem:[%s228 + $0x1a0] sm:$0xff]
        %v330 = vld [vmem:[%s228 + $0x1a8] sm:$0xff]
        %v331 = vld [vmem:[%s228 + $0x1b0] sm:$0xff]
        %v332 = vld [vmem:[%s228 + $0x1b8] sm:$0xff]
        %v333 = vld [vmem:[%s228 + $0x1c0] sm:$0xff]
        %v334 = vld [vmem:[%s228 + $0x1c8] sm:$0xff]
        %v335 = vld [vmem:[%s228 + $0x1d0] sm:$0xff]
        %v336 = vld [vmem:[%s228 + $0x1d8] sm:$0xff]
        %v337 = vld [vmem:[%s228 + $0x1e0] sm:$0xff]
        %v338 = vld [vmem:[%s228 + $0x1e8] sm:$0xff]
        %v339 = vld [vmem:[%s228 + $0x1f0] sm:$0xff]
        %v340 = vld [vmem:[%s228 + $0x1f8] sm:$0xff]
        %v341 = vld [vmem:[%s228 + $0x200] sm:$0xff]
        %v342 = vld [vmem:[%s228 + $0x208] sm:$0xff]
        %v343 = vld [vmem:[%s228 + $0x210] sm:$0xff]
        %v344 = vld [vmem:[%s228 + $0x218] sm:$0xff]
        %v345 = vld [vmem:[%s228 + $0x220] sm:$0xff]
        %v346 = vld [vmem:[%s228 + $0x228] sm:$0xff]
        %v347 = vld [vmem:[%s228 + $0x230] sm:$0xff]
        %v348 = vld [vmem:[%s228 + $0x238] sm:$0xff]
        %v349 = vld [vmem:[%s228 + $0x240] sm:$0xff]
        %v350 = vld [vmem:[%s228 + $0x248] sm:$0xff]
        %v351 = vld [vmem:[%s228 + $0x250] sm:$0xff]
        %v352 = vld [vmem:[%s228 + $0x258] sm:$0xff]
        %v353 = vld [vmem:[%s228 + $0x260] sm:$0xff]
        %v354 = vld [vmem:[%s228 + $0x268] sm:$0xff]
        %v355 = vld [vmem:[%s228 + $0x270] sm:$0xff]
        %v356 = vld [vmem:[%s228 + $0x278] sm:$0xff]
        %v357 = vld [vmem:[%s228 + $0x280] sm:$0xff]
        %v358 = vld [vmem:[%s228 + $0x288] sm:$0xff]
        %v359 = vld [vmem:[%s228 + $0x290] sm:$0xff]
        %v360 = vld [vmem:[%s228 + $0x298] sm:$0xff]
        %v361 = vld [vmem:[%s228 + $0x2a0] sm:$0xff]
        %v362 = vld [vmem:[%s228 + $0x2a8] sm:$0xff]
        %v363 = vld [vmem:[%s228 + $0x2b0] sm:$0xff]
        %v364 = vld [vmem:[%s228 + $0x2b8] sm:$0xff]
        %v365 = vld [vmem:[%s228 + $0x2c0] sm:$0xff]
        %v366 = vld [vmem:[%s228 + $0x2c8] sm:$0xff]
        %v367 = vld [vmem:[%s228 + $0x2d0] sm:$0xff]
        %v368 = vld [vmem:[%s228 + $0x2d8] sm:$0xff]
        %v369 = vld [vmem:[%s228 + $0x2e0] sm:$0xff]
        %v370 = vld [vmem:[%s228 + $0x2e8] sm:$0xff]
        %v371 = vld [vmem:[%s228 + $0x2f0] sm:$0xff]
        %v372 = vld [vmem:[%s228 + $0x2f8] sm:$0xff]
        %v373 = vld [vmem:[%s228 + $0x300] sm:$0xff]
        %v374 = vld [vmem:[%s228 + $0x308] sm:$0xff]
        %v375 = vld [vmem:[%s228 + $0x310] sm:$0xff]
        %v376 = vld [vmem:[%s228 + $0x318] sm:$0xff]
        %v377 = vld [vmem:[%s228 + $0x320] sm:$0xff]
        %v378 = vld [vmem:[%s228 + $0x328] sm:$0xff]
        %v379 = vld [vmem:[%s228 + $0x330] sm:$0xff]
        %v380 = vld [vmem:[%s228 + $0x338] sm:$0xff]
        %v381 = vld [vmem:[%s228 + $0x340] sm:$0xff]
        %v382 = vld [vmem:[%s228 + $0x348] sm:$0xff]
        %v383 = vld [vmem:[%s228 + $0x350] sm:$0xff]
        %v384 = vld [vmem:[%s228 + $0x358] sm:$0xff]
        %v385 = vld [vmem:[%s228 + $0x360] sm:$0xff]
        %v386 = vld [vmem:[%s228 + $0x368] sm:$0xff]
        %v387 = vld [vmem:[%s228 + $0x370] sm:$0xff]
        %v388 = vld [vmem:[%s228 + $0x378] sm:$0xff]
        %v389 = vld [vmem:[%s228 + $0x380] sm:$0xff]
        %v390 = vld [vmem:[%s228 + $0x388] sm:$0xff]
        %v391 = vld [vmem:[%s228 + $0x390] sm:$0xff]
        %v392 = vld [vmem:[%s228 + $0x398] sm:$0xff]
        %v393 = vld [vmem:[%s228 + $0x3a0] sm:$0xff]
        %v394 = vld [vmem:[%s228 + $0x3a8] sm:$0xff]
        %v395 = vld [vmem:[%s228 + $0x3b0] sm:$0xff]
        %v396 = vld [vmem:[%s228 + $0x3b8] sm:$0xff]
        %v397 = vld [vmem:[%s228 + $0x3c0] sm:$0xff]
        %v398 = vld [vmem:[%s228 + $0x3c8] sm:$0xff]
        %v399 = vld [vmem:[%s228 + $0x3d0] sm:$0xff]
        %v400 = vld [vmem:[%s228 + $0x3d8] sm:$0xff]
        %v401 = vld [vmem:[%s228 + $0x3e0] sm:$0xff]
        %v402 = vld [vmem:[%s228 + $0x3e8] sm:$0xff]
        %v403 = vld [vmem:[%s228 + $0x3f0] sm:$0xff]
        %v404 = vld [vmem:[%s228 + $0x3f8] sm:$0xff]
        %v405 = vld [vmem:[%s228 + $0x400] sm:$0xff]
        %v406 = vld [vmem:[%s228 + $0x408] sm:$0xff]
        %v407 = vld [vmem:[%s228 + $0x410] sm:$0xff]
        %v408 = vld [vmem:[%s228 + $0x418] sm:$0xff]
        %v409 = vld [vmem:[%s228 + $0x420] sm:$0xff]
        %v410 = vld [vmem:[%s228 + $0x428] sm:$0xff]
        %v411 = vld [vmem:[%s228 + $0x430] sm:$0xff]
        %v412 = vld [vmem:[%s228 + $0x438] sm:$0xff]
        %v413 = vld [vmem:[%s228 + $0x440] sm:$0xff]
        %v414 = vld [vmem:[%s228 + $0x448] sm:$0xff]
        %v415 = vld [vmem:[%s228 + $0x450] sm:$0xff]
        %v416 = vld [vmem:[%s228 + $0x458] sm:$0xff]
        %v417 = vld [vmem:[%s228 + $0x460] sm:$0xff]
        %v418 = vld [vmem:[%s228 + $0x468] sm:$0xff]
        %v419 = vld [vmem:[%s228 + $0x470] sm:$0xff]
        %v420 = vld [vmem:[%s228 + $0x478] sm:$0xff]
        %v421 = vld [vmem:[%s228 + $0x480] sm:$0xff]
        %v422 = vld [vmem:[%s228 + $0x488] sm:$0xff]
        %v423 = vld [vmem:[%s228 + $0x490] sm:$0xff]
        %v424 = vld [vmem:[%s228 + $0x498] sm:$0xff]
        %v425 = vld [vmem:[%s228 + $0x4a0] sm:$0xff]
        %v426 = vld [vmem:[%s228 + $0x4a8] sm:$0xff]
        %v427 = vld [vmem:[%s228 + $0x4b0] sm:$0xff]
        %v428 = vld [vmem:[%s228 + $0x4b8] sm:$0xff]
        %v429 = vld [vmem:[%s228 + $0x4c0] sm:$0xff]
        %v430 = vld [vmem:[%s228 + $0x4c8] sm:$0xff]
        %v431 = vld [vmem:[%s228 + $0x4d0] sm:$0xff]
        %v432 = vld [vmem:[%s228 + $0x4d8] sm:$0xff]
        %v433 = vld [vmem:[%s228 + $0x4e0] sm:$0xff]
        %v434 = vld [vmem:[%s228 + $0x4e8] sm:$0xff]
        %v435 = vld [vmem:[%s228 + $0x4f0] sm:$0xff]
        %v436 = vld [vmem:[%s228 + $0x4f8] sm:$0xff]
        %v437 = vld [vmem:[%s228 + $0x500] sm:$0xff]
        %v438 = vld [vmem:[%s228 + $0x508] sm:$0xff]
        %v439 = vld [vmem:[%s228 + $0x510] sm:$0xff]
        %v440 = vld [vmem:[%s228 + $0x518] sm:$0xff]
        %v441 = vld [vmem:[%s228 + $0x520] sm:$0xff]
        %v442 = vld [vmem:[%s228 + $0x528] sm:$0xff]
        %v443 = vld [vmem:[%s228 + $0x530] sm:$0xff]
        %v444 = vld [vmem:[%s228 + $0x538] sm:$0xff]
        %v445 = vld [vmem:[%s228 + $0x540] sm:$0xff]
        %v446 = vld [vmem:[%s228 + $0x548] sm:$0xff]
        %v447 = vld [vmem:[%s228 + $0x550] sm:$0xff]
        %v448 = vld [vmem:[%s228 + $0x558] sm:$0xff]
        %v449 = vld [vmem:[%s228 + $0x560] sm:$0xff]
        %v450 = vld [vmem:[%s228 + $0x568] sm:$0xff]
        %v451 = vld [vmem:[%s228 + $0x570] sm:$0xff]
        %v452 = vld [vmem:[%s228 + $0x578] sm:$0xff]
        %v453 = vld [vmem:[%s228 + $0x580] sm:$0xff]
        %v454 = vld [vmem:[%s228 + $0x588] sm:$0xff]
        %v455 = vld [vmem:[%s228 + $0x590] sm:$0xff]
        %v456 = vld [vmem:[%s228 + $0x598] sm:$0xff]
        %v457 = vld [vmem:[%s228 + $0x5a0] sm:$0xff]
        %v458 = vld [vmem:[%s228 + $0x5a8] sm:$0xff]
        %v459 = vld [vmem:[%s228 + $0x5b0] sm:$0xff]
        %v460 = vld [vmem:[%s228 + $0x5b8] sm:$0xff]
        %v461 = vld [vmem:[%s228 + $0x5c0] sm:$0xff]
        %v462 = vld [vmem:[%s228 + $0x5c8] sm:$0xff]
        %v463 = vld [vmem:[%s228 + $0x5d0] sm:$0xff]
        %v464 = vld [vmem:[%s228 + $0x5d8] sm:$0xff]
        %v465 = vld [vmem:[%s228 + $0x5e0] sm:$0xff]
        %v466 = vld [vmem:[%s228 + $0x5e8] sm:$0xff]
        %v467 = vld [vmem:[%s228 + $0x5f0] sm:$0xff]
        %v468 = vld [vmem:[%s228 + $0x5f8] sm:$0xff]
        %v469 = vld [vmem:[%s228 + $0x600] sm:$0xff]
        %v470 = vld [vmem:[%s228 + $0x608] sm:$0xff]
        %v471 = vld [vmem:[%s228 + $0x610] sm:$0xff]
        %v472 = vld [vmem:[%s228 + $0x618] sm:$0xff]
        %v473 = vld [vmem:[%s228 + $0x620] sm:$0xff]
        %v474 = vld [vmem:[%s228 + $0x628] sm:$0xff]
        %v475 = vld [vmem:[%s228 + $0x630] sm:$0xff]
        %v476 = vld [vmem:[%s228 + $0x638] sm:$0xff]
        %v477 = vld [vmem:[%s228 + $0x640] sm:$0xff]
        %v478 = vld [vmem:[%s228 + $0x648] sm:$0xff]
        %v479 = vld [vmem:[%s228 + $0x650] sm:$0xff]
        %v480 = vld [vmem:[%s228 + $0x658] sm:$0xff]
        %v481 = vld [vmem:[%s228 + $0x660] sm:$0xff]
        %v482 = vld [vmem:[%s228 + $0x668] sm:$0xff]
        %v483 = vld [vmem:[%s228 + $0x670] sm:$0xff]
        %v484 = vld [vmem:[%s228 + $0x678] sm:$0xff]
        %v485 = vld [vmem:[%s228 + $0x680] sm:$0xff]
        %v486 = vld [vmem:[%s228 + $0x688] sm:$0xff]
        %v487 = vld [vmem:[%s228 + $0x690] sm:$0xff]
        %v488 = vld [vmem:[%s228 + $0x698] sm:$0xff]
        %v489 = vld [vmem:[%s228 + $0x6a0] sm:$0xff]
        %v490 = vld [vmem:[%s228 + $0x6a8] sm:$0xff]
        %v491 = vld [vmem:[%s228 + $0x6b0] sm:$0xff]
        %v492 = vld [vmem:[%s228 + $0x6b8] sm:$0xff]
        %v493 = vld [vmem:[%s228 + $0x6c0] sm:$0xff]
        %v494 = vld [vmem:[%s228 + $0x6c8] sm:$0xff]
        %v495 = vld [vmem:[%s228 + $0x6d0] sm:$0xff]
        %v496 = vld [vmem:[%s228 + $0x6d8] sm:$0xff]
        %v497 = vld [vmem:[%s228 + $0x6e0] sm:$0xff]
        %v498 = vld [vmem:[%s228 + $0x6e8] sm:$0xff]
        %v499 = vld [vmem:[%s228 + $0x6f0] sm:$0xff]
        %v500 = vld [vmem:[%s228 + $0x6f8] sm:$0xff]
        %v502 = vperm.slane %v272, 0
        %v503 = vperm.slane %v272, 1
        %v504 = vperm.slane %v272, 2
        %v505 = vperm.slane %v272, 3
        %v506 = vperm.slane %v272, 4
        %v507 = vperm.slane %v272, 5
        %v508 = vperm.slane %v272, 6
        %516 = vmatpush.msra.mxu0 %v382
        %517 = vmatpush.msra.mxu0 %v375
        %518 = vmatpush.msra.mxu0 %v368
        %519 = vmatpush.msra.mxu0 %v361
        %520 = vmatpush.msra.mxu0 %v354
        %521 = vmatpush.msra.mxu0 %v347
        %522 = vmatpush.msra.mxu0 %v340
        %523 = vmatpush.msra.mxu0 %v333
        %524 = vmatpush.msra.mxu0 %v326
        %525 = vmatpush.msra.mxu0 %v319
        %526 = vmatpush.msra.mxu0 %v312
        %527 = vmatpush.msra.mxu0 %v305
        %528 = vmatpush.msra.mxu0 %v298
        %529 = vmatpush.msra.mxu0 %v291
        %530 = vmatpush.msra.mxu0 %v284
        %531 = vmatpush.msra.mxu0 %v277
        %532 = vmatmul.f32.gmra.mxu0 %v262
        %v533 = vpop.f32.mrf.mxu0
        %v534 = vadd.f32 %v502, %v533
        %535 = vdwg.mxu0
        %536 = vmatpush.msra.mxu0 %v494
        %537 = vmatpush.msra.mxu0 %v487
        %538 = vmatpush.msra.mxu0 %v480
        %539 = vmatpush.msra.mxu0 %v473
        %540 = vmatpush.msra.mxu0 %v466
        %541 = vmatpush.msra.mxu0 %v459
        %542 = vmatpush.msra.mxu0 %v452
        %543 = vmatpush.msra.mxu0 %v445
        %544 = vmatpush.msra.mxu0 %v438
        %545 = vmatpush.msra.mxu0 %v431
        %546 = vmatpush.msra.mxu0 %v424
        %547 = vmatpush.msra.mxu0 %v417
        %548 = vmatpush.msra.mxu0 %v410
        %549 = vmatpush.msra.mxu0 %v403
        %550 = vmatpush.msra.mxu0 %v396
        %551 = vmatpush.msra.mxu0 %v389
        %552 = vmatmul.f32.gmra.mxu0 %v263
        %v553 = vpop.f32.mrf.mxu0
        %v554 = vadd.f32 %v534, %v553
        %555 = vdwg.mxu0
        %556 = vmatpush.msra.mxu0 %v383
        %557 = vmatpush.msra.mxu0 %v376
        %558 = vmatpush.msra.mxu0 %v369
        %559 = vmatpush.msra.mxu0 %v362
        %560 = vmatpush.msra.mxu0 %v355
        %561 = vmatpush.msra.mxu0 %v348
        %562 = vmatpush.msra.mxu0 %v341
        %563 = vmatpush.msra.mxu0 %v334
        %564 = vmatpush.msra.mxu0 %v327
        %565 = vmatpush.msra.mxu0 %v320
        %566 = vmatpush.msra.mxu0 %v313
        %567 = vmatpush.msra.mxu0 %v306
        %568 = vmatpush.msra.mxu0 %v299
        %569 = vmatpush.msra.mxu0 %v292
        %570 = vmatpush.msra.mxu0 %v285
        %571 = vmatpush.msra.mxu0 %v278
        %572 = vmatmul.f32.gmra.mxu0 %v262
        %v573 = vpop.f32.mrf.mxu0
        %v574 = vadd.f32 %v503, %v573
        %575 = vdwg.mxu0
        %576 = vmatpush.msra.mxu0 %v495
        %577 = vmatpush.msra.mxu0 %v488
        %578 = vmatpush.msra.mxu0 %v481
        %579 = vmatpush.msra.mxu0 %v474
        %580 = vmatpush.msra.mxu0 %v467
        %581 = vmatpush.msra.mxu0 %v460
        %582 = vmatpush.msra.mxu0 %v453
        %583 = vmatpush.msra.mxu0 %v446
        %584 = vmatpush.msra.mxu0 %v439
        %585 = vmatpush.msra.mxu0 %v432
        %586 = vmatpush.msra.mxu0 %v425
        %587 = vmatpush.msra.mxu0 %v418
        %588 = vmatpush.msra.mxu0 %v411
        %589 = vmatpush.msra.mxu0 %v404
        %590 = vmatpush.msra.mxu0 %v397
        %591 = vmatpush.msra.mxu0 %v390
        %592 = vmatmul.f32.gmra.mxu0 %v263
        %v593 = vpop.f32.mrf.mxu0
        %v594 = vadd.f32 %v574, %v593
        %595 = vdwg.mxu0
        %596 = vmatpush.msra.mxu0 %v384
        %597 = vmatpush.msra.mxu0 %v377
        %598 = vmatpush.msra.mxu0 %v370
        %599 = vmatpush.msra.mxu0 %v363
        %600 = vmatpush.msra.mxu0 %v356
        %601 = vmatpush.msra.mxu0 %v349
        %602 = vmatpush.msra.mxu0 %v342
        %603 = vmatpush.msra.mxu0 %v335
        %604 = vmatpush.msra.mxu0 %v328
        %605 = vmatpush.msra.mxu0 %v321
        %606 = vmatpush.msra.mxu0 %v314
        %607 = vmatpush.msra.mxu0 %v307
        %608 = vmatpush.msra.mxu0 %v300
        %609 = vmatpush.msra.mxu0 %v293
        %610 = vmatpush.msra.mxu0 %v286
        %611 = vmatpush.msra.mxu0 %v279
        %612 = vmatmul.f32.gmra.mxu0 %v262
        %v613 = vpop.f32.mrf.mxu0
        %v614 = vadd.f32 %v504, %v613
        %615 = vdwg.mxu0
        %616 = vmatpush.msra.mxu0 %v496
        %617 = vmatpush.msra.mxu0 %v489
        %618 = vmatpush.msra.mxu0 %v482
        %619 = vmatpush.msra.mxu0 %v475
        %620 = vmatpush.msra.mxu0 %v468
        %621 = vmatpush.msra.mxu0 %v461
        %622 = vmatpush.msra.mxu0 %v454
        %623 = vmatpush.msra.mxu0 %v447
        %624 = vmatpush.msra.mxu0 %v440
        %625 = vmatpush.msra.mxu0 %v433
        %626 = vmatpush.msra.mxu0 %v426
        %627 = vmatpush.msra.mxu0 %v419
        %628 = vmatpush.msra.mxu0 %v412
        %629 = vmatpush.msra.mxu0 %v405
        %630 = vmatpush.msra.mxu0 %v398
        %631 = vmatpush.msra.mxu0 %v391
        %632 = vmatmul.f32.gmra.mxu0 %v263
        %v633 = vpop.f32.mrf.mxu0
        %v634 = vadd.f32 %v614, %v633
        %635 = vdwg.mxu0
        %636 = vmatpush.msra.mxu0 %v385
        %637 = vmatpush.msra.mxu0 %v378
        %638 = vmatpush.msra.mxu0 %v371
        %639 = vmatpush.msra.mxu0 %v364
        %640 = vmatpush.msra.mxu0 %v357
        %641 = vmatpush.msra.mxu0 %v350
        %642 = vmatpush.msra.mxu0 %v343
        %643 = vmatpush.msra.mxu0 %v336
        %644 = vmatpush.msra.mxu0 %v329
        %645 = vmatpush.msra.mxu0 %v322
        %646 = vmatpush.msra.mxu0 %v315
        %647 = vmatpush.msra.mxu0 %v308
        %648 = vmatpush.msra.mxu0 %v301
        %649 = vmatpush.msra.mxu0 %v294
        %650 = vmatpush.msra.mxu0 %v287
        %651 = vmatpush.msra.mxu0 %v280
        %652 = vmatmul.f32.gmra.mxu0 %v262
        %v653 = vpop.f32.mrf.mxu0
        %v654 = vadd.f32 %v505, %v653
        %655 = vdwg.mxu0
        %656 = vmatpush.msra.mxu0 %v497
        %657 = vmatpush.msra.mxu0 %v490
        %658 = vmatpush.msra.mxu0 %v483
        %659 = vmatpush.msra.mxu0 %v476
        %660 = vmatpush.msra.mxu0 %v469
        %661 = vmatpush.msra.mxu0 %v462
        %662 = vmatpush.msra.mxu0 %v455
        %663 = vmatpush.msra.mxu0 %v448
        %664 = vmatpush.msra.mxu0 %v441
        %665 = vmatpush.msra.mxu0 %v434
        %666 = vmatpush.msra.mxu0 %v427
        %667 = vmatpush.msra.mxu0 %v420
        %668 = vmatpush.msra.mxu0 %v413
        %669 = vmatpush.msra.mxu0 %v406
        %670 = vmatpush.msra.mxu0 %v399
        %671 = vmatpush.msra.mxu0 %v392
        %672 = vmatmul.f32.gmra.mxu0 %v263
        %v673 = vpop.f32.mrf.mxu0
        %v674 = vadd.f32 %v654, %v673
        %675 = vdwg.mxu0
        %676 = vmatpush.msra.mxu0 %v386
        %677 = vmatpush.msra.mxu0 %v379
        %678 = vmatpush.msra.mxu0 %v372
        %679 = vmatpush.msra.mxu0 %v365
        %680 = vmatpush.msra.mxu0 %v358
        %681 = vmatpush.msra.mxu0 %v351
        %682 = vmatpush.msra.mxu0 %v344
        %683 = vmatpush.msra.mxu0 %v337
        %684 = vmatpush.msra.mxu0 %v330
        %685 = vmatpush.msra.mxu0 %v323
        %686 = vmatpush.msra.mxu0 %v316
        %687 = vmatpush.msra.mxu0 %v309
        %688 = vmatpush.msra.mxu0 %v302
        %689 = vmatpush.msra.mxu0 %v295
        %690 = vmatpush.msra.mxu0 %v288
        %691 = vmatpush.msra.mxu0 %v281
        %692 = vmatmul.f32.gmra.mxu0 %v262
        %v693 = vpop.f32.mrf.mxu0
        %v694 = vadd.f32 %v506, %v693
        %695 = vdwg.mxu0
        %696 = vmatpush.msra.mxu0 %v498
        %697 = vmatpush.msra.mxu0 %v491
        %698 = vmatpush.msra.mxu0 %v484
        %699 = vmatpush.msra.mxu0 %v477
        %700 = vmatpush.msra.mxu0 %v470
        %701 = vmatpush.msra.mxu0 %v463
        %702 = vmatpush.msra.mxu0 %v456
        %703 = vmatpush.msra.mxu0 %v449
        %704 = vmatpush.msra.mxu0 %v442
        %705 = vmatpush.msra.mxu0 %v435
        %706 = vmatpush.msra.mxu0 %v428
        %707 = vmatpush.msra.mxu0 %v421
        %708 = vmatpush.msra.mxu0 %v414
        %709 = vmatpush.msra.mxu0 %v407
        %710 = vmatpush.msra.mxu0 %v400
        %711 = vmatpush.msra.mxu0 %v393
        %712 = vmatmul.f32.gmra.mxu0 %v263
        %v713 = vpop.f32.mrf.mxu0
        %v714 = vadd.f32 %v694, %v713
        %715 = vdwg.mxu0
        %716 = vmatpush.msra.mxu0 %v387
        %717 = vmatpush.msra.mxu0 %v380
        %718 = vmatpush.msra.mxu0 %v373
        %719 = vmatpush.msra.mxu0 %v366
        %720 = vmatpush.msra.mxu0 %v359
        %721 = vmatpush.msra.mxu0 %v352
        %722 = vmatpush.msra.mxu0 %v345
        %723 = vmatpush.msra.mxu0 %v338
        %724 = vmatpush.msra.mxu0 %v331
        %725 = vmatpush.msra.mxu0 %v324
        %726 = vmatpush.msra.mxu0 %v317
        %727 = vmatpush.msra.mxu0 %v310
        %728 = vmatpush.msra.mxu0 %v303
        %729 = vmatpush.msra.mxu0 %v296
        %730 = vmatpush.msra.mxu0 %v289
        %731 = vmatpush.msra.mxu0 %v282
        %732 = vmatmul.f32.gmra.mxu0 %v262
        %v733 = vpop.f32.mrf.mxu0
        %v734 = vadd.f32 %v507, %v733
        %735 = vdwg.mxu0
        %736 = vmatpush.msra.mxu0 %v499
        %737 = vmatpush.msra.mxu0 %v492
        %738 = vmatpush.msra.mxu0 %v485
        %739 = vmatpush.msra.mxu0 %v478
        %740 = vmatpush.msra.mxu0 %v471
        %741 = vmatpush.msra.mxu0 %v464
        %742 = vmatpush.msra.mxu0 %v457
        %743 = vmatpush.msra.mxu0 %v450
        %744 = vmatpush.msra.mxu0 %v443
        %745 = vmatpush.msra.mxu0 %v436
        %746 = vmatpush.msra.mxu0 %v429
        %747 = vmatpush.msra.mxu0 %v422
        %748 = vmatpush.msra.mxu0 %v415
        %749 = vmatpush.msra.mxu0 %v408
        %750 = vmatpush.msra.mxu0 %v401
        %751 = vmatpush.msra.mxu0 %v394
        %752 = vmatmul.f32.gmra.mxu0 %v263
        %v753 = vpop.f32.mrf.mxu0
        %v754 = vadd.f32 %v734, %v753
        %755 = vdwg.mxu0
        %756 = vmatpush.msra.mxu0 %v388
        %757 = vmatpush.msra.mxu0 %v381
        %758 = vmatpush.msra.mxu0 %v374
        %759 = vmatpush.msra.mxu0 %v367
        %760 = vmatpush.msra.mxu0 %v360
        %761 = vmatpush.msra.mxu0 %v353
        %762 = vmatpush.msra.mxu0 %v346
        %763 = vmatpush.msra.mxu0 %v339
        %764 = vmatpush.msra.mxu0 %v332
        %765 = vmatpush.msra.mxu0 %v325
        %766 = vmatpush.msra.mxu0 %v318
        %767 = vmatpush.msra.mxu0 %v311
        %768 = vmatpush.msra.mxu0 %v304
        %769 = vmatpush.msra.mxu0 %v297
        %770 = vmatpush.msra.mxu0 %v290
        %771 = vmatpush.msra.mxu0 %v283
        %772 = vmatmul.f32.gmra.mxu0 %v262
        %v773 = vpop.f32.mrf.mxu0
        %v774 = vadd.f32 %v508, %v773
        %775 = vdwg.mxu0
        %776 = vmatpush.msra.mxu0 %v500
        %777 = vmatpush.msra.mxu0 %v493
        %778 = vmatpush.msra.mxu0 %v486
        %779 = vmatpush.msra.mxu0 %v479
        %780 = vmatpush.msra.mxu0 %v472
        %781 = vmatpush.msra.mxu0 %v465
        %782 = vmatpush.msra.mxu0 %v458
        %783 = vmatpush.msra.mxu0 %v451
        %784 = vmatpush.msra.mxu0 %v444
        %785 = vmatpush.msra.mxu0 %v437
        %786 = vmatpush.msra.mxu0 %v430
        %787 = vmatpush.msra.mxu0 %v423
        %788 = vmatpush.msra.mxu0 %v416
        %789 = vmatpush.msra.mxu0 %v409
        %790 = vmatpush.msra.mxu0 %v402
        %791 = vmatpush.msra.mxu0 %v395
        %792 = vmatmul.f32.gmra.mxu0 %v263
        %v793 = vpop.f32.mrf.mxu0
        %v794 = vadd.f32 %v774, %v793
        %795 = vdwg.mxu0
        %v796 = vtanh.pop %v554
        %v797 = vtanh.pop %v594
        %v798 = vtanh.pop %v634
        %v799 = vtanh.pop %v674
        %v800 = vtanh.pop %v714
        %v801 = vtanh.pop %v754
        %v802 = vtanh.pop %v794
        %s803 = scalar_lea.vmem %s228, 5376 [#allocation7]
        %v804 = vld [vmem:[%s803] sm:$0xff]
        %v805 = vld [vmem:[%s803 + $0x8] sm:$0xff]
        %v806 = vld [vmem:[%s803 + $0x10] sm:$0xff]
        %v807 = vld [vmem:[%s803 + $0x18] sm:$0xff]
        %v808 = vld [vmem:[%s803 + $0x20] sm:$0xff]
        %v809 = vld [vmem:[%s803 + $0x28] sm:$0xff]
        %v810 = vld [vmem:[%s803 + $0x30] sm:$0xff]
        %v811 = vld [vmem:[%s803 + $0x38] sm:$0xff]
        %v812 = vld [vmem:[%s803 + $0x40] sm:$0xff]
        %v813 = vld [vmem:[%s803 + $0x48] sm:$0xff]
        %v814 = vld [vmem:[%s803 + $0x50] sm:$0xff]
        %v815 = vld [vmem:[%s803 + $0x58] sm:$0xff]
        %v816 = vld [vmem:[%s803 + $0x60] sm:$0xff]
        %v817 = vld [vmem:[%s803 + $0x68] sm:$0xff]
        %v818 = vld [vmem:[%s803 + $0x70] sm:$0xff]
        %v819 = vld [vmem:[%s803 + $0x78] sm:$0xff]
        %v820 = vld [vmem:[%s803 + $0x80] sm:$0xff]
        %v821 = vld [vmem:[%s803 + $0x88] sm:$0xff]
        %v822 = vld [vmem:[%s803 + $0x90] sm:$0xff]
        %v823 = vld [vmem:[%s803 + $0x98] sm:$0xff]
        %v824 = vld [vmem:[%s803 + $0xa0] sm:$0xff]
        %v825 = vld [vmem:[%s803 + $0xa8] sm:$0xff]
        %v826 = vld [vmem:[%s803 + $0xb0] sm:$0xff]
        %v827 = vld [vmem:[%s803 + $0xb8] sm:$0xff]
        %v828 = vld [vmem:[%s803 + $0xc0] sm:$0xff]
        %v829 = vld [vmem:[%s803 + $0xc8] sm:$0xff]
        %v830 = vld [vmem:[%s803 + $0xd0] sm:$0xff]
        %v831 = vld [vmem:[%s803 + $0xd8] sm:$0xff]
        %v832 = vld [vmem:[%s803 + $0xe0] sm:$0xff]
        %v833 = vld [vmem:[%s803 + $0xe8] sm:$0xff]
        %v834 = vld [vmem:[%s803 + $0xf0] sm:$0xff]
        %v835 = vld [vmem:[%s803 + $0xf8] sm:$0xff]
        %v836 = vld [vmem:[%s803 + $0x100] sm:$0xff]
        %v837 = vld [vmem:[%s803 + $0x108] sm:$0xff]
        %v838 = vld [vmem:[%s803 + $0x110] sm:$0xff]
        %v839 = vld [vmem:[%s803 + $0x118] sm:$0xff]
        %v840 = vld [vmem:[%s803 + $0x120] sm:$0xff]
        %v841 = vld [vmem:[%s803 + $0x128] sm:$0xff]
        %v842 = vld [vmem:[%s803 + $0x130] sm:$0xff]
        %v843 = vld [vmem:[%s803 + $0x138] sm:$0xff]
        %v844 = vld [vmem:[%s803 + $0x140] sm:$0xff]
        %v845 = vld [vmem:[%s803 + $0x148] sm:$0xff]
        %v846 = vld [vmem:[%s803 + $0x150] sm:$0xff]
        %v847 = vld [vmem:[%s803 + $0x158] sm:$0xff]
        %v848 = vld [vmem:[%s803 + $0x160] sm:$0xff]
        %v849 = vld [vmem:[%s803 + $0x168] sm:$0xff]
        %v850 = vld [vmem:[%s803 + $0x170] sm:$0xff]
        %v851 = vld [vmem:[%s803 + $0x178] sm:$0xff]
        %v852 = vld [vmem:[%s803 + $0x180] sm:$0xff]
        %v853 = vld [vmem:[%s803 + $0x188] sm:$0xff]
        %v854 = vld [vmem:[%s803 + $0x190] sm:$0xff]
        %v855 = vld [vmem:[%s803 + $0x198] sm:$0xff]
        %v856 = vld [vmem:[%s803 + $0x1a0] sm:$0xff]
        %v857 = vld [vmem:[%s803 + $0x1a8] sm:$0xff]
        %v858 = vld [vmem:[%s803 + $0x1b0] sm:$0xff]
        %v859 = vld [vmem:[%s803 + $0x1b8] sm:$0xff]
        %v860 = vld [vmem:[%s803 + $0x1c0] sm:$0xff]
        %v861 = vld [vmem:[%s803 + $0x1c8] sm:$0xff]
        %v862 = vld [vmem:[%s803 + $0x1d0] sm:$0xff]
        %v863 = vld [vmem:[%s803 + $0x1d8] sm:$0xff]
        %v864 = vld [vmem:[%s803 + $0x1e0] sm:$0xff]
        %v865 = vld [vmem:[%s803 + $0x1e8] sm:$0xff]
        %v866 = vld [vmem:[%s803 + $0x1f0] sm:$0xff]
        %v867 = vld [vmem:[%s803 + $0x1f8] sm:$0xff]
        %v868 = vld [vmem:[%s803 + $0x200] sm:$0xff]
        %v869 = vld [vmem:[%s803 + $0x208] sm:$0xff]
        %v870 = vld [vmem:[%s803 + $0x210] sm:$0xff]
        %v871 = vld [vmem:[%s803 + $0x218] sm:$0xff]
        %v872 = vld [vmem:[%s803 + $0x220] sm:$0xff]
        %v873 = vld [vmem:[%s803 + $0x228] sm:$0xff]
        %v874 = vld [vmem:[%s803 + $0x230] sm:$0xff]
        %v875 = vld [vmem:[%s803 + $0x238] sm:$0xff]
        %v876 = vld [vmem:[%s803 + $0x240] sm:$0xff]
        %v877 = vld [vmem:[%s803 + $0x248] sm:$0xff]
        %v878 = vld [vmem:[%s803 + $0x250] sm:$0xff]
        %v879 = vld [vmem:[%s803 + $0x258] sm:$0xff]
        %v880 = vld [vmem:[%s803 + $0x260] sm:$0xff]
        %v881 = vld [vmem:[%s803 + $0x268] sm:$0xff]
        %v882 = vld [vmem:[%s803 + $0x270] sm:$0xff]
        %v883 = vld [vmem:[%s803 + $0x278] sm:$0xff]
        %v884 = vld [vmem:[%s803 + $0x280] sm:$0xff]
        %v885 = vld [vmem:[%s803 + $0x288] sm:$0xff]
        %v886 = vld [vmem:[%s803 + $0x290] sm:$0xff]
        %v887 = vld [vmem:[%s803 + $0x298] sm:$0xff]
        %v888 = vld [vmem:[%s803 + $0x2a0] sm:$0xff]
        %v889 = vld [vmem:[%s803 + $0x2a8] sm:$0xff]
        %v890 = vld [vmem:[%s803 + $0x2b0] sm:$0xff]
        %v891 = vld [vmem:[%s803 + $0x2b8] sm:$0xff]
        %v892 = vld [vmem:[%s803 + $0x2c0] sm:$0xff]
        %v893 = vld [vmem:[%s803 + $0x2c8] sm:$0xff]
        %v894 = vld [vmem:[%s803 + $0x2d0] sm:$0xff]
        %v895 = vld [vmem:[%s803 + $0x2d8] sm:$0xff]
        %v896 = vld [vmem:[%s803 + $0x2e0] sm:$0xff]
        %v897 = vld [vmem:[%s803 + $0x2e8] sm:$0xff]
        %v898 = vld [vmem:[%s803 + $0x2f0] sm:$0xff]
        %v899 = vld [vmem:[%s803 + $0x2f8] sm:$0xff]
        %v900 = vld [vmem:[%s803 + $0x300] sm:$0xff]
        %v901 = vld [vmem:[%s803 + $0x308] sm:$0xff]
        %v902 = vld [vmem:[%s803 + $0x310] sm:$0xff]
        %v903 = vld [vmem:[%s803 + $0x318] sm:$0xff]
        %v904 = vld [vmem:[%s803 + $0x320] sm:$0xff]
        %v905 = vld [vmem:[%s803 + $0x328] sm:$0xff]
        %v906 = vld [vmem:[%s803 + $0x330] sm:$0xff]
        %v907 = vld [vmem:[%s803 + $0x338] sm:$0xff]
        %v908 = vld [vmem:[%s803 + $0x340] sm:$0xff]
        %v909 = vld [vmem:[%s803 + $0x348] sm:$0xff]
        %v910 = vld [vmem:[%s803 + $0x350] sm:$0xff]
        %v911 = vld [vmem:[%s803 + $0x358] sm:$0xff]
        %v912 = vld [vmem:[%s803 + $0x360] sm:$0xff]
        %v913 = vld [vmem:[%s803 + $0x368] sm:$0xff]
        %v914 = vld [vmem:[%s803 + $0x370] sm:$0xff]
        %v915 = vld [vmem:[%s803 + $0x378] sm:$0xff]
        %v916 = vld [vmem:[%s803 + $0x380] sm:$0xff]
        %v917 = vld [vmem:[%s803 + $0x388] sm:$0xff]
        %v918 = vld [vmem:[%s803 + $0x390] sm:$0xff]
        %v919 = vld [vmem:[%s803 + $0x398] sm:$0xff]
        %v920 = vld [vmem:[%s803 + $0x3a0] sm:$0xff]
        %v921 = vld [vmem:[%s803 + $0x3a8] sm:$0xff]
        %v922 = vld [vmem:[%s803 + $0x3b0] sm:$0xff]
        %v923 = vld [vmem:[%s803 + $0x3b8] sm:$0xff]
        %v924 = vld [vmem:[%s803 + $0x3c0] sm:$0xff]
        %v925 = vld [vmem:[%s803 + $0x3c8] sm:$0xff]
        %v926 = vld [vmem:[%s803 + $0x3d0] sm:$0xff]
        %v927 = vld [vmem:[%s803 + $0x3d8] sm:$0xff]
        %v928 = vld [vmem:[%s803 + $0x3e0] sm:$0xff]
        %v929 = vld [vmem:[%s803 + $0x3e8] sm:$0xff]
        %v930 = vld [vmem:[%s803 + $0x3f0] sm:$0xff]
        %v931 = vld [vmem:[%s803 + $0x3f8] sm:$0xff]
        %v932 = vld [vmem:[%s803 + $0x400] sm:$0xff]
        %v933 = vld [vmem:[%s803 + $0x408] sm:$0xff]
        %v934 = vld [vmem:[%s803 + $0x410] sm:$0xff]
        %v935 = vld [vmem:[%s803 + $0x418] sm:$0xff]
        %v936 = vld [vmem:[%s803 + $0x420] sm:$0xff]
        %v937 = vld [vmem:[%s803 + $0x428] sm:$0xff]
        %v938 = vld [vmem:[%s803 + $0x430] sm:$0xff]
        %v939 = vld [vmem:[%s803 + $0x438] sm:$0xff]
        %v940 = vld [vmem:[%s803 + $0x440] sm:$0xff]
        %v941 = vld [vmem:[%s803 + $0x448] sm:$0xff]
        %v942 = vld [vmem:[%s803 + $0x450] sm:$0xff]
        %v943 = vld [vmem:[%s803 + $0x458] sm:$0xff]
        %v944 = vld [vmem:[%s803 + $0x460] sm:$0xff]
        %v945 = vld [vmem:[%s803 + $0x468] sm:$0xff]
        %v946 = vld [vmem:[%s803 + $0x470] sm:$0xff]
        %v947 = vld [vmem:[%s803 + $0x478] sm:$0xff]
        %v948 = vld [vmem:[%s803 + $0x480] sm:$0xff]
        %v949 = vld [vmem:[%s803 + $0x488] sm:$0xff]
        %v950 = vld [vmem:[%s803 + $0x490] sm:$0xff]
        %v951 = vld [vmem:[%s803 + $0x498] sm:$0xff]
        %v952 = vld [vmem:[%s803 + $0x4a0] sm:$0xff]
        %v953 = vld [vmem:[%s803 + $0x4a8] sm:$0xff]
        %v954 = vld [vmem:[%s803 + $0x4b0] sm:$0xff]
        %v955 = vld [vmem:[%s803 + $0x4b8] sm:$0xff]
        %v956 = vld [vmem:[%s803 + $0x4c0] sm:$0xff]
        %v957 = vld [vmem:[%s803 + $0x4c8] sm:$0xff]
        %v958 = vld [vmem:[%s803 + $0x4d0] sm:$0xff]
        %v959 = vld [vmem:[%s803 + $0x4d8] sm:$0xff]
        %v960 = vld [vmem:[%s803 + $0x4e0] sm:$0xff]
        %v961 = vld [vmem:[%s803 + $0x4e8] sm:$0xff]
        %v962 = vld [vmem:[%s803 + $0x4f0] sm:$0xff]
        %v963 = vld [vmem:[%s803 + $0x4f8] sm:$0xff]
        %v964 = vld [vmem:[%s803 + $0x500] sm:$0xff]
        %v965 = vld [vmem:[%s803 + $0x508] sm:$0xff]
        %v966 = vld [vmem:[%s803 + $0x510] sm:$0xff]
        %v967 = vld [vmem:[%s803 + $0x518] sm:$0xff]
        %v968 = vld [vmem:[%s803 + $0x520] sm:$0xff]
        %v969 = vld [vmem:[%s803 + $0x528] sm:$0xff]
        %v970 = vld [vmem:[%s803 + $0x530] sm:$0xff]
        %v971 = vld [vmem:[%s803 + $0x538] sm:$0xff]
        %v972 = vld [vmem:[%s803 + $0x540] sm:$0xff]
        %v973 = vld [vmem:[%s803 + $0x548] sm:$0xff]
        %v974 = vld [vmem:[%s803 + $0x550] sm:$0xff]
        %v975 = vld [vmem:[%s803 + $0x558] sm:$0xff]
        %v976 = vld [vmem:[%s803 + $0x560] sm:$0xff]
        %v977 = vld [vmem:[%s803 + $0x568] sm:$0xff]
        %v978 = vld [vmem:[%s803 + $0x570] sm:$0xff]
        %v979 = vld [vmem:[%s803 + $0x578] sm:$0xff]
        %v980 = vld [vmem:[%s803 + $0x580] sm:$0xff]
        %v981 = vld [vmem:[%s803 + $0x588] sm:$0xff]
        %v982 = vld [vmem:[%s803 + $0x590] sm:$0xff]
        %v983 = vld [vmem:[%s803 + $0x598] sm:$0xff]
        %v984 = vld [vmem:[%s803 + $0x5a0] sm:$0xff]
        %v985 = vld [vmem:[%s803 + $0x5a8] sm:$0xff]
        %v986 = vld [vmem:[%s803 + $0x5b0] sm:$0xff]
        %v987 = vld [vmem:[%s803 + $0x5b8] sm:$0xff]
        %v988 = vld [vmem:[%s803 + $0x5c0] sm:$0xff]
        %v989 = vld [vmem:[%s803 + $0x5c8] sm:$0xff]
        %v990 = vld [vmem:[%s803 + $0x5d0] sm:$0xff]
        %v991 = vld [vmem:[%s803 + $0x5d8] sm:$0xff]
        %v992 = vld [vmem:[%s803 + $0x5e0] sm:$0xff]
        %v993 = vld [vmem:[%s803 + $0x5e8] sm:$0xff]
        %v994 = vld [vmem:[%s803 + $0x5f0] sm:$0xff]
        %v995 = vld [vmem:[%s803 + $0x5f8] sm:$0xff]
        %v996 = vld [vmem:[%s803 + $0x600] sm:$0xff]
        %v997 = vld [vmem:[%s803 + $0x608] sm:$0xff]
        %v998 = vld [vmem:[%s803 + $0x610] sm:$0xff]
        %v999 = vld [vmem:[%s803 + $0x618] sm:$0xff]
        %v1000 = vld [vmem:[%s803 + $0x620] sm:$0xff]
        %v1001 = vld [vmem:[%s803 + $0x628] sm:$0xff]
        %v1002 = vld [vmem:[%s803 + $0x630] sm:$0xff]
        %v1003 = vld [vmem:[%s803 + $0x638] sm:$0xff]
        %v1004 = vld [vmem:[%s803 + $0x640] sm:$0xff]
        %v1005 = vld [vmem:[%s803 + $0x648] sm:$0xff]
        %v1006 = vld [vmem:[%s803 + $0x650] sm:$0xff]
        %v1007 = vld [vmem:[%s803 + $0x658] sm:$0xff]
        %v1008 = vld [vmem:[%s803 + $0x660] sm:$0xff]
        %v1009 = vld [vmem:[%s803 + $0x668] sm:$0xff]
        %v1010 = vld [vmem:[%s803 + $0x670] sm:$0xff]
        %v1011 = vld [vmem:[%s803 + $0x678] sm:$0xff]
        %v1012 = vld [vmem:[%s803 + $0x680] sm:$0xff]
        %v1013 = vld [vmem:[%s803 + $0x688] sm:$0xff]
        %v1014 = vld [vmem:[%s803 + $0x690] sm:$0xff]
        %v1015 = vld [vmem:[%s803 + $0x698] sm:$0xff]
        %v1016 = vld [vmem:[%s803 + $0x6a0] sm:$0xff]
        %v1017 = vld [vmem:[%s803 + $0x6a8] sm:$0xff]
        %v1018 = vld [vmem:[%s803 + $0x6b0] sm:$0xff]
        %v1019 = vld [vmem:[%s803 + $0x6b8] sm:$0xff]
        %v1020 = vld [vmem:[%s803 + $0x6c0] sm:$0xff]
        %v1021 = vld [vmem:[%s803 + $0x6c8] sm:$0xff]
        %v1022 = vld [vmem:[%s803 + $0x6d0] sm:$0xff]
        %v1023 = vld [vmem:[%s803 + $0x6d8] sm:$0xff]
        %v1024 = vld [vmem:[%s803 + $0x6e0] sm:$0xff]
        %v1025 = vld [vmem:[%s803 + $0x6e8] sm:$0xff]
        %v1026 = vld [vmem:[%s803 + $0x6f0] sm:$0xff]
        %v1027 = vld [vmem:[%s803 + $0x6f8] sm:$0xff]
        %v1029 = vperm.slane %v276, 0
        %v1030 = vperm.slane %v276, 1
        %v1031 = vperm.slane %v276, 2
        %v1032 = vperm.slane %v276, 3
        %v1033 = vperm.slane %v276, 4
        %v1034 = vperm.slane %v276, 5
        %v1035 = vperm.slane %v276, 6
        %1043 = vmatpush.msra.mxu0 %v909
        %1044 = vmatpush.msra.mxu0 %v902
        %1045 = vmatpush.msra.mxu0 %v895
        %1046 = vmatpush.msra.mxu0 %v888
        %1047 = vmatpush.msra.mxu0 %v881
        %1048 = vmatpush.msra.mxu0 %v874
        %1049 = vmatpush.msra.mxu0 %v867
        %1050 = vmatpush.msra.mxu0 %v860
        %1051 = vmatpush.msra.mxu0 %v853
        %1052 = vmatpush.msra.mxu0 %v846
        %1053 = vmatpush.msra.mxu0 %v839
        %1054 = vmatpush.msra.mxu0 %v832
        %1055 = vmatpush.msra.mxu0 %v825
        %1056 = vmatpush.msra.mxu0 %v818
        %1057 = vmatpush.msra.mxu0 %v811
        %1058 = vmatpush.msra.mxu0 %v804
        %1059 = vmatmul.f32.gmra.mxu0 %v264
        %v1060 = vpop.f32.mrf.mxu0
        %v1061 = vadd.f32 %v1029, %v1060
        %1062 = vdwg.mxu0
        %1063 = vmatpush.msra.mxu0 %v1021
        %1064 = vmatpush.msra.mxu0 %v1014
        %1065 = vmatpush.msra.mxu0 %v1007
        %1066 = vmatpush.msra.mxu0 %v1000
        %1067 = vmatpush.msra.mxu0 %v993
        %1068 = vmatpush.msra.mxu0 %v986
        %1069 = vmatpush.msra.mxu0 %v979
        %1070 = vmatpush.msra.mxu0 %v972
        %1071 = vmatpush.msra.mxu0 %v965
        %1072 = vmatpush.msra.mxu0 %v958
        %1073 = vmatpush.msra.mxu0 %v951
        %1074 = vmatpush.msra.mxu0 %v944
        %1075 = vmatpush.msra.mxu0 %v937
        %1076 = vmatpush.msra.mxu0 %v930
        %1077 = vmatpush.msra.mxu0 %v923
        %1078 = vmatpush.msra.mxu0 %v916
        %1079 = vmatmul.f32.gmra.mxu0 %v265
        %v1080 = vpop.f32.mrf.mxu0
        %v1081 = vadd.f32 %v1061, %v1080
        %1082 = vdwg.mxu0
        %1083 = vmatpush.msra.mxu0 %v910
        %1084 = vmatpush.msra.mxu0 %v903
        %1085 = vmatpush.msra.mxu0 %v896
        %1086 = vmatpush.msra.mxu0 %v889
        %1087 = vmatpush.msra.mxu0 %v882
        %1088 = vmatpush.msra.mxu0 %v875
        %1089 = vmatpush.msra.mxu0 %v868
        %1090 = vmatpush.msra.mxu0 %v861
        %1091 = vmatpush.msra.mxu0 %v854
        %1092 = vmatpush.msra.mxu0 %v847
        %1093 = vmatpush.msra.mxu0 %v840
        %1094 = vmatpush.msra.mxu0 %v833
        %1095 = vmatpush.msra.mxu0 %v826
        %1096 = vmatpush.msra.mxu0 %v819
        %1097 = vmatpush.msra.mxu0 %v812
        %1098 = vmatpush.msra.mxu0 %v805
        %1099 = vmatmul.f32.gmra.mxu0 %v264
        %v1100 = vpop.f32.mrf.mxu0
        %v1101 = vadd.f32 %v1030, %v1100
        %1102 = vdwg.mxu0
        %1103 = vmatpush.msra.mxu0 %v1022
        %1104 = vmatpush.msra.mxu0 %v1015
        %1105 = vmatpush.msra.mxu0 %v1008
        %1106 = vmatpush.msra.mxu0 %v1001
        %1107 = vmatpush.msra.mxu0 %v994
        %1108 = vmatpush.msra.mxu0 %v987
        %1109 = vmatpush.msra.mxu0 %v980
        %1110 = vmatpush.msra.mxu0 %v973
        %1111 = vmatpush.msra.mxu0 %v966
        %1112 = vmatpush.msra.mxu0 %v959
        %1113 = vmatpush.msra.mxu0 %v952
        %1114 = vmatpush.msra.mxu0 %v945
        %1115 = vmatpush.msra.mxu0 %v938
        %1116 = vmatpush.msra.mxu0 %v931
        %1117 = vmatpush.msra.mxu0 %v924
        %1118 = vmatpush.msra.mxu0 %v917
        %1119 = vmatmul.f32.gmra.mxu0 %v265
        %v1120 = vpop.f32.mrf.mxu0
        %v1121 = vadd.f32 %v1101, %v1120
        %1122 = vdwg.mxu0
        %1123 = vmatpush.msra.mxu0 %v911
        %1124 = vmatpush.msra.mxu0 %v904
        %1125 = vmatpush.msra.mxu0 %v897
        %1126 = vmatpush.msra.mxu0 %v890
        %1127 = vmatpush.msra.mxu0 %v883
        %1128 = vmatpush.msra.mxu0 %v876
        %1129 = vmatpush.msra.mxu0 %v869
        %1130 = vmatpush.msra.mxu0 %v862
        %1131 = vmatpush.msra.mxu0 %v855
        %1132 = vmatpush.msra.mxu0 %v848
        %1133 = vmatpush.msra.mxu0 %v841
        %1134 = vmatpush.msra.mxu0 %v834
        %1135 = vmatpush.msra.mxu0 %v827
        %1136 = vmatpush.msra.mxu0 %v820
        %1137 = vmatpush.msra.mxu0 %v813
        %1138 = vmatpush.msra.mxu0 %v806
        %1139 = vmatmul.f32.gmra.mxu0 %v264
        %v1140 = vpop.f32.mrf.mxu0
        %v1141 = vadd.f32 %v1031, %v1140
        %1142 = vdwg.mxu0
        %1143 = vmatpush.msra.mxu0 %v1023
        %1144 = vmatpush.msra.mxu0 %v1016
        %1145 = vmatpush.msra.mxu0 %v1009
        %1146 = vmatpush.msra.mxu0 %v1002
        %1147 = vmatpush.msra.mxu0 %v995
        %1148 = vmatpush.msra.mxu0 %v988
        %1149 = vmatpush.msra.mxu0 %v981
        %1150 = vmatpush.msra.mxu0 %v974
        %1151 = vmatpush.msra.mxu0 %v967
        %1152 = vmatpush.msra.mxu0 %v960
        %1153 = vmatpush.msra.mxu0 %v953
        %1154 = vmatpush.msra.mxu0 %v946
        %1155 = vmatpush.msra.mxu0 %v939
        %1156 = vmatpush.msra.mxu0 %v932
        %1157 = vmatpush.msra.mxu0 %v925
        %1158 = vmatpush.msra.mxu0 %v918
        %1159 = vmatmul.f32.gmra.mxu0 %v265
        %v1160 = vpop.f32.mrf.mxu0
        %v1161 = vadd.f32 %v1141, %v1160
        %1162 = vdwg.mxu0
        %1163 = vmatpush.msra.mxu0 %v912
        %1164 = vmatpush.msra.mxu0 %v905
        %1165 = vmatpush.msra.mxu0 %v898
        %1166 = vmatpush.msra.mxu0 %v891
        %1167 = vmatpush.msra.mxu0 %v884
        %1168 = vmatpush.msra.mxu0 %v877
        %1169 = vmatpush.msra.mxu0 %v870
        %1170 = vmatpush.msra.mxu0 %v863
        %1171 = vmatpush.msra.mxu0 %v856
        %1172 = vmatpush.msra.mxu0 %v849
        %1173 = vmatpush.msra.mxu0 %v842
        %1174 = vmatpush.msra.mxu0 %v835
        %1175 = vmatpush.msra.mxu0 %v828
        %1176 = vmatpush.msra.mxu0 %v821
        %1177 = vmatpush.msra.mxu0 %v814
        %1178 = vmatpush.msra.mxu0 %v807
        %1179 = vmatmul.f32.gmra.mxu0 %v264
        %v1180 = vpop.f32.mrf.mxu0
        %v1181 = vadd.f32 %v1032, %v1180
        %1182 = vdwg.mxu0
        %1183 = vmatpush.msra.mxu0 %v1024
        %1184 = vmatpush.msra.mxu0 %v1017
        %1185 = vmatpush.msra.mxu0 %v1010
        %1186 = vmatpush.msra.mxu0 %v1003
        %1187 = vmatpush.msra.mxu0 %v996
        %1188 = vmatpush.msra.mxu0 %v989
        %1189 = vmatpush.msra.mxu0 %v982
        %1190 = vmatpush.msra.mxu0 %v975
        %1191 = vmatpush.msra.mxu0 %v968
        %1192 = vmatpush.msra.mxu0 %v961
        %1193 = vmatpush.msra.mxu0 %v954
        %1194 = vmatpush.msra.mxu0 %v947
        %1195 = vmatpush.msra.mxu0 %v940
        %1196 = vmatpush.msra.mxu0 %v933
        %1197 = vmatpush.msra.mxu0 %v926
        %1198 = vmatpush.msra.mxu0 %v919
        %1199 = vmatmul.f32.gmra.mxu0 %v265
        %v1200 = vpop.f32.mrf.mxu0
        %v1201 = vadd.f32 %v1181, %v1200
        %1202 = vdwg.mxu0
        %1203 = vmatpush.msra.mxu0 %v913
        %1204 = vmatpush.msra.mxu0 %v906
        %1205 = vmatpush.msra.mxu0 %v899
        %1206 = vmatpush.msra.mxu0 %v892
        %1207 = vmatpush.msra.mxu0 %v885
        %1208 = vmatpush.msra.mxu0 %v878
        %1209 = vmatpush.msra.mxu0 %v871
        %1210 = vmatpush.msra.mxu0 %v864
        %1211 = vmatpush.msra.mxu0 %v857
        %1212 = vmatpush.msra.mxu0 %v850
        %1213 = vmatpush.msra.mxu0 %v843
        %1214 = vmatpush.msra.mxu0 %v836
        %1215 = vmatpush.msra.mxu0 %v829
        %1216 = vmatpush.msra.mxu0 %v822
        %1217 = vmatpush.msra.mxu0 %v815
        %1218 = vmatpush.msra.mxu0 %v808
        %1219 = vmatmul.f32.gmra.mxu0 %v264
        %v1220 = vpop.f32.mrf.mxu0
        %v1221 = vadd.f32 %v1033, %v1220
        %1222 = vdwg.mxu0
        %1223 = vmatpush.msra.mxu0 %v1025
        %1224 = vmatpush.msra.mxu0 %v1018
        %1225 = vmatpush.msra.mxu0 %v1011
        %1226 = vmatpush.msra.mxu0 %v1004
        %1227 = vmatpush.msra.mxu0 %v997
        %1228 = vmatpush.msra.mxu0 %v990
        %1229 = vmatpush.msra.mxu0 %v983
        %1230 = vmatpush.msra.mxu0 %v976
        %1231 = vmatpush.msra.mxu0 %v969
        %1232 = vmatpush.msra.mxu0 %v962
        %1233 = vmatpush.msra.mxu0 %v955
        %1234 = vmatpush.msra.mxu0 %v948
        %1235 = vmatpush.msra.mxu0 %v941
        %1236 = vmatpush.msra.mxu0 %v934
        %1237 = vmatpush.msra.mxu0 %v927
        %1238 = vmatpush.msra.mxu0 %v920
        %1239 = vmatmul.f32.gmra.mxu0 %v265
        %v1240 = vpop.f32.mrf.mxu0
        %v1241 = vadd.f32 %v1221, %v1240
        %1242 = vdwg.mxu0
        %1243 = vmatpush.msra.mxu0 %v914
        %1244 = vmatpush.msra.mxu0 %v907
        %1245 = vmatpush.msra.mxu0 %v900
        %1246 = vmatpush.msra.mxu0 %v893
        %1247 = vmatpush.msra.mxu0 %v886
        %1248 = vmatpush.msra.mxu0 %v879
        %1249 = vmatpush.msra.mxu0 %v872
        %1250 = vmatpush.msra.mxu0 %v865
        %1251 = vmatpush.msra.mxu0 %v858
        %1252 = vmatpush.msra.mxu0 %v851
        %1253 = vmatpush.msra.mxu0 %v844
        %1254 = vmatpush.msra.mxu0 %v837
        %1255 = vmatpush.msra.mxu0 %v830
        %1256 = vmatpush.msra.mxu0 %v823
        %1257 = vmatpush.msra.mxu0 %v816
        %1258 = vmatpush.msra.mxu0 %v809
        %1259 = vmatmul.f32.gmra.mxu0 %v264
        %v1260 = vpop.f32.mrf.mxu0
        %v1261 = vadd.f32 %v1034, %v1260
        %1262 = vdwg.mxu0
        %1263 = vmatpush.msra.mxu0 %v1026
        %1264 = vmatpush.msra.mxu0 %v1019
        %1265 = vmatpush.msra.mxu0 %v1012
        %1266 = vmatpush.msra.mxu0 %v1005
        %1267 = vmatpush.msra.mxu0 %v998
        %1268 = vmatpush.msra.mxu0 %v991
        %1269 = vmatpush.msra.mxu0 %v984
        %1270 = vmatpush.msra.mxu0 %v977
        %1271 = vmatpush.msra.mxu0 %v970
        %1272 = vmatpush.msra.mxu0 %v963
        %1273 = vmatpush.msra.mxu0 %v956
        %1274 = vmatpush.msra.mxu0 %v949
        %1275 = vmatpush.msra.mxu0 %v942
        %1276 = vmatpush.msra.mxu0 %v935
        %1277 = vmatpush.msra.mxu0 %v928
        %1278 = vmatpush.msra.mxu0 %v921
        %1279 = vmatmul.f32.gmra.mxu0 %v265
        %v1280 = vpop.f32.mrf.mxu0
        %v1281 = vadd.f32 %v1261, %v1280
        %1282 = vdwg.mxu0
        %1283 = vmatpush.msra.mxu0 %v915
        %1284 = vmatpush.msra.mxu0 %v908
        %1285 = vmatpush.msra.mxu0 %v901
        %1286 = vmatpush.msra.mxu0 %v894
        %1287 = vmatpush.msra.mxu0 %v887
        %1288 = vmatpush.msra.mxu0 %v880
        %1289 = vmatpush.msra.mxu0 %v873
        %1290 = vmatpush.msra.mxu0 %v866
        %1291 = vmatpush.msra.mxu0 %v859
        %1292 = vmatpush.msra.mxu0 %v852
        %1293 = vmatpush.msra.mxu0 %v845
        %1294 = vmatpush.msra.mxu0 %v838
        %1295 = vmatpush.msra.mxu0 %v831
        %1296 = vmatpush.msra.mxu0 %v824
        %1297 = vmatpush.msra.mxu0 %v817
        %1298 = vmatpush.msra.mxu0 %v810
        %1299 = vmatmul.f32.gmra.mxu0 %v264
        %v1300 = vpop.f32.mrf.mxu0
        %v1301 = vadd.f32 %v1035, %v1300
        %1302 = vdwg.mxu0
        %1303 = vmatpush.msra.mxu0 %v1027
        %1304 = vmatpush.msra.mxu0 %v1020
        %1305 = vmatpush.msra.mxu0 %v1013
        %1306 = vmatpush.msra.mxu0 %v1006
        %1307 = vmatpush.msra.mxu0 %v999
        %1308 = vmatpush.msra.mxu0 %v992
        %1309 = vmatpush.msra.mxu0 %v985
        %1310 = vmatpush.msra.mxu0 %v978
        %1311 = vmatpush.msra.mxu0 %v971
        %1312 = vmatpush.msra.mxu0 %v964
        %1313 = vmatpush.msra.mxu0 %v957
        %1314 = vmatpush.msra.mxu0 %v950
        %1315 = vmatpush.msra.mxu0 %v943
        %1316 = vmatpush.msra.mxu0 %v936
        %1317 = vmatpush.msra.mxu0 %v929
        %1318 = vmatpush.msra.mxu0 %v922
        %1319 = vmatmul.f32.gmra.mxu0 %v265
        %v1320 = vpop.f32.mrf.mxu0
        %v1321 = vadd.f32 %v1301, %v1320
        %1322 = vdwg.mxu0
        %v1323 = vtanh.pop %v1081
        %v1324 = vtanh.pop %v1121
        %v1325 = vtanh.pop %v1161
        %v1326 = vtanh.pop %v1201
        %v1327 = vtanh.pop %v1241
        %v1328 = vtanh.pop %v1281
        %v1329 = vtanh.pop %v1321
        %v1330 = vmul.f32 %v796, %v1323
        %v1331 = vmul.f32 %v797, %v1324
        %v1332 = vmul.f32 %v798, %v1325
        %v1333 = vmul.f32 %v799, %v1326
        %v1334 = vmul.f32 %v800, %v1327
        %v1335 = vmul.f32 %v801, %v1328
        %v1336 = vmul.f32 %v802, %v1329
        %v1337 = vadd.f32 %v1330, 0.0
        %v1338 = vadd.f32 %v1331, 0.0
        %v1339 = vadd.f32 %v1332, 0.0
        %v1340 = vadd.f32 %v1333, 0.0
        %v1341 = vadd.f32 %v1334, 0.0
        %v1342 = vadd.f32 %v1335, 0.0
        %v1343 = vadd.f32 %v1336, 0.0
        %s1344 = scalar_lea.vmem %s269, 1 [#allocation8]
        %v1345 = vld [vmem:[%s1344] ss:$8 sm:$0xf]
        %v1346 = vld [vmem:[%s1344] ss:$8 sm:$0xf0]
        %v1347 = vor.u32 %v1345, %v1346
        %s1348 = scalar_lea.vmem %s269, 4 [#allocation8]
        %v1349 = vld [vmem:[%s1348] ss:$8 sm:$0xf]
        %v1350 = vld [vmem:[%s1348] ss:$8 sm:$0xf0]
        %v1351 = vor.u32 %v1349, %v1350
        %s1352 = scalar_lea.vmem %s228, 1792 [#allocation7]
        %v1353 = vld [vmem:[%s1352] sm:$0xff]
        %v1354 = vld [vmem:[%s1352 + $0x8] sm:$0xff]
        %v1355 = vld [vmem:[%s1352 + $0x10] sm:$0xff]
        %v1356 = vld [vmem:[%s1352 + $0x18] sm:$0xff]
        %v1357 = vld [vmem:[%s1352 + $0x20] sm:$0xff]
        %v1358 = vld [vmem:[%s1352 + $0x28] sm:$0xff]
        %v1359 = vld [vmem:[%s1352 + $0x30] sm:$0xff]
        %v1360 = vld [vmem:[%s1352 + $0x38] sm:$0xff]
        %v1361 = vld [vmem:[%s1352 + $0x40] sm:$0xff]
        %v1362 = vld [vmem:[%s1352 + $0x48] sm:$0xff]
        %v1363 = vld [vmem:[%s1352 + $0x50] sm:$0xff]
        %v1364 = vld [vmem:[%s1352 + $0x58] sm:$0xff]
        %v1365 = vld [vmem:[%s1352 + $0x60] sm:$0xff]
        %v1366 = vld [vmem:[%s1352 + $0x68] sm:$0xff]
        %v1367 = vld [vmem:[%s1352 + $0x70] sm:$0xff]
        %v1368 = vld [vmem:[%s1352 + $0x78] sm:$0xff]
        %v1369 = vld [vmem:[%s1352 + $0x80] sm:$0xff]
        %v1370 = vld [vmem:[%s1352 + $0x88] sm:$0xff]
        %v1371 = vld [vmem:[%s1352 + $0x90] sm:$0xff]
        %v1372 = vld [vmem:[%s1352 + $0x98] sm:$0xff]
        %v1373 = vld [vmem:[%s1352 + $0xa0] sm:$0xff]
        %v1374 = vld [vmem:[%s1352 + $0xa8] sm:$0xff]
        %v1375 = vld [vmem:[%s1352 + $0xb0] sm:$0xff]
        %v1376 = vld [vmem:[%s1352 + $0xb8] sm:$0xff]
        %v1377 = vld [vmem:[%s1352 + $0xc0] sm:$0xff]
        %v1378 = vld [vmem:[%s1352 + $0xc8] sm:$0xff]
        %v1379 = vld [vmem:[%s1352 + $0xd0] sm:$0xff]
        %v1380 = vld [vmem:[%s1352 + $0xd8] sm:$0xff]
        %v1381 = vld [vmem:[%s1352 + $0xe0] sm:$0xff]
        %v1382 = vld [vmem:[%s1352 + $0xe8] sm:$0xff]
        %v1383 = vld [vmem:[%s1352 + $0xf0] sm:$0xff]
        %v1384 = vld [vmem:[%s1352 + $0xf8] sm:$0xff]
        %v1385 = vld [vmem:[%s1352 + $0x100] sm:$0xff]
        %v1386 = vld [vmem:[%s1352 + $0x108] sm:$0xff]
        %v1387 = vld [vmem:[%s1352 + $0x110] sm:$0xff]
        %v1388 = vld [vmem:[%s1352 + $0x118] sm:$0xff]
        %v1389 = vld [vmem:[%s1352 + $0x120] sm:$0xff]
        %v1390 = vld [vmem:[%s1352 + $0x128] sm:$0xff]
        %v1391 = vld [vmem:[%s1352 + $0x130] sm:$0xff]
        %v1392 = vld [vmem:[%s1352 + $0x138] sm:$0xff]
        %v1393 = vld [vmem:[%s1352 + $0x140] sm:$0xff]
        %v1394 = vld [vmem:[%s1352 + $0x148] sm:$0xff]
        %v1395 = vld [vmem:[%s1352 + $0x150] sm:$0xff]
        %v1396 = vld [vmem:[%s1352 + $0x158] sm:$0xff]
        %v1397 = vld [vmem:[%s1352 + $0x160] sm:$0xff]
        %v1398 = vld [vmem:[%s1352 + $0x168] sm:$0xff]
        %v1399 = vld [vmem:[%s1352 + $0x170] sm:$0xff]
        %v1400 = vld [vmem:[%s1352 + $0x178] sm:$0xff]
        %v1401 = vld [vmem:[%s1352 + $0x180] sm:$0xff]
        %v1402 = vld [vmem:[%s1352 + $0x188] sm:$0xff]
        %v1403 = vld [vmem:[%s1352 + $0x190] sm:$0xff]
        %v1404 = vld [vmem:[%s1352 + $0x198] sm:$0xff]
        %v1405 = vld [vmem:[%s1352 + $0x1a0] sm:$0xff]
        %v1406 = vld [vmem:[%s1352 + $0x1a8] sm:$0xff]
        %v1407 = vld [vmem:[%s1352 + $0x1b0] sm:$0xff]
        %v1408 = vld [vmem:[%s1352 + $0x1b8] sm:$0xff]
        %v1409 = vld [vmem:[%s1352 + $0x1c0] sm:$0xff]
        %v1410 = vld [vmem:[%s1352 + $0x1c8] sm:$0xff]
        %v1411 = vld [vmem:[%s1352 + $0x1d0] sm:$0xff]
        %v1412 = vld [vmem:[%s1352 + $0x1d8] sm:$0xff]
        %v1413 = vld [vmem:[%s1352 + $0x1e0] sm:$0xff]
        %v1414 = vld [vmem:[%s1352 + $0x1e8] sm:$0xff]
        %v1415 = vld [vmem:[%s1352 + $0x1f0] sm:$0xff]
        %v1416 = vld [vmem:[%s1352 + $0x1f8] sm:$0xff]
        %v1417 = vld [vmem:[%s1352 + $0x200] sm:$0xff]
        %v1418 = vld [vmem:[%s1352 + $0x208] sm:$0xff]
        %v1419 = vld [vmem:[%s1352 + $0x210] sm:$0xff]
        %v1420 = vld [vmem:[%s1352 + $0x218] sm:$0xff]
        %v1421 = vld [vmem:[%s1352 + $0x220] sm:$0xff]
        %v1422 = vld [vmem:[%s1352 + $0x228] sm:$0xff]
        %v1423 = vld [vmem:[%s1352 + $0x230] sm:$0xff]
        %v1424 = vld [vmem:[%s1352 + $0x238] sm:$0xff]
        %v1425 = vld [vmem:[%s1352 + $0x240] sm:$0xff]
        %v1426 = vld [vmem:[%s1352 + $0x248] sm:$0xff]
        %v1427 = vld [vmem:[%s1352 + $0x250] sm:$0xff]
        %v1428 = vld [vmem:[%s1352 + $0x258] sm:$0xff]
        %v1429 = vld [vmem:[%s1352 + $0x260] sm:$0xff]
        %v1430 = vld [vmem:[%s1352 + $0x268] sm:$0xff]
        %v1431 = vld [vmem:[%s1352 + $0x270] sm:$0xff]
        %v1432 = vld [vmem:[%s1352 + $0x278] sm:$0xff]
        %v1433 = vld [vmem:[%s1352 + $0x280] sm:$0xff]
        %v1434 = vld [vmem:[%s1352 + $0x288] sm:$0xff]
        %v1435 = vld [vmem:[%s1352 + $0x290] sm:$0xff]
        %v1436 = vld [vmem:[%s1352 + $0x298] sm:$0xff]
        %v1437 = vld [vmem:[%s1352 + $0x2a0] sm:$0xff]
        %v1438 = vld [vmem:[%s1352 + $0x2a8] sm:$0xff]
        %v1439 = vld [vmem:[%s1352 + $0x2b0] sm:$0xff]
        %v1440 = vld [vmem:[%s1352 + $0x2b8] sm:$0xff]
        %v1441 = vld [vmem:[%s1352 + $0x2c0] sm:$0xff]
        %v1442 = vld [vmem:[%s1352 + $0x2c8] sm:$0xff]
        %v1443 = vld [vmem:[%s1352 + $0x2d0] sm:$0xff]
        %v1444 = vld [vmem:[%s1352 + $0x2d8] sm:$0xff]
        %v1445 = vld [vmem:[%s1352 + $0x2e0] sm:$0xff]
        %v1446 = vld [vmem:[%s1352 + $0x2e8] sm:$0xff]
        %v1447 = vld [vmem:[%s1352 + $0x2f0] sm:$0xff]
        %v1448 = vld [vmem:[%s1352 + $0x2f8] sm:$0xff]
        %v1449 = vld [vmem:[%s1352 + $0x300] sm:$0xff]
        %v1450 = vld [vmem:[%s1352 + $0x308] sm:$0xff]
        %v1451 = vld [vmem:[%s1352 + $0x310] sm:$0xff]
        %v1452 = vld [vmem:[%s1352 + $0x318] sm:$0xff]
        %v1453 = vld [vmem:[%s1352 + $0x320] sm:$0xff]
        %v1454 = vld [vmem:[%s1352 + $0x328] sm:$0xff]
        %v1455 = vld [vmem:[%s1352 + $0x330] sm:$0xff]
        %v1456 = vld [vmem:[%s1352 + $0x338] sm:$0xff]
        %v1457 = vld [vmem:[%s1352 + $0x340] sm:$0xff]
        %v1458 = vld [vmem:[%s1352 + $0x348] sm:$0xff]
        %v1459 = vld [vmem:[%s1352 + $0x350] sm:$0xff]
        %v1460 = vld [vmem:[%s1352 + $0x358] sm:$0xff]
        %v1461 = vld [vmem:[%s1352 + $0x360] sm:$0xff]
        %v1462 = vld [vmem:[%s1352 + $0x368] sm:$0xff]
        %v1463 = vld [vmem:[%s1352 + $0x370] sm:$0xff]
        %v1464 = vld [vmem:[%s1352 + $0x378] sm:$0xff]
        %v1465 = vld [vmem:[%s1352 + $0x380] sm:$0xff]
        %v1466 = vld [vmem:[%s1352 + $0x388] sm:$0xff]
        %v1467 = vld [vmem:[%s1352 + $0x390] sm:$0xff]
        %v1468 = vld [vmem:[%s1352 + $0x398] sm:$0xff]
        %v1469 = vld [vmem:[%s1352 + $0x3a0] sm:$0xff]
        %v1470 = vld [vmem:[%s1352 + $0x3a8] sm:$0xff]
        %v1471 = vld [vmem:[%s1352 + $0x3b0] sm:$0xff]
        %v1472 = vld [vmem:[%s1352 + $0x3b8] sm:$0xff]
        %v1473 = vld [vmem:[%s1352 + $0x3c0] sm:$0xff]
        %v1474 = vld [vmem:[%s1352 + $0x3c8] sm:$0xff]
        %v1475 = vld [vmem:[%s1352 + $0x3d0] sm:$0xff]
        %v1476 = vld [vmem:[%s1352 + $0x3d8] sm:$0xff]
        %v1477 = vld [vmem:[%s1352 + $0x3e0] sm:$0xff]
        %v1478 = vld [vmem:[%s1352 + $0x3e8] sm:$0xff]
        %v1479 = vld [vmem:[%s1352 + $0x3f0] sm:$0xff]
        %v1480 = vld [vmem:[%s1352 + $0x3f8] sm:$0xff]
        %v1481 = vld [vmem:[%s1352 + $0x400] sm:$0xff]
        %v1482 = vld [vmem:[%s1352 + $0x408] sm:$0xff]
        %v1483 = vld [vmem:[%s1352 + $0x410] sm:$0xff]
        %v1484 = vld [vmem:[%s1352 + $0x418] sm:$0xff]
        %v1485 = vld [vmem:[%s1352 + $0x420] sm:$0xff]
        %v1486 = vld [vmem:[%s1352 + $0x428] sm:$0xff]
        %v1487 = vld [vmem:[%s1352 + $0x430] sm:$0xff]
        %v1488 = vld [vmem:[%s1352 + $0x438] sm:$0xff]
        %v1489 = vld [vmem:[%s1352 + $0x440] sm:$0xff]
        %v1490 = vld [vmem:[%s1352 + $0x448] sm:$0xff]
        %v1491 = vld [vmem:[%s1352 + $0x450] sm:$0xff]
        %v1492 = vld [vmem:[%s1352 + $0x458] sm:$0xff]
        %v1493 = vld [vmem:[%s1352 + $0x460] sm:$0xff]
        %v1494 = vld [vmem:[%s1352 + $0x468] sm:$0xff]
        %v1495 = vld [vmem:[%s1352 + $0x470] sm:$0xff]
        %v1496 = vld [vmem:[%s1352 + $0x478] sm:$0xff]
        %v1497 = vld [vmem:[%s1352 + $0x480] sm:$0xff]
        %v1498 = vld [vmem:[%s1352 + $0x488] sm:$0xff]
        %v1499 = vld [vmem:[%s1352 + $0x490] sm:$0xff]
        %v1500 = vld [vmem:[%s1352 + $0x498] sm:$0xff]
        %v1501 = vld [vmem:[%s1352 + $0x4a0] sm:$0xff]
        %v1502 = vld [vmem:[%s1352 + $0x4a8] sm:$0xff]
        %v1503 = vld [vmem:[%s1352 + $0x4b0] sm:$0xff]
        %v1504 = vld [vmem:[%s1352 + $0x4b8] sm:$0xff]
        %v1505 = vld [vmem:[%s1352 + $0x4c0] sm:$0xff]
        %v1506 = vld [vmem:[%s1352 + $0x4c8] sm:$0xff]
        %v1507 = vld [vmem:[%s1352 + $0x4d0] sm:$0xff]
        %v1508 = vld [vmem:[%s1352 + $0x4d8] sm:$0xff]
        %v1509 = vld [vmem:[%s1352 + $0x4e0] sm:$0xff]
        %v1510 = vld [vmem:[%s1352 + $0x4e8] sm:$0xff]
        %v1511 = vld [vmem:[%s1352 + $0x4f0] sm:$0xff]
        %v1512 = vld [vmem:[%s1352 + $0x4f8] sm:$0xff]
        %v1513 = vld [vmem:[%s1352 + $0x500] sm:$0xff]
        %v1514 = vld [vmem:[%s1352 + $0x508] sm:$0xff]
        %v1515 = vld [vmem:[%s1352 + $0x510] sm:$0xff]
        %v1516 = vld [vmem:[%s1352 + $0x518] sm:$0xff]
        %v1517 = vld [vmem:[%s1352 + $0x520] sm:$0xff]
        %v1518 = vld [vmem:[%s1352 + $0x528] sm:$0xff]
        %v1519 = vld [vmem:[%s1352 + $0x530] sm:$0xff]
        %v1520 = vld [vmem:[%s1352 + $0x538] sm:$0xff]
        %v1521 = vld [vmem:[%s1352 + $0x540] sm:$0xff]
        %v1522 = vld [vmem:[%s1352 + $0x548] sm:$0xff]
        %v1523 = vld [vmem:[%s1352 + $0x550] sm:$0xff]
        %v1524 = vld [vmem:[%s1352 + $0x558] sm:$0xff]
        %v1525 = vld [vmem:[%s1352 + $0x560] sm:$0xff]
        %v1526 = vld [vmem:[%s1352 + $0x568] sm:$0xff]
        %v1527 = vld [vmem:[%s1352 + $0x570] sm:$0xff]
        %v1528 = vld [vmem:[%s1352 + $0x578] sm:$0xff]
        %v1529 = vld [vmem:[%s1352 + $0x580] sm:$0xff]
        %v1530 = vld [vmem:[%s1352 + $0x588] sm:$0xff]
        %v1531 = vld [vmem:[%s1352 + $0x590] sm:$0xff]
        %v1532 = vld [vmem:[%s1352 + $0x598] sm:$0xff]
        %v1533 = vld [vmem:[%s1352 + $0x5a0] sm:$0xff]
        %v1534 = vld [vmem:[%s1352 + $0x5a8] sm:$0xff]
        %v1535 = vld [vmem:[%s1352 + $0x5b0] sm:$0xff]
        %v1536 = vld [vmem:[%s1352 + $0x5b8] sm:$0xff]
        %v1537 = vld [vmem:[%s1352 + $0x5c0] sm:$0xff]
        %v1538 = vld [vmem:[%s1352 + $0x5c8] sm:$0xff]
        %v1539 = vld [vmem:[%s1352 + $0x5d0] sm:$0xff]
        %v1540 = vld [vmem:[%s1352 + $0x5d8] sm:$0xff]
        %v1541 = vld [vmem:[%s1352 + $0x5e0] sm:$0xff]
        %v1542 = vld [vmem:[%s1352 + $0x5e8] sm:$0xff]
        %v1543 = vld [vmem:[%s1352 + $0x5f0] sm:$0xff]
        %v1544 = vld [vmem:[%s1352 + $0x5f8] sm:$0xff]
        %v1545 = vld [vmem:[%s1352 + $0x600] sm:$0xff]
        %v1546 = vld [vmem:[%s1352 + $0x608] sm:$0xff]
        %v1547 = vld [vmem:[%s1352 + $0x610] sm:$0xff]
        %v1548 = vld [vmem:[%s1352 + $0x618] sm:$0xff]
        %v1549 = vld [vmem:[%s1352 + $0x620] sm:$0xff]
        %v1550 = vld [vmem:[%s1352 + $0x628] sm:$0xff]
        %v1551 = vld [vmem:[%s1352 + $0x630] sm:$0xff]
        %v1552 = vld [vmem:[%s1352 + $0x638] sm:$0xff]
        %v1553 = vld [vmem:[%s1352 + $0x640] sm:$0xff]
        %v1554 = vld [vmem:[%s1352 + $0x648] sm:$0xff]
        %v1555 = vld [vmem:[%s1352 + $0x650] sm:$0xff]
        %v1556 = vld [vmem:[%s1352 + $0x658] sm:$0xff]
        %v1557 = vld [vmem:[%s1352 + $0x660] sm:$0xff]
        %v1558 = vld [vmem:[%s1352 + $0x668] sm:$0xff]
        %v1559 = vld [vmem:[%s1352 + $0x670] sm:$0xff]
        %v1560 = vld [vmem:[%s1352 + $0x678] sm:$0xff]
        %v1561 = vld [vmem:[%s1352 + $0x680] sm:$0xff]
        %v1562 = vld [vmem:[%s1352 + $0x688] sm:$0xff]
        %v1563 = vld [vmem:[%s1352 + $0x690] sm:$0xff]
        %v1564 = vld [vmem:[%s1352 + $0x698] sm:$0xff]
        %v1565 = vld [vmem:[%s1352 + $0x6a0] sm:$0xff]
        %v1566 = vld [vmem:[%s1352 + $0x6a8] sm:$0xff]
        %v1567 = vld [vmem:[%s1352 + $0x6b0] sm:$0xff]
        %v1568 = vld [vmem:[%s1352 + $0x6b8] sm:$0xff]
        %v1569 = vld [vmem:[%s1352 + $0x6c0] sm:$0xff]
        %v1570 = vld [vmem:[%s1352 + $0x6c8] sm:$0xff]
        %v1571 = vld [vmem:[%s1352 + $0x6d0] sm:$0xff]
        %v1572 = vld [vmem:[%s1352 + $0x6d8] sm:$0xff]
        %v1573 = vld [vmem:[%s1352 + $0x6e0] sm:$0xff]
        %v1574 = vld [vmem:[%s1352 + $0x6e8] sm:$0xff]
        %v1575 = vld [vmem:[%s1352 + $0x6f0] sm:$0xff]
        %v1576 = vld [vmem:[%s1352 + $0x6f8] sm:$0xff]
        %v1578 = vperm.slane %v1347, 0
        %v1579 = vperm.slane %v1347, 1
        %v1580 = vperm.slane %v1347, 2
        %v1581 = vperm.slane %v1347, 3
        %v1582 = vperm.slane %v1347, 4
        %v1583 = vperm.slane %v1347, 5
        %v1584 = vperm.slane %v1347, 6
        %1592 = vmatpush.msra.mxu0 %v1458
        %1593 = vmatpush.msra.mxu0 %v1451
        %1594 = vmatpush.msra.mxu0 %v1444
        %1595 = vmatpush.msra.mxu0 %v1437
        %1596 = vmatpush.msra.mxu0 %v1430
        %1597 = vmatpush.msra.mxu0 %v1423
        %1598 = vmatpush.msra.mxu0 %v1416
        %1599 = vmatpush.msra.mxu0 %v1409
        %1600 = vmatpush.msra.mxu0 %v1402
        %1601 = vmatpush.msra.mxu0 %v1395
        %1602 = vmatpush.msra.mxu0 %v1388
        %1603 = vmatpush.msra.mxu0 %v1381
        %1604 = vmatpush.msra.mxu0 %v1374
        %1605 = vmatpush.msra.mxu0 %v1367
        %1606 = vmatpush.msra.mxu0 %v1360
        %1607 = vmatpush.msra.mxu0 %v1353
        %1608 = vmatmul.f32.gmra.mxu0 %v262
        %v1609 = vpop.f32.mrf.mxu0
        %v1610 = vadd.f32 %v1578, %v1609
        %1611 = vdwg.mxu0
        %1612 = vmatpush.msra.mxu0 %v1570
        %1613 = vmatpush.msra.mxu0 %v1563
        %1614 = vmatpush.msra.mxu0 %v1556
        %1615 = vmatpush.msra.mxu0 %v1549
        %1616 = vmatpush.msra.mxu0 %v1542
        %1617 = vmatpush.msra.mxu0 %v1535
        %1618 = vmatpush.msra.mxu0 %v1528
        %1619 = vmatpush.msra.mxu0 %v1521
        %1620 = vmatpush.msra.mxu0 %v1514
        %1621 = vmatpush.msra.mxu0 %v1507
        %1622 = vmatpush.msra.mxu0 %v1500
        %1623 = vmatpush.msra.mxu0 %v1493
        %1624 = vmatpush.msra.mxu0 %v1486
        %1625 = vmatpush.msra.mxu0 %v1479
        %1626 = vmatpush.msra.mxu0 %v1472
        %1627 = vmatpush.msra.mxu0 %v1465
        %1628 = vmatmul.f32.gmra.mxu0 %v263
        %v1629 = vpop.f32.mrf.mxu0
        %v1630 = vadd.f32 %v1610, %v1629
        %1631 = vdwg.mxu0
        %1632 = vmatpush.msra.mxu0 %v1459
        %1633 = vmatpush.msra.mxu0 %v1452
        %1634 = vmatpush.msra.mxu0 %v1445
        %1635 = vmatpush.msra.mxu0 %v1438
        %1636 = vmatpush.msra.mxu0 %v1431
        %1637 = vmatpush.msra.mxu0 %v1424
        %1638 = vmatpush.msra.mxu0 %v1417
        %1639 = vmatpush.msra.mxu0 %v1410
        %1640 = vmatpush.msra.mxu0 %v1403
        %1641 = vmatpush.msra.mxu0 %v1396
        %1642 = vmatpush.msra.mxu0 %v1389
        %1643 = vmatpush.msra.mxu0 %v1382
        %1644 = vmatpush.msra.mxu0 %v1375
        %1645 = vmatpush.msra.mxu0 %v1368
        %1646 = vmatpush.msra.mxu0 %v1361
        %1647 = vmatpush.msra.mxu0 %v1354
        %1648 = vmatmul.f32.gmra.mxu0 %v262
        %v1649 = vpop.f32.mrf.mxu0
        %v1650 = vadd.f32 %v1579, %v1649
        %1651 = vdwg.mxu0
        %1652 = vmatpush.msra.mxu0 %v1571
        %1653 = vmatpush.msra.mxu0 %v1564
        %1654 = vmatpush.msra.mxu0 %v1557
        %1655 = vmatpush.msra.mxu0 %v1550
        %1656 = vmatpush.msra.mxu0 %v1543
        %1657 = vmatpush.msra.mxu0 %v1536
        %1658 = vmatpush.msra.mxu0 %v1529
        %1659 = vmatpush.msra.mxu0 %v1522
        %1660 = vmatpush.msra.mxu0 %v1515
        %1661 = vmatpush.msra.mxu0 %v1508
        %1662 = vmatpush.msra.mxu0 %v1501
        %1663 = vmatpush.msra.mxu0 %v1494
        %1664 = vmatpush.msra.mxu0 %v1487
        %1665 = vmatpush.msra.mxu0 %v1480
        %1666 = vmatpush.msra.mxu0 %v1473
        %1667 = vmatpush.msra.mxu0 %v1466
        %1668 = vmatmul.f32.gmra.mxu0 %v263
        %v1669 = vpop.f32.mrf.mxu0
        %v1670 = vadd.f32 %v1650, %v1669
        %1671 = vdwg.mxu0
        %1672 = vmatpush.msra.mxu0 %v1460
        %1673 = vmatpush.msra.mxu0 %v1453
        %1674 = vmatpush.msra.mxu0 %v1446
        %1675 = vmatpush.msra.mxu0 %v1439
        %1676 = vmatpush.msra.mxu0 %v1432
        %1677 = vmatpush.msra.mxu0 %v1425
        %1678 = vmatpush.msra.mxu0 %v1418
        %1679 = vmatpush.msra.mxu0 %v1411
        %1680 = vmatpush.msra.mxu0 %v1404
        %1681 = vmatpush.msra.mxu0 %v1397
        %1682 = vmatpush.msra.mxu0 %v1390
        %1683 = vmatpush.msra.mxu0 %v1383
        %1684 = vmatpush.msra.mxu0 %v1376
        %1685 = vmatpush.msra.mxu0 %v1369
        %1686 = vmatpush.msra.mxu0 %v1362
        %1687 = vmatpush.msra.mxu0 %v1355
        %1688 = vmatmul.f32.gmra.mxu0 %v262
        %v1689 = vpop.f32.mrf.mxu0
        %v1690 = vadd.f32 %v1580, %v1689
        %1691 = vdwg.mxu0
        %1692 = vmatpush.msra.mxu0 %v1572
        %1693 = vmatpush.msra.mxu0 %v1565
        %1694 = vmatpush.msra.mxu0 %v1558
        %1695 = vmatpush.msra.mxu0 %v1551
        %1696 = vmatpush.msra.mxu0 %v1544
        %1697 = vmatpush.msra.mxu0 %v1537
        %1698 = vmatpush.msra.mxu0 %v1530
        %1699 = vmatpush.msra.mxu0 %v1523
        %1700 = vmatpush.msra.mxu0 %v1516
        %1701 = vmatpush.msra.mxu0 %v1509
        %1702 = vmatpush.msra.mxu0 %v1502
        %1703 = vmatpush.msra.mxu0 %v1495
        %1704 = vmatpush.msra.mxu0 %v1488
        %1705 = vmatpush.msra.mxu0 %v1481
        %1706 = vmatpush.msra.mxu0 %v1474
        %1707 = vmatpush.msra.mxu0 %v1467
        %1708 = vmatmul.f32.gmra.mxu0 %v263
        %v1709 = vpop.f32.mrf.mxu0
        %v1710 = vadd.f32 %v1690, %v1709
        %1711 = vdwg.mxu0
        %1712 = vmatpush.msra.mxu0 %v1461
        %1713 = vmatpush.msra.mxu0 %v1454
        %1714 = vmatpush.msra.mxu0 %v1447
        %1715 = vmatpush.msra.mxu0 %v1440
        %1716 = vmatpush.msra.mxu0 %v1433
        %1717 = vmatpush.msra.mxu0 %v1426
        %1718 = vmatpush.msra.mxu0 %v1419
        %1719 = vmatpush.msra.mxu0 %v1412
        %1720 = vmatpush.msra.mxu0 %v1405
        %1721 = vmatpush.msra.mxu0 %v1398
        %1722 = vmatpush.msra.mxu0 %v1391
        %1723 = vmatpush.msra.mxu0 %v1384
        %1724 = vmatpush.msra.mxu0 %v1377
        %1725 = vmatpush.msra.mxu0 %v1370
        %1726 = vmatpush.msra.mxu0 %v1363
        %1727 = vmatpush.msra.mxu0 %v1356
        %1728 = vmatmul.f32.gmra.mxu0 %v262
        %v1729 = vpop.f32.mrf.mxu0
        %v1730 = vadd.f32 %v1581, %v1729
        %1731 = vdwg.mxu0
        %1732 = vmatpush.msra.mxu0 %v1573
        %1733 = vmatpush.msra.mxu0 %v1566
        %1734 = vmatpush.msra.mxu0 %v1559
        %1735 = vmatpush.msra.mxu0 %v1552
        %1736 = vmatpush.msra.mxu0 %v1545
        %1737 = vmatpush.msra.mxu0 %v1538
        %1738 = vmatpush.msra.mxu0 %v1531
        %1739 = vmatpush.msra.mxu0 %v1524
        %1740 = vmatpush.msra.mxu0 %v1517
        %1741 = vmatpush.msra.mxu0 %v1510
        %1742 = vmatpush.msra.mxu0 %v1503
        %1743 = vmatpush.msra.mxu0 %v1496
        %1744 = vmatpush.msra.mxu0 %v1489
        %1745 = vmatpush.msra.mxu0 %v1482
        %1746 = vmatpush.msra.mxu0 %v1475
        %1747 = vmatpush.msra.mxu0 %v1468
        %1748 = vmatmul.f32.gmra.mxu0 %v263
        %v1749 = vpop.f32.mrf.mxu0
        %v1750 = vadd.f32 %v1730, %v1749
        %1751 = vdwg.mxu0
        %1752 = vmatpush.msra.mxu0 %v1462
        %1753 = vmatpush.msra.mxu0 %v1455
        %1754 = vmatpush.msra.mxu0 %v1448
        %1755 = vmatpush.msra.mxu0 %v1441
        %1756 = vmatpush.msra.mxu0 %v1434
        %1757 = vmatpush.msra.mxu0 %v1427
        %1758 = vmatpush.msra.mxu0 %v1420
        %1759 = vmatpush.msra.mxu0 %v1413
        %1760 = vmatpush.msra.mxu0 %v1406
        %1761 = vmatpush.msra.mxu0 %v1399
        %1762 = vmatpush.msra.mxu0 %v1392
        %1763 = vmatpush.msra.mxu0 %v1385
        %1764 = vmatpush.msra.mxu0 %v1378
        %1765 = vmatpush.msra.mxu0 %v1371
        %1766 = vmatpush.msra.mxu0 %v1364
        %1767 = vmatpush.msra.mxu0 %v1357
        %1768 = vmatmul.f32.gmra.mxu0 %v262
        %v1769 = vpop.f32.mrf.mxu0
        %v1770 = vadd.f32 %v1582, %v1769
        %1771 = vdwg.mxu0
        %1772 = vmatpush.msra.mxu0 %v1574
        %1773 = vmatpush.msra.mxu0 %v1567
        %1774 = vmatpush.msra.mxu0 %v1560
        %1775 = vmatpush.msra.mxu0 %v1553
        %1776 = vmatpush.msra.mxu0 %v1546
        %1777 = vmatpush.msra.mxu0 %v1539
        %1778 = vmatpush.msra.mxu0 %v1532
        %1779 = vmatpush.msra.mxu0 %v1525
        %1780 = vmatpush.msra.mxu0 %v1518
        %1781 = vmatpush.msra.mxu0 %v1511
        %1782 = vmatpush.msra.mxu0 %v1504
        %1783 = vmatpush.msra.mxu0 %v1497
        %1784 = vmatpush.msra.mxu0 %v1490
        %1785 = vmatpush.msra.mxu0 %v1483
        %1786 = vmatpush.msra.mxu0 %v1476
        %1787 = vmatpush.msra.mxu0 %v1469
        %1788 = vmatmul.f32.gmra.mxu0 %v263
        %v1789 = vpop.f32.mrf.mxu0
        %v1790 = vadd.f32 %v1770, %v1789
        %1791 = vdwg.mxu0
        %1792 = vmatpush.msra.mxu0 %v1463
        %1793 = vmatpush.msra.mxu0 %v1456
        %1794 = vmatpush.msra.mxu0 %v1449
        %1795 = vmatpush.msra.mxu0 %v1442
        %1796 = vmatpush.msra.mxu0 %v1435
        %1797 = vmatpush.msra.mxu0 %v1428
        %1798 = vmatpush.msra.mxu0 %v1421
        %1799 = vmatpush.msra.mxu0 %v1414
        %1800 = vmatpush.msra.mxu0 %v1407
        %1801 = vmatpush.msra.mxu0 %v1400
        %1802 = vmatpush.msra.mxu0 %v1393
        %1803 = vmatpush.msra.mxu0 %v1386
        %1804 = vmatpush.msra.mxu0 %v1379
        %1805 = vmatpush.msra.mxu0 %v1372
        %1806 = vmatpush.msra.mxu0 %v1365
        %1807 = vmatpush.msra.mxu0 %v1358
        %1808 = vmatmul.f32.gmra.mxu0 %v262
        %v1809 = vpop.f32.mrf.mxu0
        %v1810 = vadd.f32 %v1583, %v1809
        %1811 = vdwg.mxu0
        %1812 = vmatpush.msra.mxu0 %v1575
        %1813 = vmatpush.msra.mxu0 %v1568
        %1814 = vmatpush.msra.mxu0 %v1561
        %1815 = vmatpush.msra.mxu0 %v1554
        %1816 = vmatpush.msra.mxu0 %v1547
        %1817 = vmatpush.msra.mxu0 %v1540
        %1818 = vmatpush.msra.mxu0 %v1533
        %1819 = vmatpush.msra.mxu0 %v1526
        %1820 = vmatpush.msra.mxu0 %v1519
        %1821 = vmatpush.msra.mxu0 %v1512
        %1822 = vmatpush.msra.mxu0 %v1505
        %1823 = vmatpush.msra.mxu0 %v1498
        %1824 = vmatpush.msra.mxu0 %v1491
        %1825 = vmatpush.msra.mxu0 %v1484
        %1826 = vmatpush.msra.mxu0 %v1477
        %1827 = vmatpush.msra.mxu0 %v1470
        %1828 = vmatmul.f32.gmra.mxu0 %v263
        %v1829 = vpop.f32.mrf.mxu0
        %v1830 = vadd.f32 %v1810, %v1829
        %1831 = vdwg.mxu0
        %1832 = vmatpush.msra.mxu0 %v1464
        %1833 = vmatpush.msra.mxu0 %v1457
        %1834 = vmatpush.msra.mxu0 %v1450
        %1835 = vmatpush.msra.mxu0 %v1443
        %1836 = vmatpush.msra.mxu0 %v1436
        %1837 = vmatpush.msra.mxu0 %v1429
        %1838 = vmatpush.msra.mxu0 %v1422
        %1839 = vmatpush.msra.mxu0 %v1415
        %1840 = vmatpush.msra.mxu0 %v1408
        %1841 = vmatpush.msra.mxu0 %v1401
        %1842 = vmatpush.msra.mxu0 %v1394
        %1843 = vmatpush.msra.mxu0 %v1387
        %1844 = vmatpush.msra.mxu0 %v1380
        %1845 = vmatpush.msra.mxu0 %v1373
        %1846 = vmatpush.msra.mxu0 %v1366
        %1847 = vmatpush.msra.mxu0 %v1359
        %1848 = vmatmul.f32.gmra.mxu0 %v262
        %v1849 = vpop.f32.mrf.mxu0
        %v1850 = vadd.f32 %v1584, %v1849
        %1851 = vdwg.mxu0
        %1852 = vmatpush.msra.mxu0 %v1576
        %1853 = vmatpush.msra.mxu0 %v1569
        %1854 = vmatpush.msra.mxu0 %v1562
        %1855 = vmatpush.msra.mxu0 %v1555
        %1856 = vmatpush.msra.mxu0 %v1548
        %1857 = vmatpush.msra.mxu0 %v1541
        %1858 = vmatpush.msra.mxu0 %v1534
        %1859 = vmatpush.msra.mxu0 %v1527
        %1860 = vmatpush.msra.mxu0 %v1520
        %1861 = vmatpush.msra.mxu0 %v1513
        %1862 = vmatpush.msra.mxu0 %v1506
        %1863 = vmatpush.msra.mxu0 %v1499
        %1864 = vmatpush.msra.mxu0 %v1492
        %1865 = vmatpush.msra.mxu0 %v1485
        %1866 = vmatpush.msra.mxu0 %v1478
        %1867 = vmatpush.msra.mxu0 %v1471
        %1868 = vmatmul.f32.gmra.mxu0 %v263
        %v1869 = vpop.f32.mrf.mxu0
        %v1870 = vadd.f32 %v1850, %v1869
        %1871 = vdwg.mxu0
        %v1872 = vtanh.pop %v1630
        %v1873 = vtanh.pop %v1670
        %v1874 = vtanh.pop %v1710
        %v1875 = vtanh.pop %v1750
        %v1876 = vtanh.pop %v1790
        %v1877 = vtanh.pop %v1830
        %v1878 = vtanh.pop %v1870
        %s1879 = scalar_lea.vmem %s228, 7168 [#allocation7]
        %v1880 = vld [vmem:[%s1879] sm:$0xff]
        %v1881 = vld [vmem:[%s1879 + $0x8] sm:$0xff]
        %v1882 = vld [vmem:[%s1879 + $0x10] sm:$0xff]
        %v1883 = vld [vmem:[%s1879 + $0x18] sm:$0xff]
        %v1884 = vld [vmem:[%s1879 + $0x20] sm:$0xff]
        %v1885 = vld [vmem:[%s1879 + $0x28] sm:$0xff]
        %v1886 = vld [vmem:[%s1879 + $0x30] sm:$0xff]
        %v1887 = vld [vmem:[%s1879 + $0x38] sm:$0xff]
        %v1888 = vld [vmem:[%s1879 + $0x40] sm:$0xff]
        %v1889 = vld [vmem:[%s1879 + $0x48] sm:$0xff]
        %v1890 = vld [vmem:[%s1879 + $0x50] sm:$0xff]
        %v1891 = vld [vmem:[%s1879 + $0x58] sm:$0xff]
        %v1892 = vld [vmem:[%s1879 + $0x60] sm:$0xff]
        %v1893 = vld [vmem:[%s1879 + $0x68] sm:$0xff]
        %v1894 = vld [vmem:[%s1879 + $0x70] sm:$0xff]
        %v1895 = vld [vmem:[%s1879 + $0x78] sm:$0xff]
        %v1896 = vld [vmem:[%s1879 + $0x80] sm:$0xff]
        %v1897 = vld [vmem:[%s1879 + $0x88] sm:$0xff]
        %v1898 = vld [vmem:[%s1879 + $0x90] sm:$0xff]
        %v1899 = vld [vmem:[%s1879 + $0x98] sm:$0xff]
        %v1900 = vld [vmem:[%s1879 + $0xa0] sm:$0xff]
        %v1901 = vld [vmem:[%s1879 + $0xa8] sm:$0xff]
        %v1902 = vld [vmem:[%s1879 + $0xb0] sm:$0xff]
        %v1903 = vld [vmem:[%s1879 + $0xb8] sm:$0xff]
        %v1904 = vld [vmem:[%s1879 + $0xc0] sm:$0xff]
        %v1905 = vld [vmem:[%s1879 + $0xc8] sm:$0xff]
        %v1906 = vld [vmem:[%s1879 + $0xd0] sm:$0xff]
        %v1907 = vld [vmem:[%s1879 + $0xd8] sm:$0xff]
        %v1908 = vld [vmem:[%s1879 + $0xe0] sm:$0xff]
        %v1909 = vld [vmem:[%s1879 + $0xe8] sm:$0xff]
        %v1910 = vld [vmem:[%s1879 + $0xf0] sm:$0xff]
        %v1911 = vld [vmem:[%s1879 + $0xf8] sm:$0xff]
        %v1912 = vld [vmem:[%s1879 + $0x100] sm:$0xff]
        %v1913 = vld [vmem:[%s1879 + $0x108] sm:$0xff]
        %v1914 = vld [vmem:[%s1879 + $0x110] sm:$0xff]
        %v1915 = vld [vmem:[%s1879 + $0x118] sm:$0xff]
        %v1916 = vld [vmem:[%s1879 + $0x120] sm:$0xff]
        %v1917 = vld [vmem:[%s1879 + $0x128] sm:$0xff]
        %v1918 = vld [vmem:[%s1879 + $0x130] sm:$0xff]
        %v1919 = vld [vmem:[%s1879 + $0x138] sm:$0xff]
        %v1920 = vld [vmem:[%s1879 + $0x140] sm:$0xff]
        %v1921 = vld [vmem:[%s1879 + $0x148] sm:$0xff]
        %v1922 = vld [vmem:[%s1879 + $0x150] sm:$0xff]
        %v1923 = vld [vmem:[%s1879 + $0x158] sm:$0xff]
        %v1924 = vld [vmem:[%s1879 + $0x160] sm:$0xff]
        %v1925 = vld [vmem:[%s1879 + $0x168] sm:$0xff]
        %v1926 = vld [vmem:[%s1879 + $0x170] sm:$0xff]
        %v1927 = vld [vmem:[%s1879 + $0x178] sm:$0xff]
        %v1928 = vld [vmem:[%s1879 + $0x180] sm:$0xff]
        %v1929 = vld [vmem:[%s1879 + $0x188] sm:$0xff]
        %v1930 = vld [vmem:[%s1879 + $0x190] sm:$0xff]
        %v1931 = vld [vmem:[%s1879 + $0x198] sm:$0xff]
        %v1932 = vld [vmem:[%s1879 + $0x1a0] sm:$0xff]
        %v1933 = vld [vmem:[%s1879 + $0x1a8] sm:$0xff]
        %v1934 = vld [vmem:[%s1879 + $0x1b0] sm:$0xff]
        %v1935 = vld [vmem:[%s1879 + $0x1b8] sm:$0xff]
        %v1936 = vld [vmem:[%s1879 + $0x1c0] sm:$0xff]
        %v1937 = vld [vmem:[%s1879 + $0x1c8] sm:$0xff]
        %v1938 = vld [vmem:[%s1879 + $0x1d0] sm:$0xff]
        %v1939 = vld [vmem:[%s1879 + $0x1d8] sm:$0xff]
        %v1940 = vld [vmem:[%s1879 + $0x1e0] sm:$0xff]
        %v1941 = vld [vmem:[%s1879 + $0x1e8] sm:$0xff]
        %v1942 = vld [vmem:[%s1879 + $0x1f0] sm:$0xff]
        %v1943 = vld [vmem:[%s1879 + $0x1f8] sm:$0xff]
        %v1944 = vld [vmem:[%s1879 + $0x200] sm:$0xff]
        %v1945 = vld [vmem:[%s1879 + $0x208] sm:$0xff]
        %v1946 = vld [vmem:[%s1879 + $0x210] sm:$0xff]
        %v1947 = vld [vmem:[%s1879 + $0x218] sm:$0xff]
        %v1948 = vld [vmem:[%s1879 + $0x220] sm:$0xff]
        %v1949 = vld [vmem:[%s1879 + $0x228] sm:$0xff]
        %v1950 = vld [vmem:[%s1879 + $0x230] sm:$0xff]
        %v1951 = vld [vmem:[%s1879 + $0x238] sm:$0xff]
        %v1952 = vld [vmem:[%s1879 + $0x240] sm:$0xff]
        %v1953 = vld [vmem:[%s1879 + $0x248] sm:$0xff]
        %v1954 = vld [vmem:[%s1879 + $0x250] sm:$0xff]
        %v1955 = vld [vmem:[%s1879 + $0x258] sm:$0xff]
        %v1956 = vld [vmem:[%s1879 + $0x260] sm:$0xff]
        %v1957 = vld [vmem:[%s1879 + $0x268] sm:$0xff]
        %v1958 = vld [vmem:[%s1879 + $0x270] sm:$0xff]
        %v1959 = vld [vmem:[%s1879 + $0x278] sm:$0xff]
        %v1960 = vld [vmem:[%s1879 + $0x280] sm:$0xff]
        %v1961 = vld [vmem:[%s1879 + $0x288] sm:$0xff]
        %v1962 = vld [vmem:[%s1879 + $0x290] sm:$0xff]
        %v1963 = vld [vmem:[%s1879 + $0x298] sm:$0xff]
        %v1964 = vld [vmem:[%s1879 + $0x2a0] sm:$0xff]
        %v1965 = vld [vmem:[%s1879 + $0x2a8] sm:$0xff]
        %v1966 = vld [vmem:[%s1879 + $0x2b0] sm:$0xff]
        %v1967 = vld [vmem:[%s1879 + $0x2b8] sm:$0xff]
        %v1968 = vld [vmem:[%s1879 + $0x2c0] sm:$0xff]
        %v1969 = vld [vmem:[%s1879 + $0x2c8] sm:$0xff]
        %v1970 = vld [vmem:[%s1879 + $0x2d0] sm:$0xff]
        %v1971 = vld [vmem:[%s1879 + $0x2d8] sm:$0xff]
        %v1972 = vld [vmem:[%s1879 + $0x2e0] sm:$0xff]
        %v1973 = vld [vmem:[%s1879 + $0x2e8] sm:$0xff]
        %v1974 = vld [vmem:[%s1879 + $0x2f0] sm:$0xff]
        %v1975 = vld [vmem:[%s1879 + $0x2f8] sm:$0xff]
        %v1976 = vld [vmem:[%s1879 + $0x300] sm:$0xff]
        %v1977 = vld [vmem:[%s1879 + $0x308] sm:$0xff]
        %v1978 = vld [vmem:[%s1879 + $0x310] sm:$0xff]
        %v1979 = vld [vmem:[%s1879 + $0x318] sm:$0xff]
        %v1980 = vld [vmem:[%s1879 + $0x320] sm:$0xff]
        %v1981 = vld [vmem:[%s1879 + $0x328] sm:$0xff]
        %v1982 = vld [vmem:[%s1879 + $0x330] sm:$0xff]
        %v1983 = vld [vmem:[%s1879 + $0x338] sm:$0xff]
        %v1984 = vld [vmem:[%s1879 + $0x340] sm:$0xff]
        %v1985 = vld [vmem:[%s1879 + $0x348] sm:$0xff]
        %v1986 = vld [vmem:[%s1879 + $0x350] sm:$0xff]
        %v1987 = vld [vmem:[%s1879 + $0x358] sm:$0xff]
        %v1988 = vld [vmem:[%s1879 + $0x360] sm:$0xff]
        %v1989 = vld [vmem:[%s1879 + $0x368] sm:$0xff]
        %v1990 = vld [vmem:[%s1879 + $0x370] sm:$0xff]
        %v1991 = vld [vmem:[%s1879 + $0x378] sm:$0xff]
        %v1992 = vld [vmem:[%s1879 + $0x380] sm:$0xff]
        %v1993 = vld [vmem:[%s1879 + $0x388] sm:$0xff]
        %v1994 = vld [vmem:[%s1879 + $0x390] sm:$0xff]
        %v1995 = vld [vmem:[%s1879 + $0x398] sm:$0xff]
        %v1996 = vld [vmem:[%s1879 + $0x3a0] sm:$0xff]
        %v1997 = vld [vmem:[%s1879 + $0x3a8] sm:$0xff]
        %v1998 = vld [vmem:[%s1879 + $0x3b0] sm:$0xff]
        %v1999 = vld [vmem:[%s1879 + $0x3b8] sm:$0xff]
        %v2000 = vld [vmem:[%s1879 + $0x3c0] sm:$0xff]
        %v2001 = vld [vmem:[%s1879 + $0x3c8] sm:$0xff]
        %v2002 = vld [vmem:[%s1879 + $0x3d0] sm:$0xff]
        %v2003 = vld [vmem:[%s1879 + $0x3d8] sm:$0xff]
        %v2004 = vld [vmem:[%s1879 + $0x3e0] sm:$0xff]
        %v2005 = vld [vmem:[%s1879 + $0x3e8] sm:$0xff]
        %v2006 = vld [vmem:[%s1879 + $0x3f0] sm:$0xff]
        %v2007 = vld [vmem:[%s1879 + $0x3f8] sm:$0xff]
        %v2008 = vld [vmem:[%s1879 + $0x400] sm:$0xff]
        %v2009 = vld [vmem:[%s1879 + $0x408] sm:$0xff]
        %v2010 = vld [vmem:[%s1879 + $0x410] sm:$0xff]
        %v2011 = vld [vmem:[%s1879 + $0x418] sm:$0xff]
        %v2012 = vld [vmem:[%s1879 + $0x420] sm:$0xff]
        %v2013 = vld [vmem:[%s1879 + $0x428] sm:$0xff]
        %v2014 = vld [vmem:[%s1879 + $0x430] sm:$0xff]
        %v2015 = vld [vmem:[%s1879 + $0x438] sm:$0xff]
        %v2016 = vld [vmem:[%s1879 + $0x440] sm:$0xff]
        %v2017 = vld [vmem:[%s1879 + $0x448] sm:$0xff]
        %v2018 = vld [vmem:[%s1879 + $0x450] sm:$0xff]
        %v2019 = vld [vmem:[%s1879 + $0x458] sm:$0xff]
        %v2020 = vld [vmem:[%s1879 + $0x460] sm:$0xff]
        %v2021 = vld [vmem:[%s1879 + $0x468] sm:$0xff]
        %v2022 = vld [vmem:[%s1879 + $0x470] sm:$0xff]
        %v2023 = vld [vmem:[%s1879 + $0x478] sm:$0xff]
        %v2024 = vld [vmem:[%s1879 + $0x480] sm:$0xff]
        %v2025 = vld [vmem:[%s1879 + $0x488] sm:$0xff]
        %v2026 = vld [vmem:[%s1879 + $0x490] sm:$0xff]
        %v2027 = vld [vmem:[%s1879 + $0x498] sm:$0xff]
        %v2028 = vld [vmem:[%s1879 + $0x4a0] sm:$0xff]
        %v2029 = vld [vmem:[%s1879 + $0x4a8] sm:$0xff]
        %v2030 = vld [vmem:[%s1879 + $0x4b0] sm:$0xff]
        %v2031 = vld [vmem:[%s1879 + $0x4b8] sm:$0xff]
        %v2032 = vld [vmem:[%s1879 + $0x4c0] sm:$0xff]
        %v2033 = vld [vmem:[%s1879 + $0x4c8] sm:$0xff]
        %v2034 = vld [vmem:[%s1879 + $0x4d0] sm:$0xff]
        %v2035 = vld [vmem:[%s1879 + $0x4d8] sm:$0xff]
        %v2036 = vld [vmem:[%s1879 + $0x4e0] sm:$0xff]
        %v2037 = vld [vmem:[%s1879 + $0x4e8] sm:$0xff]
        %v2038 = vld [vmem:[%s1879 + $0x4f0] sm:$0xff]
        %v2039 = vld [vmem:[%s1879 + $0x4f8] sm:$0xff]
        %v2040 = vld [vmem:[%s1879 + $0x500] sm:$0xff]
        %v2041 = vld [vmem:[%s1879 + $0x508] sm:$0xff]
        %v2042 = vld [vmem:[%s1879 + $0x510] sm:$0xff]
        %v2043 = vld [vmem:[%s1879 + $0x518] sm:$0xff]
        %v2044 = vld [vmem:[%s1879 + $0x520] sm:$0xff]
        %v2045 = vld [vmem:[%s1879 + $0x528] sm:$0xff]
        %v2046 = vld [vmem:[%s1879 + $0x530] sm:$0xff]
        %v2047 = vld [vmem:[%s1879 + $0x538] sm:$0xff]
        %v2048 = vld [vmem:[%s1879 + $0x540] sm:$0xff]
        %v2049 = vld [vmem:[%s1879 + $0x548] sm:$0xff]
        %v2050 = vld [vmem:[%s1879 + $0x550] sm:$0xff]
        %v2051 = vld [vmem:[%s1879 + $0x558] sm:$0xff]
        %v2052 = vld [vmem:[%s1879 + $0x560] sm:$0xff]
        %v2053 = vld [vmem:[%s1879 + $0x568] sm:$0xff]
        %v2054 = vld [vmem:[%s1879 + $0x570] sm:$0xff]
        %v2055 = vld [vmem:[%s1879 + $0x578] sm:$0xff]
        %v2056 = vld [vmem:[%s1879 + $0x580] sm:$0xff]
        %v2057 = vld [vmem:[%s1879 + $0x588] sm:$0xff]
        %v2058 = vld [vmem:[%s1879 + $0x590] sm:$0xff]
        %v2059 = vld [vmem:[%s1879 + $0x598] sm:$0xff]
        %v2060 = vld [vmem:[%s1879 + $0x5a0] sm:$0xff]
        %v2061 = vld [vmem:[%s1879 + $0x5a8] sm:$0xff]
        %v2062 = vld [vmem:[%s1879 + $0x5b0] sm:$0xff]
        %v2063 = vld [vmem:[%s1879 + $0x5b8] sm:$0xff]
        %v2064 = vld [vmem:[%s1879 + $0x5c0] sm:$0xff]
        %v2065 = vld [vmem:[%s1879 + $0x5c8] sm:$0xff]
        %v2066 = vld [vmem:[%s1879 + $0x5d0] sm:$0xff]
        %v2067 = vld [vmem:[%s1879 + $0x5d8] sm:$0xff]
        %v2068 = vld [vmem:[%s1879 + $0x5e0] sm:$0xff]
        %v2069 = vld [vmem:[%s1879 + $0x5e8] sm:$0xff]
        %v2070 = vld [vmem:[%s1879 + $0x5f0] sm:$0xff]
        %v2071 = vld [vmem:[%s1879 + $0x5f8] sm:$0xff]
        %v2072 = vld [vmem:[%s1879 + $0x600] sm:$0xff]
        %v2073 = vld [vmem:[%s1879 + $0x608] sm:$0xff]
        %v2074 = vld [vmem:[%s1879 + $0x610] sm:$0xff]
        %v2075 = vld [vmem:[%s1879 + $0x618] sm:$0xff]
        %v2076 = vld [vmem:[%s1879 + $0x620] sm:$0xff]
        %v2077 = vld [vmem:[%s1879 + $0x628] sm:$0xff]
        %v2078 = vld [vmem:[%s1879 + $0x630] sm:$0xff]
        %v2079 = vld [vmem:[%s1879 + $0x638] sm:$0xff]
        %v2080 = vld [vmem:[%s1879 + $0x640] sm:$0xff]
        %v2081 = vld [vmem:[%s1879 + $0x648] sm:$0xff]
        %v2082 = vld [vmem:[%s1879 + $0x650] sm:$0xff]
        %v2083 = vld [vmem:[%s1879 + $0x658] sm:$0xff]
        %v2084 = vld [vmem:[%s1879 + $0x660] sm:$0xff]
        %v2085 = vld [vmem:[%s1879 + $0x668] sm:$0xff]
        %v2086 = vld [vmem:[%s1879 + $0x670] sm:$0xff]
        %v2087 = vld [vmem:[%s1879 + $0x678] sm:$0xff]
        %v2088 = vld [vmem:[%s1879 + $0x680] sm:$0xff]
        %v2089 = vld [vmem:[%s1879 + $0x688] sm:$0xff]
        %v2090 = vld [vmem:[%s1879 + $0x690] sm:$0xff]
        %v2091 = vld [vmem:[%s1879 + $0x698] sm:$0xff]
        %v2092 = vld [vmem:[%s1879 + $0x6a0] sm:$0xff]
        %v2093 = vld [vmem:[%s1879 + $0x6a8] sm:$0xff]
        %v2094 = vld [vmem:[%s1879 + $0x6b0] sm:$0xff]
        %v2095 = vld [vmem:[%s1879 + $0x6b8] sm:$0xff]
        %v2096 = vld [vmem:[%s1879 + $0x6c0] sm:$0xff]
        %v2097 = vld [vmem:[%s1879 + $0x6c8] sm:$0xff]
        %v2098 = vld [vmem:[%s1879 + $0x6d0] sm:$0xff]
        %v2099 = vld [vmem:[%s1879 + $0x6d8] sm:$0xff]
        %v2100 = vld [vmem:[%s1879 + $0x6e0] sm:$0xff]
        %v2101 = vld [vmem:[%s1879 + $0x6e8] sm:$0xff]
        %v2102 = vld [vmem:[%s1879 + $0x6f0] sm:$0xff]
        %v2103 = vld [vmem:[%s1879 + $0x6f8] sm:$0xff]
        %v2105 = vperm.slane %v1351, 0
        %v2106 = vperm.slane %v1351, 1
        %v2107 = vperm.slane %v1351, 2
        %v2108 = vperm.slane %v1351, 3
        %v2109 = vperm.slane %v1351, 4
        %v2110 = vperm.slane %v1351, 5
        %v2111 = vperm.slane %v1351, 6
        %2119 = vmatpush.msra.mxu0 %v1985
        %2120 = vmatpush.msra.mxu0 %v1978
        %2121 = vmatpush.msra.mxu0 %v1971
        %2122 = vmatpush.msra.mxu0 %v1964
        %2123 = vmatpush.msra.mxu0 %v1957
        %2124 = vmatpush.msra.mxu0 %v1950
        %2125 = vmatpush.msra.mxu0 %v1943
        %2126 = vmatpush.msra.mxu0 %v1936
        %2127 = vmatpush.msra.mxu0 %v1929
        %2128 = vmatpush.msra.mxu0 %v1922
        %2129 = vmatpush.msra.mxu0 %v1915
        %2130 = vmatpush.msra.mxu0 %v1908
        %2131 = vmatpush.msra.mxu0 %v1901
        %2132 = vmatpush.msra.mxu0 %v1894
        %2133 = vmatpush.msra.mxu0 %v1887
        %2134 = vmatpush.msra.mxu0 %v1880
        %2135 = vmatmul.f32.gmra.mxu0 %v264
        %v2136 = vpop.f32.mrf.mxu0
        %v2137 = vadd.f32 %v2105, %v2136
        %2138 = vdwg.mxu0
        %2139 = vmatpush.msra.mxu0 %v2097
        %2140 = vmatpush.msra.mxu0 %v2090
        %2141 = vmatpush.msra.mxu0 %v2083
        %2142 = vmatpush.msra.mxu0 %v2076
        %2143 = vmatpush.msra.mxu0 %v2069
        %2144 = vmatpush.msra.mxu0 %v2062
        %2145 = vmatpush.msra.mxu0 %v2055
        %2146 = vmatpush.msra.mxu0 %v2048
        %2147 = vmatpush.msra.mxu0 %v2041
        %2148 = vmatpush.msra.mxu0 %v2034
        %2149 = vmatpush.msra.mxu0 %v2027
        %2150 = vmatpush.msra.mxu0 %v2020
        %2151 = vmatpush.msra.mxu0 %v2013
        %2152 = vmatpush.msra.mxu0 %v2006
        %2153 = vmatpush.msra.mxu0 %v1999
        %2154 = vmatpush.msra.mxu0 %v1992
        %2155 = vmatmul.f32.gmra.mxu0 %v265
        %v2156 = vpop.f32.mrf.mxu0
        %v2157 = vadd.f32 %v2137, %v2156
        %2158 = vdwg.mxu0
        %2159 = vmatpush.msra.mxu0 %v1986
        %2160 = vmatpush.msra.mxu0 %v1979
        %2161 = vmatpush.msra.mxu0 %v1972
        %2162 = vmatpush.msra.mxu0 %v1965
        %2163 = vmatpush.msra.mxu0 %v1958
        %2164 = vmatpush.msra.mxu0 %v1951
        %2165 = vmatpush.msra.mxu0 %v1944
        %2166 = vmatpush.msra.mxu0 %v1937
        %2167 = vmatpush.msra.mxu0 %v1930
        %2168 = vmatpush.msra.mxu0 %v1923
        %2169 = vmatpush.msra.mxu0 %v1916
        %2170 = vmatpush.msra.mxu0 %v1909
        %2171 = vmatpush.msra.mxu0 %v1902
        %2172 = vmatpush.msra.mxu0 %v1895
        %2173 = vmatpush.msra.mxu0 %v1888
        %2174 = vmatpush.msra.mxu0 %v1881
        %2175 = vmatmul.f32.gmra.mxu0 %v264
        %v2176 = vpop.f32.mrf.mxu0
        %v2177 = vadd.f32 %v2106, %v2176
        %2178 = vdwg.mxu0
        %2179 = vmatpush.msra.mxu0 %v2098
        %2180 = vmatpush.msra.mxu0 %v2091
        %2181 = vmatpush.msra.mxu0 %v2084
        %2182 = vmatpush.msra.mxu0 %v2077
        %2183 = vmatpush.msra.mxu0 %v2070
        %2184 = vmatpush.msra.mxu0 %v2063
        %2185 = vmatpush.msra.mxu0 %v2056
        %2186 = vmatpush.msra.mxu0 %v2049
        %2187 = vmatpush.msra.mxu0 %v2042
        %2188 = vmatpush.msra.mxu0 %v2035
        %2189 = vmatpush.msra.mxu0 %v2028
        %2190 = vmatpush.msra.mxu0 %v2021
        %2191 = vmatpush.msra.mxu0 %v2014
        %2192 = vmatpush.msra.mxu0 %v2007
        %2193 = vmatpush.msra.mxu0 %v2000
        %2194 = vmatpush.msra.mxu0 %v1993
        %2195 = vmatmul.f32.gmra.mxu0 %v265
        %v2196 = vpop.f32.mrf.mxu0
        %v2197 = vadd.f32 %v2177, %v2196
        %2198 = vdwg.mxu0
        %2199 = vmatpush.msra.mxu0 %v1987
        %2200 = vmatpush.msra.mxu0 %v1980
        %2201 = vmatpush.msra.mxu0 %v1973
        %2202 = vmatpush.msra.mxu0 %v1966
        %2203 = vmatpush.msra.mxu0 %v1959
        %2204 = vmatpush.msra.mxu0 %v1952
        %2205 = vmatpush.msra.mxu0 %v1945
        %2206 = vmatpush.msra.mxu0 %v1938
        %2207 = vmatpush.msra.mxu0 %v1931
        %2208 = vmatpush.msra.mxu0 %v1924
        %2209 = vmatpush.msra.mxu0 %v1917
        %2210 = vmatpush.msra.mxu0 %v1910
        %2211 = vmatpush.msra.mxu0 %v1903
        %2212 = vmatpush.msra.mxu0 %v1896
        %2213 = vmatpush.msra.mxu0 %v1889
        %2214 = vmatpush.msra.mxu0 %v1882
        %2215 = vmatmul.f32.gmra.mxu0 %v264
        %v2216 = vpop.f32.mrf.mxu0
        %v2217 = vadd.f32 %v2107, %v2216
        %2218 = vdwg.mxu0
        %2219 = vmatpush.msra.mxu0 %v2099
        %2220 = vmatpush.msra.mxu0 %v2092
        %2221 = vmatpush.msra.mxu0 %v2085
        %2222 = vmatpush.msra.mxu0 %v2078
        %2223 = vmatpush.msra.mxu0 %v2071
        %2224 = vmatpush.msra.mxu0 %v2064
        %2225 = vmatpush.msra.mxu0 %v2057
        %2226 = vmatpush.msra.mxu0 %v2050
        %2227 = vmatpush.msra.mxu0 %v2043
        %2228 = vmatpush.msra.mxu0 %v2036
        %2229 = vmatpush.msra.mxu0 %v2029
        %2230 = vmatpush.msra.mxu0 %v2022
        %2231 = vmatpush.msra.mxu0 %v2015
        %2232 = vmatpush.msra.mxu0 %v2008
        %2233 = vmatpush.msra.mxu0 %v2001
        %2234 = vmatpush.msra.mxu0 %v1994
        %2235 = vmatmul.f32.gmra.mxu0 %v265
        %v2236 = vpop.f32.mrf.mxu0
        %v2237 = vadd.f32 %v2217, %v2236
        %2238 = vdwg.mxu0
        %2239 = vmatpush.msra.mxu0 %v1988
        %2240 = vmatpush.msra.mxu0 %v1981
        %2241 = vmatpush.msra.mxu0 %v1974
        %2242 = vmatpush.msra.mxu0 %v1967
        %2243 = vmatpush.msra.mxu0 %v1960
        %2244 = vmatpush.msra.mxu0 %v1953
        %2245 = vmatpush.msra.mxu0 %v1946
        %2246 = vmatpush.msra.mxu0 %v1939
        %2247 = vmatpush.msra.mxu0 %v1932
        %2248 = vmatpush.msra.mxu0 %v1925
        %2249 = vmatpush.msra.mxu0 %v1918
        %2250 = vmatpush.msra.mxu0 %v1911
        %2251 = vmatpush.msra.mxu0 %v1904
        %2252 = vmatpush.msra.mxu0 %v1897
        %2253 = vmatpush.msra.mxu0 %v1890
        %2254 = vmatpush.msra.mxu0 %v1883
        %2255 = vmatmul.f32.gmra.mxu0 %v264
        %v2256 = vpop.f32.mrf.mxu0
        %v2257 = vadd.f32 %v2108, %v2256
        %2258 = vdwg.mxu0
        %2259 = vmatpush.msra.mxu0 %v2100
        %2260 = vmatpush.msra.mxu0 %v2093
        %2261 = vmatpush.msra.mxu0 %v2086
        %2262 = vmatpush.msra.mxu0 %v2079
        %2263 = vmatpush.msra.mxu0 %v2072
        %2264 = vmatpush.msra.mxu0 %v2065
        %2265 = vmatpush.msra.mxu0 %v2058
        %2266 = vmatpush.msra.mxu0 %v2051
        %2267 = vmatpush.msra.mxu0 %v2044
        %2268 = vmatpush.msra.mxu0 %v2037
        %2269 = vmatpush.msra.mxu0 %v2030
        %2270 = vmatpush.msra.mxu0 %v2023
        %2271 = vmatpush.msra.mxu0 %v2016
        %2272 = vmatpush.msra.mxu0 %v2009
        %2273 = vmatpush.msra.mxu0 %v2002
        %2274 = vmatpush.msra.mxu0 %v1995
        %2275 = vmatmul.f32.gmra.mxu0 %v265
        %v2276 = vpop.f32.mrf.mxu0
        %v2277 = vadd.f32 %v2257, %v2276
        %2278 = vdwg.mxu0
        %2279 = vmatpush.msra.mxu0 %v1989
        %2280 = vmatpush.msra.mxu0 %v1982
        %2281 = vmatpush.msra.mxu0 %v1975
        %2282 = vmatpush.msra.mxu0 %v1968
        %2283 = vmatpush.msra.mxu0 %v1961
        %2284 = vmatpush.msra.mxu0 %v1954
        %2285 = vmatpush.msra.mxu0 %v1947
        %2286 = vmatpush.msra.mxu0 %v1940
        %2287 = vmatpush.msra.mxu0 %v1933
        %2288 = vmatpush.msra.mxu0 %v1926
        %2289 = vmatpush.msra.mxu0 %v1919
        %2290 = vmatpush.msra.mxu0 %v1912
        %2291 = vmatpush.msra.mxu0 %v1905
        %2292 = vmatpush.msra.mxu0 %v1898
        %2293 = vmatpush.msra.mxu0 %v1891
        %2294 = vmatpush.msra.mxu0 %v1884
        %2295 = vmatmul.f32.gmra.mxu0 %v264
        %v2296 = vpop.f32.mrf.mxu0
        %v2297 = vadd.f32 %v2109, %v2296
        %2298 = vdwg.mxu0
        %2299 = vmatpush.msra.mxu0 %v2101
        %2300 = vmatpush.msra.mxu0 %v2094
        %2301 = vmatpush.msra.mxu0 %v2087
        %2302 = vmatpush.msra.mxu0 %v2080
        %2303 = vmatpush.msra.mxu0 %v2073
        %2304 = vmatpush.msra.mxu0 %v2066
        %2305 = vmatpush.msra.mxu0 %v2059
        %2306 = vmatpush.msra.mxu0 %v2052
        %2307 = vmatpush.msra.mxu0 %v2045
        %2308 = vmatpush.msra.mxu0 %v2038
        %2309 = vmatpush.msra.mxu0 %v2031
        %2310 = vmatpush.msra.mxu0 %v2024
        %2311 = vmatpush.msra.mxu0 %v2017
        %2312 = vmatpush.msra.mxu0 %v2010
        %2313 = vmatpush.msra.mxu0 %v2003
        %2314 = vmatpush.msra.mxu0 %v1996
        %2315 = vmatmul.f32.gmra.mxu0 %v265
        %v2316 = vpop.f32.mrf.mxu0
        %v2317 = vadd.f32 %v2297, %v2316
        %2318 = vdwg.mxu0
        %2319 = vmatpush.msra.mxu0 %v1990
        %2320 = vmatpush.msra.mxu0 %v1983
        %2321 = vmatpush.msra.mxu0 %v1976
        %2322 = vmatpush.msra.mxu0 %v1969
        %2323 = vmatpush.msra.mxu0 %v1962
        %2324 = vmatpush.msra.mxu0 %v1955
        %2325 = vmatpush.msra.mxu0 %v1948
        %2326 = vmatpush.msra.mxu0 %v1941
        %2327 = vmatpush.msra.mxu0 %v1934
        %2328 = vmatpush.msra.mxu0 %v1927
        %2329 = vmatpush.msra.mxu0 %v1920
        %2330 = vmatpush.msra.mxu0 %v1913
        %2331 = vmatpush.msra.mxu0 %v1906
        %2332 = vmatpush.msra.mxu0 %v1899
        %2333 = vmatpush.msra.mxu0 %v1892
        %2334 = vmatpush.msra.mxu0 %v1885
        %2335 = vmatmul.f32.gmra.mxu0 %v264
        %v2336 = vpop.f32.mrf.mxu0
        %v2337 = vadd.f32 %v2110, %v2336
        %2338 = vdwg.mxu0
        %2339 = vmatpush.msra.mxu0 %v2102
        %2340 = vmatpush.msra.mxu0 %v2095
        %2341 = vmatpush.msra.mxu0 %v2088
        %2342 = vmatpush.msra.mxu0 %v2081
        %2343 = vmatpush.msra.mxu0 %v2074
        %2344 = vmatpush.msra.mxu0 %v2067
        %2345 = vmatpush.msra.mxu0 %v2060
        %2346 = vmatpush.msra.mxu0 %v2053
        %2347 = vmatpush.msra.mxu0 %v2046
        %2348 = vmatpush.msra.mxu0 %v2039
        %2349 = vmatpush.msra.mxu0 %v2032
        %2350 = vmatpush.msra.mxu0 %v2025
        %2351 = vmatpush.msra.mxu0 %v2018
        %2352 = vmatpush.msra.mxu0 %v2011
        %2353 = vmatpush.msra.mxu0 %v2004
        %2354 = vmatpush.msra.mxu0 %v1997
        %2355 = vmatmul.f32.gmra.mxu0 %v265
        %v2356 = vpop.f32.mrf.mxu0
        %v2357 = vadd.f32 %v2337, %v2356
        %2358 = vdwg.mxu0
        %2359 = vmatpush.msra.mxu0 %v1991
        %2360 = vmatpush.msra.mxu0 %v1984
        %2361 = vmatpush.msra.mxu0 %v1977
        %2362 = vmatpush.msra.mxu0 %v1970
        %2363 = vmatpush.msra.mxu0 %v1963
        %2364 = vmatpush.msra.mxu0 %v1956
        %2365 = vmatpush.msra.mxu0 %v1949
        %2366 = vmatpush.msra.mxu0 %v1942
        %2367 = vmatpush.msra.mxu0 %v1935
        %2368 = vmatpush.msra.mxu0 %v1928
        %2369 = vmatpush.msra.mxu0 %v1921
        %2370 = vmatpush.msra.mxu0 %v1914
        %2371 = vmatpush.msra.mxu0 %v1907
        %2372 = vmatpush.msra.mxu0 %v1900
        %2373 = vmatpush.msra.mxu0 %v1893
        %2374 = vmatpush.msra.mxu0 %v1886
        %2375 = vmatmul.f32.gmra.mxu0 %v264
        %v2376 = vpop.f32.mrf.mxu0
        %v2377 = vadd.f32 %v2111, %v2376
        %2378 = vdwg.mxu0
        %2379 = vmatpush.msra.mxu0 %v2103
        %2380 = vmatpush.msra.mxu0 %v2096
        %2381 = vmatpush.msra.mxu0 %v2089
        %2382 = vmatpush.msra.mxu0 %v2082
        %2383 = vmatpush.msra.mxu0 %v2075
        %2384 = vmatpush.msra.mxu0 %v2068
        %2385 = vmatpush.msra.mxu0 %v2061
        %2386 = vmatpush.msra.mxu0 %v2054
        %2387 = vmatpush.msra.mxu0 %v2047
        %2388 = vmatpush.msra.mxu0 %v2040
        %2389 = vmatpush.msra.mxu0 %v2033
        %2390 = vmatpush.msra.mxu0 %v2026
        %2391 = vmatpush.msra.mxu0 %v2019
        %2392 = vmatpush.msra.mxu0 %v2012
        %2393 = vmatpush.msra.mxu0 %v2005
        %2394 = vmatpush.msra.mxu0 %v1998
        %2395 = vmatmul.f32.gmra.mxu0 %v265
        %v2396 = vpop.f32.mrf.mxu0
        %v2397 = vadd.f32 %v2377, %v2396
        %2398 = vdwg.mxu0
        %v2399 = vtanh.pop %v2157
        %v2400 = vtanh.pop %v2197
        %v2401 = vtanh.pop %v2237
        %v2402 = vtanh.pop %v2277
        %v2403 = vtanh.pop %v2317
        %v2404 = vtanh.pop %v2357
        %v2405 = vtanh.pop %v2397
        %v2406 = vmul.f32 %v1872, %v2399
        %v2407 = vmul.f32 %v1873, %v2400
        %v2408 = vmul.f32 %v1874, %v2401
        %v2409 = vmul.f32 %v1875, %v2402
        %v2410 = vmul.f32 %v1876, %v2403
        %v2411 = vmul.f32 %v1877, %v2404
        %v2412 = vmul.f32 %v1878, %v2405
        %v2413 = vadd.f32 %v1337, %v2406
        %v2414 = vadd.f32 %v1338, %v2407
        %v2415 = vadd.f32 %v1339, %v2408
        %v2416 = vadd.f32 %v1340, %v2409
        %v2417 = vadd.f32 %v1341, %v2410
        %v2418 = vadd.f32 %v1342, %v2411
        %v2419 = vadd.f32 %v1343, %v2412
        %s2420 = scalar_lea.vmem %s269, 2 [#allocation8]
        %v2421 = vld [vmem:[%s2420] ss:$8 sm:$0xf]
        %v2422 = vld [vmem:[%s2420] ss:$8 sm:$0xf0]
        %v2423 = vor.u32 %v2421, %v2422
        %s2424 = scalar_lea.vmem %s269, 5 [#allocation8]
        %v2425 = vld [vmem:[%s2424] ss:$8 sm:$0xf]
        %v2426 = vld [vmem:[%s2424] ss:$8 sm:$0xf0]
        %v2427 = vor.u32 %v2425, %v2426
        %s2428 = scalar_lea.vmem %s228, 3584 [#allocation7]
        %v2429 = vld [vmem:[%s2428] sm:$0xff]
        %v2430 = vld [vmem:[%s2428 + $0x8] sm:$0xff]
        %v2431 = vld [vmem:[%s2428 + $0x10] sm:$0xff]
        %v2432 = vld [vmem:[%s2428 + $0x18] sm:$0xff]
        %v2433 = vld [vmem:[%s2428 + $0x20] sm:$0xff]
        %v2434 = vld [vmem:[%s2428 + $0x28] sm:$0xff]
        %v2435 = vld [vmem:[%s2428 + $0x30] sm:$0xff]
        %v2436 = vld [vmem:[%s2428 + $0x38] sm:$0xff]
        %v2437 = vld [vmem:[%s2428 + $0x40] sm:$0xff]
        %v2438 = vld [vmem:[%s2428 + $0x48] sm:$0xff]
        %v2439 = vld [vmem:[%s2428 + $0x50] sm:$0xff]
        %v2440 = vld [vmem:[%s2428 + $0x58] sm:$0xff]
        %v2441 = vld [vmem:[%s2428 + $0x60] sm:$0xff]
        %v2442 = vld [vmem:[%s2428 + $0x68] sm:$0xff]
        %v2443 = vld [vmem:[%s2428 + $0x70] sm:$0xff]
        %v2444 = vld [vmem:[%s2428 + $0x78] sm:$0xff]
        %v2445 = vld [vmem:[%s2428 + $0x80] sm:$0xff]
        %v2446 = vld [vmem:[%s2428 + $0x88] sm:$0xff]
        %v2447 = vld [vmem:[%s2428 + $0x90] sm:$0xff]
        %v2448 = vld [vmem:[%s2428 + $0x98] sm:$0xff]
        %v2449 = vld [vmem:[%s2428 + $0xa0] sm:$0xff]
        %v2450 = vld [vmem:[%s2428 + $0xa8] sm:$0xff]
        %v2451 = vld [vmem:[%s2428 + $0xb0] sm:$0xff]
        %v2452 = vld [vmem:[%s2428 + $0xb8] sm:$0xff]
        %v2453 = vld [vmem:[%s2428 + $0xc0] sm:$0xff]
        %v2454 = vld [vmem:[%s2428 + $0xc8] sm:$0xff]
        %v2455 = vld [vmem:[%s2428 + $0xd0] sm:$0xff]
        %v2456 = vld [vmem:[%s2428 + $0xd8] sm:$0xff]
        %v2457 = vld [vmem:[%s2428 + $0xe0] sm:$0xff]
        %v2458 = vld [vmem:[%s2428 + $0xe8] sm:$0xff]
        %v2459 = vld [vmem:[%s2428 + $0xf0] sm:$0xff]
        %v2460 = vld [vmem:[%s2428 + $0xf8] sm:$0xff]
        %v2461 = vld [vmem:[%s2428 + $0x100] sm:$0xff]
        %v2462 = vld [vmem:[%s2428 + $0x108] sm:$0xff]
        %v2463 = vld [vmem:[%s2428 + $0x110] sm:$0xff]
        %v2464 = vld [vmem:[%s2428 + $0x118] sm:$0xff]
        %v2465 = vld [vmem:[%s2428 + $0x120] sm:$0xff]
        %v2466 = vld [vmem:[%s2428 + $0x128] sm:$0xff]
        %v2467 = vld [vmem:[%s2428 + $0x130] sm:$0xff]
        %v2468 = vld [vmem:[%s2428 + $0x138] sm:$0xff]
        %v2469 = vld [vmem:[%s2428 + $0x140] sm:$0xff]
        %v2470 = vld [vmem:[%s2428 + $0x148] sm:$0xff]
        %v2471 = vld [vmem:[%s2428 + $0x150] sm:$0xff]
        %v2472 = vld [vmem:[%s2428 + $0x158] sm:$0xff]
        %v2473 = vld [vmem:[%s2428 + $0x160] sm:$0xff]
        %v2474 = vld [vmem:[%s2428 + $0x168] sm:$0xff]
        %v2475 = vld [vmem:[%s2428 + $0x170] sm:$0xff]
        %v2476 = vld [vmem:[%s2428 + $0x178] sm:$0xff]
        %v2477 = vld [vmem:[%s2428 + $0x180] sm:$0xff]
        %v2478 = vld [vmem:[%s2428 + $0x188] sm:$0xff]
        %v2479 = vld [vmem:[%s2428 + $0x190] sm:$0xff]
        %v2480 = vld [vmem:[%s2428 + $0x198] sm:$0xff]
        %v2481 = vld [vmem:[%s2428 + $0x1a0] sm:$0xff]
        %v2482 = vld [vmem:[%s2428 + $0x1a8] sm:$0xff]
        %v2483 = vld [vmem:[%s2428 + $0x1b0] sm:$0xff]
        %v2484 = vld [vmem:[%s2428 + $0x1b8] sm:$0xff]
        %v2485 = vld [vmem:[%s2428 + $0x1c0] sm:$0xff]
        %v2486 = vld [vmem:[%s2428 + $0x1c8] sm:$0xff]
        %v2487 = vld [vmem:[%s2428 + $0x1d0] sm:$0xff]
        %v2488 = vld [vmem:[%s2428 + $0x1d8] sm:$0xff]
        %v2489 = vld [vmem:[%s2428 + $0x1e0] sm:$0xff]
        %v2490 = vld [vmem:[%s2428 + $0x1e8] sm:$0xff]
        %v2491 = vld [vmem:[%s2428 + $0x1f0] sm:$0xff]
        %v2492 = vld [vmem:[%s2428 + $0x1f8] sm:$0xff]
        %v2493 = vld [vmem:[%s2428 + $0x200] sm:$0xff]
        %v2494 = vld [vmem:[%s2428 + $0x208] sm:$0xff]
        %v2495 = vld [vmem:[%s2428 + $0x210] sm:$0xff]
        %v2496 = vld [vmem:[%s2428 + $0x218] sm:$0xff]
        %v2497 = vld [vmem:[%s2428 + $0x220] sm:$0xff]
        %v2498 = vld [vmem:[%s2428 + $0x228] sm:$0xff]
        %v2499 = vld [vmem:[%s2428 + $0x230] sm:$0xff]
        %v2500 = vld [vmem:[%s2428 + $0x238] sm:$0xff]
        %v2501 = vld [vmem:[%s2428 + $0x240] sm:$0xff]
        %v2502 = vld [vmem:[%s2428 + $0x248] sm:$0xff]
        %v2503 = vld [vmem:[%s2428 + $0x250] sm:$0xff]
        %v2504 = vld [vmem:[%s2428 + $0x258] sm:$0xff]
        %v2505 = vld [vmem:[%s2428 + $0x260] sm:$0xff]
        %v2506 = vld [vmem:[%s2428 + $0x268] sm:$0xff]
        %v2507 = vld [vmem:[%s2428 + $0x270] sm:$0xff]
        %v2508 = vld [vmem:[%s2428 + $0x278] sm:$0xff]
        %v2509 = vld [vmem:[%s2428 + $0x280] sm:$0xff]
        %v2510 = vld [vmem:[%s2428 + $0x288] sm:$0xff]
        %v2511 = vld [vmem:[%s2428 + $0x290] sm:$0xff]
        %v2512 = vld [vmem:[%s2428 + $0x298] sm:$0xff]
        %v2513 = vld [vmem:[%s2428 + $0x2a0] sm:$0xff]
        %v2514 = vld [vmem:[%s2428 + $0x2a8] sm:$0xff]
        %v2515 = vld [vmem:[%s2428 + $0x2b0] sm:$0xff]
        %v2516 = vld [vmem:[%s2428 + $0x2b8] sm:$0xff]
        %v2517 = vld [vmem:[%s2428 + $0x2c0] sm:$0xff]
        %v2518 = vld [vmem:[%s2428 + $0x2c8] sm:$0xff]
        %v2519 = vld [vmem:[%s2428 + $0x2d0] sm:$0xff]
        %v2520 = vld [vmem:[%s2428 + $0x2d8] sm:$0xff]
        %v2521 = vld [vmem:[%s2428 + $0x2e0] sm:$0xff]
        %v2522 = vld [vmem:[%s2428 + $0x2e8] sm:$0xff]
        %v2523 = vld [vmem:[%s2428 + $0x2f0] sm:$0xff]
        %v2524 = vld [vmem:[%s2428 + $0x2f8] sm:$0xff]
        %v2525 = vld [vmem:[%s2428 + $0x300] sm:$0xff]
        %v2526 = vld [vmem:[%s2428 + $0x308] sm:$0xff]
        %v2527 = vld [vmem:[%s2428 + $0x310] sm:$0xff]
        %v2528 = vld [vmem:[%s2428 + $0x318] sm:$0xff]
        %v2529 = vld [vmem:[%s2428 + $0x320] sm:$0xff]
        %v2530 = vld [vmem:[%s2428 + $0x328] sm:$0xff]
        %v2531 = vld [vmem:[%s2428 + $0x330] sm:$0xff]
        %v2532 = vld [vmem:[%s2428 + $0x338] sm:$0xff]
        %v2533 = vld [vmem:[%s2428 + $0x340] sm:$0xff]
        %v2534 = vld [vmem:[%s2428 + $0x348] sm:$0xff]
        %v2535 = vld [vmem:[%s2428 + $0x350] sm:$0xff]
        %v2536 = vld [vmem:[%s2428 + $0x358] sm:$0xff]
        %v2537 = vld [vmem:[%s2428 + $0x360] sm:$0xff]
        %v2538 = vld [vmem:[%s2428 + $0x368] sm:$0xff]
        %v2539 = vld [vmem:[%s2428 + $0x370] sm:$0xff]
        %v2540 = vld [vmem:[%s2428 + $0x378] sm:$0xff]
        %v2541 = vld [vmem:[%s2428 + $0x380] sm:$0xff]
        %v2542 = vld [vmem:[%s2428 + $0x388] sm:$0xff]
        %v2543 = vld [vmem:[%s2428 + $0x390] sm:$0xff]
        %v2544 = vld [vmem:[%s2428 + $0x398] sm:$0xff]
        %v2545 = vld [vmem:[%s2428 + $0x3a0] sm:$0xff]
        %v2546 = vld [vmem:[%s2428 + $0x3a8] sm:$0xff]
        %v2547 = vld [vmem:[%s2428 + $0x3b0] sm:$0xff]
        %v2548 = vld [vmem:[%s2428 + $0x3b8] sm:$0xff]
        %v2549 = vld [vmem:[%s2428 + $0x3c0] sm:$0xff]
        %v2550 = vld [vmem:[%s2428 + $0x3c8] sm:$0xff]
        %v2551 = vld [vmem:[%s2428 + $0x3d0] sm:$0xff]
        %v2552 = vld [vmem:[%s2428 + $0x3d8] sm:$0xff]
        %v2553 = vld [vmem:[%s2428 + $0x3e0] sm:$0xff]
        %v2554 = vld [vmem:[%s2428 + $0x3e8] sm:$0xff]
        %v2555 = vld [vmem:[%s2428 + $0x3f0] sm:$0xff]
        %v2556 = vld [vmem:[%s2428 + $0x3f8] sm:$0xff]
        %v2557 = vld [vmem:[%s2428 + $0x400] sm:$0xff]
        %v2558 = vld [vmem:[%s2428 + $0x408] sm:$0xff]
        %v2559 = vld [vmem:[%s2428 + $0x410] sm:$0xff]
        %v2560 = vld [vmem:[%s2428 + $0x418] sm:$0xff]
        %v2561 = vld [vmem:[%s2428 + $0x420] sm:$0xff]
        %v2562 = vld [vmem:[%s2428 + $0x428] sm:$0xff]
        %v2563 = vld [vmem:[%s2428 + $0x430] sm:$0xff]
        %v2564 = vld [vmem:[%s2428 + $0x438] sm:$0xff]
        %v2565 = vld [vmem:[%s2428 + $0x440] sm:$0xff]
        %v2566 = vld [vmem:[%s2428 + $0x448] sm:$0xff]
        %v2567 = vld [vmem:[%s2428 + $0x450] sm:$0xff]
        %v2568 = vld [vmem:[%s2428 + $0x458] sm:$0xff]
        %v2569 = vld [vmem:[%s2428 + $0x460] sm:$0xff]
        %v2570 = vld [vmem:[%s2428 + $0x468] sm:$0xff]
        %v2571 = vld [vmem:[%s2428 + $0x470] sm:$0xff]
        %v2572 = vld [vmem:[%s2428 + $0x478] sm:$0xff]
        %v2573 = vld [vmem:[%s2428 + $0x480] sm:$0xff]
        %v2574 = vld [vmem:[%s2428 + $0x488] sm:$0xff]
        %v2575 = vld [vmem:[%s2428 + $0x490] sm:$0xff]
        %v2576 = vld [vmem:[%s2428 + $0x498] sm:$0xff]
        %v2577 = vld [vmem:[%s2428 + $0x4a0] sm:$0xff]
        %v2578 = vld [vmem:[%s2428 + $0x4a8] sm:$0xff]
        %v2579 = vld [vmem:[%s2428 + $0x4b0] sm:$0xff]
        %v2580 = vld [vmem:[%s2428 + $0x4b8] sm:$0xff]
        %v2581 = vld [vmem:[%s2428 + $0x4c0] sm:$0xff]
        %v2582 = vld [vmem:[%s2428 + $0x4c8] sm:$0xff]
        %v2583 = vld [vmem:[%s2428 + $0x4d0] sm:$0xff]
        %v2584 = vld [vmem:[%s2428 + $0x4d8] sm:$0xff]
        %v2585 = vld [vmem:[%s2428 + $0x4e0] sm:$0xff]
        %v2586 = vld [vmem:[%s2428 + $0x4e8] sm:$0xff]
        %v2587 = vld [vmem:[%s2428 + $0x4f0] sm:$0xff]
        %v2588 = vld [vmem:[%s2428 + $0x4f8] sm:$0xff]
        %v2589 = vld [vmem:[%s2428 + $0x500] sm:$0xff]
        %v2590 = vld [vmem:[%s2428 + $0x508] sm:$0xff]
        %v2591 = vld [vmem:[%s2428 + $0x510] sm:$0xff]
        %v2592 = vld [vmem:[%s2428 + $0x518] sm:$0xff]
        %v2593 = vld [vmem:[%s2428 + $0x520] sm:$0xff]
        %v2594 = vld [vmem:[%s2428 + $0x528] sm:$0xff]
        %v2595 = vld [vmem:[%s2428 + $0x530] sm:$0xff]
        %v2596 = vld [vmem:[%s2428 + $0x538] sm:$0xff]
        %v2597 = vld [vmem:[%s2428 + $0x540] sm:$0xff]
        %v2598 = vld [vmem:[%s2428 + $0x548] sm:$0xff]
        %v2599 = vld [vmem:[%s2428 + $0x550] sm:$0xff]
        %v2600 = vld [vmem:[%s2428 + $0x558] sm:$0xff]
        %v2601 = vld [vmem:[%s2428 + $0x560] sm:$0xff]
        %v2602 = vld [vmem:[%s2428 + $0x568] sm:$0xff]
        %v2603 = vld [vmem:[%s2428 + $0x570] sm:$0xff]
        %v2604 = vld [vmem:[%s2428 + $0x578] sm:$0xff]
        %v2605 = vld [vmem:[%s2428 + $0x580] sm:$0xff]
        %v2606 = vld [vmem:[%s2428 + $0x588] sm:$0xff]
        %v2607 = vld [vmem:[%s2428 + $0x590] sm:$0xff]
        %v2608 = vld [vmem:[%s2428 + $0x598] sm:$0xff]
        %v2609 = vld [vmem:[%s2428 + $0x5a0] sm:$0xff]
        %v2610 = vld [vmem:[%s2428 + $0x5a8] sm:$0xff]
        %v2611 = vld [vmem:[%s2428 + $0x5b0] sm:$0xff]
        %v2612 = vld [vmem:[%s2428 + $0x5b8] sm:$0xff]
        %v2613 = vld [vmem:[%s2428 + $0x5c0] sm:$0xff]
        %v2614 = vld [vmem:[%s2428 + $0x5c8] sm:$0xff]
        %v2615 = vld [vmem:[%s2428 + $0x5d0] sm:$0xff]
        %v2616 = vld [vmem:[%s2428 + $0x5d8] sm:$0xff]
        %v2617 = vld [vmem:[%s2428 + $0x5e0] sm:$0xff]
        %v2618 = vld [vmem:[%s2428 + $0x5e8] sm:$0xff]
        %v2619 = vld [vmem:[%s2428 + $0x5f0] sm:$0xff]
        %v2620 = vld [vmem:[%s2428 + $0x5f8] sm:$0xff]
        %v2621 = vld [vmem:[%s2428 + $0x600] sm:$0xff]
        %v2622 = vld [vmem:[%s2428 + $0x608] sm:$0xff]
        %v2623 = vld [vmem:[%s2428 + $0x610] sm:$0xff]
        %v2624 = vld [vmem:[%s2428 + $0x618] sm:$0xff]
        %v2625 = vld [vmem:[%s2428 + $0x620] sm:$0xff]
        %v2626 = vld [vmem:[%s2428 + $0x628] sm:$0xff]
        %v2627 = vld [vmem:[%s2428 + $0x630] sm:$0xff]
        %v2628 = vld [vmem:[%s2428 + $0x638] sm:$0xff]
        %v2629 = vld [vmem:[%s2428 + $0x640] sm:$0xff]
        %v2630 = vld [vmem:[%s2428 + $0x648] sm:$0xff]
        %v2631 = vld [vmem:[%s2428 + $0x650] sm:$0xff]
        %v2632 = vld [vmem:[%s2428 + $0x658] sm:$0xff]
        %v2633 = vld [vmem:[%s2428 + $0x660] sm:$0xff]
        %v2634 = vld [vmem:[%s2428 + $0x668] sm:$0xff]
        %v2635 = vld [vmem:[%s2428 + $0x670] sm:$0xff]
        %v2636 = vld [vmem:[%s2428 + $0x678] sm:$0xff]
        %v2637 = vld [vmem:[%s2428 + $0x680] sm:$0xff]
        %v2638 = vld [vmem:[%s2428 + $0x688] sm:$0xff]
        %v2639 = vld [vmem:[%s2428 + $0x690] sm:$0xff]
        %v2640 = vld [vmem:[%s2428 + $0x698] sm:$0xff]
        %v2641 = vld [vmem:[%s2428 + $0x6a0] sm:$0xff]
        %v2642 = vld [vmem:[%s2428 + $0x6a8] sm:$0xff]
        %v2643 = vld [vmem:[%s2428 + $0x6b0] sm:$0xff]
        %v2644 = vld [vmem:[%s2428 + $0x6b8] sm:$0xff]
        %v2645 = vld [vmem:[%s2428 + $0x6c0] sm:$0xff]
        %v2646 = vld [vmem:[%s2428 + $0x6c8] sm:$0xff]
        %v2647 = vld [vmem:[%s2428 + $0x6d0] sm:$0xff]
        %v2648 = vld [vmem:[%s2428 + $0x6d8] sm:$0xff]
        %v2649 = vld [vmem:[%s2428 + $0x6e0] sm:$0xff]
        %v2650 = vld [vmem:[%s2428 + $0x6e8] sm:$0xff]
        %v2651 = vld [vmem:[%s2428 + $0x6f0] sm:$0xff]
        %v2652 = vld [vmem:[%s2428 + $0x6f8] sm:$0xff]
        %v2654 = vperm.slane %v2423, 0
        %v2655 = vperm.slane %v2423, 1
        %v2656 = vperm.slane %v2423, 2
        %v2657 = vperm.slane %v2423, 3
        %v2658 = vperm.slane %v2423, 4
        %v2659 = vperm.slane %v2423, 5
        %v2660 = vperm.slane %v2423, 6
        %2668 = vmatpush.msra.mxu0 %v2534
        %2669 = vmatpush.msra.mxu0 %v2527
        %2670 = vmatpush.msra.mxu0 %v2520
        %2671 = vmatpush.msra.mxu0 %v2513
        %2672 = vmatpush.msra.mxu0 %v2506
        %2673 = vmatpush.msra.mxu0 %v2499
        %2674 = vmatpush.msra.mxu0 %v2492
        %2675 = vmatpush.msra.mxu0 %v2485
        %2676 = vmatpush.msra.mxu0 %v2478
        %2677 = vmatpush.msra.mxu0 %v2471
        %2678 = vmatpush.msra.mxu0 %v2464
        %2679 = vmatpush.msra.mxu0 %v2457
        %2680 = vmatpush.msra.mxu0 %v2450
        %2681 = vmatpush.msra.mxu0 %v2443
        %2682 = vmatpush.msra.mxu0 %v2436
        %2683 = vmatpush.msra.mxu0 %v2429
        %2684 = vmatmul.f32.gmra.mxu0 %v262
        %v2685 = vpop.f32.mrf.mxu0
        %v2686 = vadd.f32 %v2654, %v2685
        %2687 = vdwg.mxu0
        %2688 = vmatpush.msra.mxu0 %v2646
        %2689 = vmatpush.msra.mxu0 %v2639
        %2690 = vmatpush.msra.mxu0 %v2632
        %2691 = vmatpush.msra.mxu0 %v2625
        %2692 = vmatpush.msra.mxu0 %v2618
        %2693 = vmatpush.msra.mxu0 %v2611
        %2694 = vmatpush.msra.mxu0 %v2604
        %2695 = vmatpush.msra.mxu0 %v2597
        %2696 = vmatpush.msra.mxu0 %v2590
        %2697 = vmatpush.msra.mxu0 %v2583
        %2698 = vmatpush.msra.mxu0 %v2576
        %2699 = vmatpush.msra.mxu0 %v2569
        %2700 = vmatpush.msra.mxu0 %v2562
        %2701 = vmatpush.msra.mxu0 %v2555
        %2702 = vmatpush.msra.mxu0 %v2548
        %2703 = vmatpush.msra.mxu0 %v2541
        %2704 = vmatmul.f32.gmra.mxu0 %v263
        %v2705 = vpop.f32.mrf.mxu0
        %v2706 = vadd.f32 %v2686, %v2705
        %2707 = vdwg.mxu0
        %2708 = vmatpush.msra.mxu0 %v2535
        %2709 = vmatpush.msra.mxu0 %v2528
        %2710 = vmatpush.msra.mxu0 %v2521
        %2711 = vmatpush.msra.mxu0 %v2514
        %2712 = vmatpush.msra.mxu0 %v2507
        %2713 = vmatpush.msra.mxu0 %v2500
        %2714 = vmatpush.msra.mxu0 %v2493
        %2715 = vmatpush.msra.mxu0 %v2486
        %2716 = vmatpush.msra.mxu0 %v2479
        %2717 = vmatpush.msra.mxu0 %v2472
        %2718 = vmatpush.msra.mxu0 %v2465
        %2719 = vmatpush.msra.mxu0 %v2458
        %2720 = vmatpush.msra.mxu0 %v2451
        %2721 = vmatpush.msra.mxu0 %v2444
        %2722 = vmatpush.msra.mxu0 %v2437
        %2723 = vmatpush.msra.mxu0 %v2430
        %2724 = vmatmul.f32.gmra.mxu0 %v262
        %v2725 = vpop.f32.mrf.mxu0
        %v2726 = vadd.f32 %v2655, %v2725
        %2727 = vdwg.mxu0
        %2728 = vmatpush.msra.mxu0 %v2647
        %2729 = vmatpush.msra.mxu0 %v2640
        %2730 = vmatpush.msra.mxu0 %v2633
        %2731 = vmatpush.msra.mxu0 %v2626
        %2732 = vmatpush.msra.mxu0 %v2619
        %2733 = vmatpush.msra.mxu0 %v2612
        %2734 = vmatpush.msra.mxu0 %v2605
        %2735 = vmatpush.msra.mxu0 %v2598
        %2736 = vmatpush.msra.mxu0 %v2591
        %2737 = vmatpush.msra.mxu0 %v2584
        %2738 = vmatpush.msra.mxu0 %v2577
        %2739 = vmatpush.msra.mxu0 %v2570
        %2740 = vmatpush.msra.mxu0 %v2563
        %2741 = vmatpush.msra.mxu0 %v2556
        %2742 = vmatpush.msra.mxu0 %v2549
        %2743 = vmatpush.msra.mxu0 %v2542
        %2744 = vmatmul.f32.gmra.mxu0 %v263
        %v2745 = vpop.f32.mrf.mxu0
        %v2746 = vadd.f32 %v2726, %v2745
        %2747 = vdwg.mxu0
        %2748 = vmatpush.msra.mxu0 %v2536
        %2749 = vmatpush.msra.mxu0 %v2529
        %2750 = vmatpush.msra.mxu0 %v2522
        %2751 = vmatpush.msra.mxu0 %v2515
        %2752 = vmatpush.msra.mxu0 %v2508
        %2753 = vmatpush.msra.mxu0 %v2501
        %2754 = vmatpush.msra.mxu0 %v2494
        %2755 = vmatpush.msra.mxu0 %v2487
        %2756 = vmatpush.msra.mxu0 %v2480
        %2757 = vmatpush.msra.mxu0 %v2473
        %2758 = vmatpush.msra.mxu0 %v2466
        %2759 = vmatpush.msra.mxu0 %v2459
        %2760 = vmatpush.msra.mxu0 %v2452
        %2761 = vmatpush.msra.mxu0 %v2445
        %2762 = vmatpush.msra.mxu0 %v2438
        %2763 = vmatpush.msra.mxu0 %v2431
        %2764 = vmatmul.f32.gmra.mxu0 %v262
        %v2765 = vpop.f32.mrf.mxu0
        %v2766 = vadd.f32 %v2656, %v2765
        %2767 = vdwg.mxu0
        %2768 = vmatpush.msra.mxu0 %v2648
        %2769 = vmatpush.msra.mxu0 %v2641
        %2770 = vmatpush.msra.mxu0 %v2634
        %2771 = vmatpush.msra.mxu0 %v2627
        %2772 = vmatpush.msra.mxu0 %v2620
        %2773 = vmatpush.msra.mxu0 %v2613
        %2774 = vmatpush.msra.mxu0 %v2606
        %2775 = vmatpush.msra.mxu0 %v2599
        %2776 = vmatpush.msra.mxu0 %v2592
        %2777 = vmatpush.msra.mxu0 %v2585
        %2778 = vmatpush.msra.mxu0 %v2578
        %2779 = vmatpush.msra.mxu0 %v2571
        %2780 = vmatpush.msra.mxu0 %v2564
        %2781 = vmatpush.msra.mxu0 %v2557
        %2782 = vmatpush.msra.mxu0 %v2550
        %2783 = vmatpush.msra.mxu0 %v2543
        %2784 = vmatmul.f32.gmra.mxu0 %v263
        %v2785 = vpop.f32.mrf.mxu0
        %v2786 = vadd.f32 %v2766, %v2785
        %2787 = vdwg.mxu0
        %2788 = vmatpush.msra.mxu0 %v2537
        %2789 = vmatpush.msra.mxu0 %v2530
        %2790 = vmatpush.msra.mxu0 %v2523
        %2791 = vmatpush.msra.mxu0 %v2516
        %2792 = vmatpush.msra.mxu0 %v2509
        %2793 = vmatpush.msra.mxu0 %v2502
        %2794 = vmatpush.msra.mxu0 %v2495
        %2795 = vmatpush.msra.mxu0 %v2488
        %2796 = vmatpush.msra.mxu0 %v2481
        %2797 = vmatpush.msra.mxu0 %v2474
        %2798 = vmatpush.msra.mxu0 %v2467
        %2799 = vmatpush.msra.mxu0 %v2460
        %2800 = vmatpush.msra.mxu0 %v2453
        %2801 = vmatpush.msra.mxu0 %v2446
        %2802 = vmatpush.msra.mxu0 %v2439
        %2803 = vmatpush.msra.mxu0 %v2432
        %2804 = vmatmul.f32.gmra.mxu0 %v262
        %v2805 = vpop.f32.mrf.mxu0
        %v2806 = vadd.f32 %v2657, %v2805
        %2807 = vdwg.mxu0
        %2808 = vmatpush.msra.mxu0 %v2649
        %2809 = vmatpush.msra.mxu0 %v2642
        %2810 = vmatpush.msra.mxu0 %v2635
        %2811 = vmatpush.msra.mxu0 %v2628
        %2812 = vmatpush.msra.mxu0 %v2621
        %2813 = vmatpush.msra.mxu0 %v2614
        %2814 = vmatpush.msra.mxu0 %v2607
        %2815 = vmatpush.msra.mxu0 %v2600
        %2816 = vmatpush.msra.mxu0 %v2593
        %2817 = vmatpush.msra.mxu0 %v2586
        %2818 = vmatpush.msra.mxu0 %v2579
        %2819 = vmatpush.msra.mxu0 %v2572
        %2820 = vmatpush.msra.mxu0 %v2565
        %2821 = vmatpush.msra.mxu0 %v2558
        %2822 = vmatpush.msra.mxu0 %v2551
        %2823 = vmatpush.msra.mxu0 %v2544
        %2824 = vmatmul.f32.gmra.mxu0 %v263
        %v2825 = vpop.f32.mrf.mxu0
        %v2826 = vadd.f32 %v2806, %v2825
        %2827 = vdwg.mxu0
        %2828 = vmatpush.msra.mxu0 %v2538
        %2829 = vmatpush.msra.mxu0 %v2531
        %2830 = vmatpush.msra.mxu0 %v2524
        %2831 = vmatpush.msra.mxu0 %v2517
        %2832 = vmatpush.msra.mxu0 %v2510
        %2833 = vmatpush.msra.mxu0 %v2503
        %2834 = vmatpush.msra.mxu0 %v2496
        %2835 = vmatpush.msra.mxu0 %v2489
        %2836 = vmatpush.msra.mxu0 %v2482
        %2837 = vmatpush.msra.mxu0 %v2475
        %2838 = vmatpush.msra.mxu0 %v2468
        %2839 = vmatpush.msra.mxu0 %v2461
        %2840 = vmatpush.msra.mxu0 %v2454
        %2841 = vmatpush.msra.mxu0 %v2447
        %2842 = vmatpush.msra.mxu0 %v2440
        %2843 = vmatpush.msra.mxu0 %v2433
        %2844 = vmatmul.f32.gmra.mxu0 %v262
        %v2845 = vpop.f32.mrf.mxu0
        %v2846 = vadd.f32 %v2658, %v2845
        %2847 = vdwg.mxu0
        %2848 = vmatpush.msra.mxu0 %v2650
        %2849 = vmatpush.msra.mxu0 %v2643
        %2850 = vmatpush.msra.mxu0 %v2636
        %2851 = vmatpush.msra.mxu0 %v2629
        %2852 = vmatpush.msra.mxu0 %v2622
        %2853 = vmatpush.msra.mxu0 %v2615
        %2854 = vmatpush.msra.mxu0 %v2608
        %2855 = vmatpush.msra.mxu0 %v2601
        %2856 = vmatpush.msra.mxu0 %v2594
        %2857 = vmatpush.msra.mxu0 %v2587
        %2858 = vmatpush.msra.mxu0 %v2580
        %2859 = vmatpush.msra.mxu0 %v2573
        %2860 = vmatpush.msra.mxu0 %v2566
        %2861 = vmatpush.msra.mxu0 %v2559
        %2862 = vmatpush.msra.mxu0 %v2552
        %2863 = vmatpush.msra.mxu0 %v2545
        %2864 = vmatmul.f32.gmra.mxu0 %v263
        %v2865 = vpop.f32.mrf.mxu0
        %v2866 = vadd.f32 %v2846, %v2865
        %2867 = vdwg.mxu0
        %2868 = vmatpush.msra.mxu0 %v2539
        %2869 = vmatpush.msra.mxu0 %v2532
        %2870 = vmatpush.msra.mxu0 %v2525
        %2871 = vmatpush.msra.mxu0 %v2518
        %2872 = vmatpush.msra.mxu0 %v2511
        %2873 = vmatpush.msra.mxu0 %v2504
        %2874 = vmatpush.msra.mxu0 %v2497
        %2875 = vmatpush.msra.mxu0 %v2490
        %2876 = vmatpush.msra.mxu0 %v2483
        %2877 = vmatpush.msra.mxu0 %v2476
        %2878 = vmatpush.msra.mxu0 %v2469
        %2879 = vmatpush.msra.mxu0 %v2462
        %2880 = vmatpush.msra.mxu0 %v2455
        %2881 = vmatpush.msra.mxu0 %v2448
        %2882 = vmatpush.msra.mxu0 %v2441
        %2883 = vmatpush.msra.mxu0 %v2434
        %2884 = vmatmul.f32.gmra.mxu0 %v262
        %v2885 = vpop.f32.mrf.mxu0
        %v2886 = vadd.f32 %v2659, %v2885
        %2887 = vdwg.mxu0
        %2888 = vmatpush.msra.mxu0 %v2651
        %2889 = vmatpush.msra.mxu0 %v2644
        %2890 = vmatpush.msra.mxu0 %v2637
        %2891 = vmatpush.msra.mxu0 %v2630
        %2892 = vmatpush.msra.mxu0 %v2623
        %2893 = vmatpush.msra.mxu0 %v2616
        %2894 = vmatpush.msra.mxu0 %v2609
        %2895 = vmatpush.msra.mxu0 %v2602
        %2896 = vmatpush.msra.mxu0 %v2595
        %2897 = vmatpush.msra.mxu0 %v2588
        %2898 = vmatpush.msra.mxu0 %v2581
        %2899 = vmatpush.msra.mxu0 %v2574
        %2900 = vmatpush.msra.mxu0 %v2567
        %2901 = vmatpush.msra.mxu0 %v2560
        %2902 = vmatpush.msra.mxu0 %v2553
        %2903 = vmatpush.msra.mxu0 %v2546
        %2904 = vmatmul.f32.gmra.mxu0 %v263
        %v2905 = vpop.f32.mrf.mxu0
        %v2906 = vadd.f32 %v2886, %v2905
        %2907 = vdwg.mxu0
        %2908 = vmatpush.msra.mxu0 %v2540
        %2909 = vmatpush.msra.mxu0 %v2533
        %2910 = vmatpush.msra.mxu0 %v2526
        %2911 = vmatpush.msra.mxu0 %v2519
        %2912 = vmatpush.msra.mxu0 %v2512
        %2913 = vmatpush.msra.mxu0 %v2505
        %2914 = vmatpush.msra.mxu0 %v2498
        %2915 = vmatpush.msra.mxu0 %v2491
        %2916 = vmatpush.msra.mxu0 %v2484
        %2917 = vmatpush.msra.mxu0 %v2477
        %2918 = vmatpush.msra.mxu0 %v2470
        %2919 = vmatpush.msra.mxu0 %v2463
        %2920 = vmatpush.msra.mxu0 %v2456
        %2921 = vmatpush.msra.mxu0 %v2449
        %2922 = vmatpush.msra.mxu0 %v2442
        %2923 = vmatpush.msra.mxu0 %v2435
        %2924 = vmatmul.f32.gmra.mxu0 %v262
        %v2925 = vpop.f32.mrf.mxu0
        %v2926 = vadd.f32 %v2660, %v2925
        %2927 = vdwg.mxu0
        %2928 = vmatpush.msra.mxu0 %v2652
        %2929 = vmatpush.msra.mxu0 %v2645
        %2930 = vmatpush.msra.mxu0 %v2638
        %2931 = vmatpush.msra.mxu0 %v2631
        %2932 = vmatpush.msra.mxu0 %v2624
        %2933 = vmatpush.msra.mxu0 %v2617
        %2934 = vmatpush.msra.mxu0 %v2610
        %2935 = vmatpush.msra.mxu0 %v2603
        %2936 = vmatpush.msra.mxu0 %v2596
        %2937 = vmatpush.msra.mxu0 %v2589
        %2938 = vmatpush.msra.mxu0 %v2582
        %2939 = vmatpush.msra.mxu0 %v2575
        %2940 = vmatpush.msra.mxu0 %v2568
        %2941 = vmatpush.msra.mxu0 %v2561
        %2942 = vmatpush.msra.mxu0 %v2554
        %2943 = vmatpush.msra.mxu0 %v2547
        %2944 = vmatmul.f32.gmra.mxu0 %v263
        %v2945 = vpop.f32.mrf.mxu0
        %v2946 = vadd.f32 %v2926, %v2945
        %2947 = vdwg.mxu0
        %v2948 = vtanh.pop %v2706
        %v2949 = vtanh.pop %v2746
        %v2950 = vtanh.pop %v2786
        %v2951 = vtanh.pop %v2826
        %v2952 = vtanh.pop %v2866
        %v2953 = vtanh.pop %v2906
        %v2954 = vtanh.pop %v2946
        %s2955 = scalar_lea.vmem %s228, 8960 [#allocation7]
        %v2956 = vld [vmem:[%s2955] sm:$0xff]
        %v2957 = vld [vmem:[%s2955 + $0x8] sm:$0xff]
        %v2958 = vld [vmem:[%s2955 + $0x10] sm:$0xff]
        %v2959 = vld [vmem:[%s2955 + $0x18] sm:$0xff]
        %v2960 = vld [vmem:[%s2955 + $0x20] sm:$0xff]
        %v2961 = vld [vmem:[%s2955 + $0x28] sm:$0xff]
        %v2962 = vld [vmem:[%s2955 + $0x30] sm:$0xff]
        %v2963 = vld [vmem:[%s2955 + $0x38] sm:$0xff]
        %v2964 = vld [vmem:[%s2955 + $0x40] sm:$0xff]
        %v2965 = vld [vmem:[%s2955 + $0x48] sm:$0xff]
        %v2966 = vld [vmem:[%s2955 + $0x50] sm:$0xff]
        %v2967 = vld [vmem:[%s2955 + $0x58] sm:$0xff]
        %v2968 = vld [vmem:[%s2955 + $0x60] sm:$0xff]
        %v2969 = vld [vmem:[%s2955 + $0x68] sm:$0xff]
        %v2970 = vld [vmem:[%s2955 + $0x70] sm:$0xff]
        %v2971 = vld [vmem:[%s2955 + $0x78] sm:$0xff]
        %v2972 = vld [vmem:[%s2955 + $0x80] sm:$0xff]
        %v2973 = vld [vmem:[%s2955 + $0x88] sm:$0xff]
        %v2974 = vld [vmem:[%s2955 + $0x90] sm:$0xff]
        %v2975 = vld [vmem:[%s2955 + $0x98] sm:$0xff]
        %v2976 = vld [vmem:[%s2955 + $0xa0] sm:$0xff]
        %v2977 = vld [vmem:[%s2955 + $0xa8] sm:$0xff]
        %v2978 = vld [vmem:[%s2955 + $0xb0] sm:$0xff]
        %v2979 = vld [vmem:[%s2955 + $0xb8] sm:$0xff]
        %v2980 = vld [vmem:[%s2955 + $0xc0] sm:$0xff]
        %v2981 = vld [vmem:[%s2955 + $0xc8] sm:$0xff]
        %v2982 = vld [vmem:[%s2955 + $0xd0] sm:$0xff]
        %v2983 = vld [vmem:[%s2955 + $0xd8] sm:$0xff]
        %v2984 = vld [vmem:[%s2955 + $0xe0] sm:$0xff]
        %v2985 = vld [vmem:[%s2955 + $0xe8] sm:$0xff]
        %v2986 = vld [vmem:[%s2955 + $0xf0] sm:$0xff]
        %v2987 = vld [vmem:[%s2955 + $0xf8] sm:$0xff]
        %v2988 = vld [vmem:[%s2955 + $0x100] sm:$0xff]
        %v2989 = vld [vmem:[%s2955 + $0x108] sm:$0xff]
        %v2990 = vld [vmem:[%s2955 + $0x110] sm:$0xff]
        %v2991 = vld [vmem:[%s2955 + $0x118] sm:$0xff]
        %v2992 = vld [vmem:[%s2955 + $0x120] sm:$0xff]
        %v2993 = vld [vmem:[%s2955 + $0x128] sm:$0xff]
        %v2994 = vld [vmem:[%s2955 + $0x130] sm:$0xff]
        %v2995 = vld [vmem:[%s2955 + $0x138] sm:$0xff]
        %v2996 = vld [vmem:[%s2955 + $0x140] sm:$0xff]
        %v2997 = vld [vmem:[%s2955 + $0x148] sm:$0xff]
        %v2998 = vld [vmem:[%s2955 + $0x150] sm:$0xff]
        %v2999 = vld [vmem:[%s2955 + $0x158] sm:$0xff]
        %v3000 = vld [vmem:[%s2955 + $0x160] sm:$0xff]
        %v3001 = vld [vmem:[%s2955 + $0x168] sm:$0xff]
        %v3002 = vld [vmem:[%s2955 + $0x170] sm:$0xff]
        %v3003 = vld [vmem:[%s2955 + $0x178] sm:$0xff]
        %v3004 = vld [vmem:[%s2955 + $0x180] sm:$0xff]
        %v3005 = vld [vmem:[%s2955 + $0x188] sm:$0xff]
        %v3006 = vld [vmem:[%s2955 + $0x190] sm:$0xff]
        %v3007 = vld [vmem:[%s2955 + $0x198] sm:$0xff]
        %v3008 = vld [vmem:[%s2955 + $0x1a0] sm:$0xff]
        %v3009 = vld [vmem:[%s2955 + $0x1a8] sm:$0xff]
        %v3010 = vld [vmem:[%s2955 + $0x1b0] sm:$0xff]
        %v3011 = vld [vmem:[%s2955 + $0x1b8] sm:$0xff]
        %v3012 = vld [vmem:[%s2955 + $0x1c0] sm:$0xff]
        %v3013 = vld [vmem:[%s2955 + $0x1c8] sm:$0xff]
        %v3014 = vld [vmem:[%s2955 + $0x1d0] sm:$0xff]
        %v3015 = vld [vmem:[%s2955 + $0x1d8] sm:$0xff]
        %v3016 = vld [vmem:[%s2955 + $0x1e0] sm:$0xff]
        %v3017 = vld [vmem:[%s2955 + $0x1e8] sm:$0xff]
        %v3018 = vld [vmem:[%s2955 + $0x1f0] sm:$0xff]
        %v3019 = vld [vmem:[%s2955 + $0x1f8] sm:$0xff]
        %v3020 = vld [vmem:[%s2955 + $0x200] sm:$0xff]
        %v3021 = vld [vmem:[%s2955 + $0x208] sm:$0xff]
        %v3022 = vld [vmem:[%s2955 + $0x210] sm:$0xff]
        %v3023 = vld [vmem:[%s2955 + $0x218] sm:$0xff]
        %v3024 = vld [vmem:[%s2955 + $0x220] sm:$0xff]
        %v3025 = vld [vmem:[%s2955 + $0x228] sm:$0xff]
        %v3026 = vld [vmem:[%s2955 + $0x230] sm:$0xff]
        %v3027 = vld [vmem:[%s2955 + $0x238] sm:$0xff]
        %v3028 = vld [vmem:[%s2955 + $0x240] sm:$0xff]
        %v3029 = vld [vmem:[%s2955 + $0x248] sm:$0xff]
        %v3030 = vld [vmem:[%s2955 + $0x250] sm:$0xff]
        %v3031 = vld [vmem:[%s2955 + $0x258] sm:$0xff]
        %v3032 = vld [vmem:[%s2955 + $0x260] sm:$0xff]
        %v3033 = vld [vmem:[%s2955 + $0x268] sm:$0xff]
        %v3034 = vld [vmem:[%s2955 + $0x270] sm:$0xff]
        %v3035 = vld [vmem:[%s2955 + $0x278] sm:$0xff]
        %v3036 = vld [vmem:[%s2955 + $0x280] sm:$0xff]
        %v3037 = vld [vmem:[%s2955 + $0x288] sm:$0xff]
        %v3038 = vld [vmem:[%s2955 + $0x290] sm:$0xff]
        %v3039 = vld [vmem:[%s2955 + $0x298] sm:$0xff]
        %v3040 = vld [vmem:[%s2955 + $0x2a0] sm:$0xff]
        %v3041 = vld [vmem:[%s2955 + $0x2a8] sm:$0xff]
        %v3042 = vld [vmem:[%s2955 + $0x2b0] sm:$0xff]
        %v3043 = vld [vmem:[%s2955 + $0x2b8] sm:$0xff]
        %v3044 = vld [vmem:[%s2955 + $0x2c0] sm:$0xff]
        %v3045 = vld [vmem:[%s2955 + $0x2c8] sm:$0xff]
        %v3046 = vld [vmem:[%s2955 + $0x2d0] sm:$0xff]
        %v3047 = vld [vmem:[%s2955 + $0x2d8] sm:$0xff]
        %v3048 = vld [vmem:[%s2955 + $0x2e0] sm:$0xff]
        %v3049 = vld [vmem:[%s2955 + $0x2e8] sm:$0xff]
        %v3050 = vld [vmem:[%s2955 + $0x2f0] sm:$0xff]
        %v3051 = vld [vmem:[%s2955 + $0x2f8] sm:$0xff]
        %v3052 = vld [vmem:[%s2955 + $0x300] sm:$0xff]
        %v3053 = vld [vmem:[%s2955 + $0x308] sm:$0xff]
        %v3054 = vld [vmem:[%s2955 + $0x310] sm:$0xff]
        %v3055 = vld [vmem:[%s2955 + $0x318] sm:$0xff]
        %v3056 = vld [vmem:[%s2955 + $0x320] sm:$0xff]
        %v3057 = vld [vmem:[%s2955 + $0x328] sm:$0xff]
        %v3058 = vld [vmem:[%s2955 + $0x330] sm:$0xff]
        %v3059 = vld [vmem:[%s2955 + $0x338] sm:$0xff]
        %v3060 = vld [vmem:[%s2955 + $0x340] sm:$0xff]
        %v3061 = vld [vmem:[%s2955 + $0x348] sm:$0xff]
        %v3062 = vld [vmem:[%s2955 + $0x350] sm:$0xff]
        %v3063 = vld [vmem:[%s2955 + $0x358] sm:$0xff]
        %v3064 = vld [vmem:[%s2955 + $0x360] sm:$0xff]
        %v3065 = vld [vmem:[%s2955 + $0x368] sm:$0xff]
        %v3066 = vld [vmem:[%s2955 + $0x370] sm:$0xff]
        %v3067 = vld [vmem:[%s2955 + $0x378] sm:$0xff]
        %v3068 = vld [vmem:[%s2955 + $0x380] sm:$0xff]
        %v3069 = vld [vmem:[%s2955 + $0x388] sm:$0xff]
        %v3070 = vld [vmem:[%s2955 + $0x390] sm:$0xff]
        %v3071 = vld [vmem:[%s2955 + $0x398] sm:$0xff]
        %v3072 = vld [vmem:[%s2955 + $0x3a0] sm:$0xff]
        %v3073 = vld [vmem:[%s2955 + $0x3a8] sm:$0xff]
        %v3074 = vld [vmem:[%s2955 + $0x3b0] sm:$0xff]
        %v3075 = vld [vmem:[%s2955 + $0x3b8] sm:$0xff]
        %v3076 = vld [vmem:[%s2955 + $0x3c0] sm:$0xff]
        %v3077 = vld [vmem:[%s2955 + $0x3c8] sm:$0xff]
        %v3078 = vld [vmem:[%s2955 + $0x3d0] sm:$0xff]
        %v3079 = vld [vmem:[%s2955 + $0x3d8] sm:$0xff]
        %v3080 = vld [vmem:[%s2955 + $0x3e0] sm:$0xff]
        %v3081 = vld [vmem:[%s2955 + $0x3e8] sm:$0xff]
        %v3082 = vld [vmem:[%s2955 + $0x3f0] sm:$0xff]
        %v3083 = vld [vmem:[%s2955 + $0x3f8] sm:$0xff]
        %v3084 = vld [vmem:[%s2955 + $0x400] sm:$0xff]
        %v3085 = vld [vmem:[%s2955 + $0x408] sm:$0xff]
        %v3086 = vld [vmem:[%s2955 + $0x410] sm:$0xff]
        %v3087 = vld [vmem:[%s2955 + $0x418] sm:$0xff]
        %v3088 = vld [vmem:[%s2955 + $0x420] sm:$0xff]
        %v3089 = vld [vmem:[%s2955 + $0x428] sm:$0xff]
        %v3090 = vld [vmem:[%s2955 + $0x430] sm:$0xff]
        %v3091 = vld [vmem:[%s2955 + $0x438] sm:$0xff]
        %v3092 = vld [vmem:[%s2955 + $0x440] sm:$0xff]
        %v3093 = vld [vmem:[%s2955 + $0x448] sm:$0xff]
        %v3094 = vld [vmem:[%s2955 + $0x450] sm:$0xff]
        %v3095 = vld [vmem:[%s2955 + $0x458] sm:$0xff]
        %v3096 = vld [vmem:[%s2955 + $0x460] sm:$0xff]
        %v3097 = vld [vmem:[%s2955 + $0x468] sm:$0xff]
        %v3098 = vld [vmem:[%s2955 + $0x470] sm:$0xff]
        %v3099 = vld [vmem:[%s2955 + $0x478] sm:$0xff]
        %v3100 = vld [vmem:[%s2955 + $0x480] sm:$0xff]
        %v3101 = vld [vmem:[%s2955 + $0x488] sm:$0xff]
        %v3102 = vld [vmem:[%s2955 + $0x490] sm:$0xff]
        %v3103 = vld [vmem:[%s2955 + $0x498] sm:$0xff]
        %v3104 = vld [vmem:[%s2955 + $0x4a0] sm:$0xff]
        %v3105 = vld [vmem:[%s2955 + $0x4a8] sm:$0xff]
        %v3106 = vld [vmem:[%s2955 + $0x4b0] sm:$0xff]
        %v3107 = vld [vmem:[%s2955 + $0x4b8] sm:$0xff]
        %v3108 = vld [vmem:[%s2955 + $0x4c0] sm:$0xff]
        %v3109 = vld [vmem:[%s2955 + $0x4c8] sm:$0xff]
        %v3110 = vld [vmem:[%s2955 + $0x4d0] sm:$0xff]
        %v3111 = vld [vmem:[%s2955 + $0x4d8] sm:$0xff]
        %v3112 = vld [vmem:[%s2955 + $0x4e0] sm:$0xff]
        %v3113 = vld [vmem:[%s2955 + $0x4e8] sm:$0xff]
        %v3114 = vld [vmem:[%s2955 + $0x4f0] sm:$0xff]
        %v3115 = vld [vmem:[%s2955 + $0x4f8] sm:$0xff]
        %v3116 = vld [vmem:[%s2955 + $0x500] sm:$0xff]
        %v3117 = vld [vmem:[%s2955 + $0x508] sm:$0xff]
        %v3118 = vld [vmem:[%s2955 + $0x510] sm:$0xff]
        %v3119 = vld [vmem:[%s2955 + $0x518] sm:$0xff]
        %v3120 = vld [vmem:[%s2955 + $0x520] sm:$0xff]
        %v3121 = vld [vmem:[%s2955 + $0x528] sm:$0xff]
        %v3122 = vld [vmem:[%s2955 + $0x530] sm:$0xff]
        %v3123 = vld [vmem:[%s2955 + $0x538] sm:$0xff]
        %v3124 = vld [vmem:[%s2955 + $0x540] sm:$0xff]
        %v3125 = vld [vmem:[%s2955 + $0x548] sm:$0xff]
        %v3126 = vld [vmem:[%s2955 + $0x550] sm:$0xff]
        %v3127 = vld [vmem:[%s2955 + $0x558] sm:$0xff]
        %v3128 = vld [vmem:[%s2955 + $0x560] sm:$0xff]
        %v3129 = vld [vmem:[%s2955 + $0x568] sm:$0xff]
        %v3130 = vld [vmem:[%s2955 + $0x570] sm:$0xff]
        %v3131 = vld [vmem:[%s2955 + $0x578] sm:$0xff]
        %v3132 = vld [vmem:[%s2955 + $0x580] sm:$0xff]
        %v3133 = vld [vmem:[%s2955 + $0x588] sm:$0xff]
        %v3134 = vld [vmem:[%s2955 + $0x590] sm:$0xff]
        %v3135 = vld [vmem:[%s2955 + $0x598] sm:$0xff]
        %v3136 = vld [vmem:[%s2955 + $0x5a0] sm:$0xff]
        %v3137 = vld [vmem:[%s2955 + $0x5a8] sm:$0xff]
        %v3138 = vld [vmem:[%s2955 + $0x5b0] sm:$0xff]
        %v3139 = vld [vmem:[%s2955 + $0x5b8] sm:$0xff]
        %v3140 = vld [vmem:[%s2955 + $0x5c0] sm:$0xff]
        %v3141 = vld [vmem:[%s2955 + $0x5c8] sm:$0xff]
        %v3142 = vld [vmem:[%s2955 + $0x5d0] sm:$0xff]
        %v3143 = vld [vmem:[%s2955 + $0x5d8] sm:$0xff]
        %v3144 = vld [vmem:[%s2955 + $0x5e0] sm:$0xff]
        %v3145 = vld [vmem:[%s2955 + $0x5e8] sm:$0xff]
        %v3146 = vld [vmem:[%s2955 + $0x5f0] sm:$0xff]
        %v3147 = vld [vmem:[%s2955 + $0x5f8] sm:$0xff]
        %v3148 = vld [vmem:[%s2955 + $0x600] sm:$0xff]
        %v3149 = vld [vmem:[%s2955 + $0x608] sm:$0xff]
        %v3150 = vld [vmem:[%s2955 + $0x610] sm:$0xff]
        %v3151 = vld [vmem:[%s2955 + $0x618] sm:$0xff]
        %v3152 = vld [vmem:[%s2955 + $0x620] sm:$0xff]
        %v3153 = vld [vmem:[%s2955 + $0x628] sm:$0xff]
        %v3154 = vld [vmem:[%s2955 + $0x630] sm:$0xff]
        %v3155 = vld [vmem:[%s2955 + $0x638] sm:$0xff]
        %v3156 = vld [vmem:[%s2955 + $0x640] sm:$0xff]
        %v3157 = vld [vmem:[%s2955 + $0x648] sm:$0xff]
        %v3158 = vld [vmem:[%s2955 + $0x650] sm:$0xff]
        %v3159 = vld [vmem:[%s2955 + $0x658] sm:$0xff]
        %v3160 = vld [vmem:[%s2955 + $0x660] sm:$0xff]
        %v3161 = vld [vmem:[%s2955 + $0x668] sm:$0xff]
        %v3162 = vld [vmem:[%s2955 + $0x670] sm:$0xff]
        %v3163 = vld [vmem:[%s2955 + $0x678] sm:$0xff]
        %v3164 = vld [vmem:[%s2955 + $0x680] sm:$0xff]
        %v3165 = vld [vmem:[%s2955 + $0x688] sm:$0xff]
        %v3166 = vld [vmem:[%s2955 + $0x690] sm:$0xff]
        %v3167 = vld [vmem:[%s2955 + $0x698] sm:$0xff]
        %v3168 = vld [vmem:[%s2955 + $0x6a0] sm:$0xff]
        %v3169 = vld [vmem:[%s2955 + $0x6a8] sm:$0xff]
        %v3170 = vld [vmem:[%s2955 + $0x6b0] sm:$0xff]
        %v3171 = vld [vmem:[%s2955 + $0x6b8] sm:$0xff]
        %v3172 = vld [vmem:[%s2955 + $0x6c0] sm:$0xff]
        %v3173 = vld [vmem:[%s2955 + $0x6c8] sm:$0xff]
        %v3174 = vld [vmem:[%s2955 + $0x6d0] sm:$0xff]
        %v3175 = vld [vmem:[%s2955 + $0x6d8] sm:$0xff]
        %v3176 = vld [vmem:[%s2955 + $0x6e0] sm:$0xff]
        %v3177 = vld [vmem:[%s2955 + $0x6e8] sm:$0xff]
        %v3178 = vld [vmem:[%s2955 + $0x6f0] sm:$0xff]
        %v3179 = vld [vmem:[%s2955 + $0x6f8] sm:$0xff]
        %v3181 = vperm.slane %v2427, 0
        %v3182 = vperm.slane %v2427, 1
        %v3183 = vperm.slane %v2427, 2
        %v3184 = vperm.slane %v2427, 3
        %v3185 = vperm.slane %v2427, 4
        %v3186 = vperm.slane %v2427, 5
        %v3187 = vperm.slane %v2427, 6
        %3195 = vmatpush.msra.mxu0 %v3061
        %3196 = vmatpush.msra.mxu0 %v3054
        %3197 = vmatpush.msra.mxu0 %v3047
        %3198 = vmatpush.msra.mxu0 %v3040
        %3199 = vmatpush.msra.mxu0 %v3033
        %3200 = vmatpush.msra.mxu0 %v3026
        %3201 = vmatpush.msra.mxu0 %v3019
        %3202 = vmatpush.msra.mxu0 %v3012
        %3203 = vmatpush.msra.mxu0 %v3005
        %3204 = vmatpush.msra.mxu0 %v2998
        %3205 = vmatpush.msra.mxu0 %v2991
        %3206 = vmatpush.msra.mxu0 %v2984
        %3207 = vmatpush.msra.mxu0 %v2977
        %3208 = vmatpush.msra.mxu0 %v2970
        %3209 = vmatpush.msra.mxu0 %v2963
        %3210 = vmatpush.msra.mxu0 %v2956
        %3211 = vmatmul.f32.gmra.mxu0 %v264
        %v3212 = vpop.f32.mrf.mxu0
        %v3213 = vadd.f32 %v3181, %v3212
        %3214 = vdwg.mxu0
        %3215 = vmatpush.msra.mxu0 %v3173
        %3216 = vmatpush.msra.mxu0 %v3166
        %3217 = vmatpush.msra.mxu0 %v3159
        %3218 = vmatpush.msra.mxu0 %v3152
        %3219 = vmatpush.msra.mxu0 %v3145
        %3220 = vmatpush.msra.mxu0 %v3138
        %3221 = vmatpush.msra.mxu0 %v3131
        %3222 = vmatpush.msra.mxu0 %v3124
        %3223 = vmatpush.msra.mxu0 %v3117
        %3224 = vmatpush.msra.mxu0 %v3110
        %3225 = vmatpush.msra.mxu0 %v3103
        %3226 = vmatpush.msra.mxu0 %v3096
        %3227 = vmatpush.msra.mxu0 %v3089
        %3228 = vmatpush.msra.mxu0 %v3082
        %3229 = vmatpush.msra.mxu0 %v3075
        %3230 = vmatpush.msra.mxu0 %v3068
        %3231 = vmatmul.f32.gmra.mxu0 %v265
        %v3232 = vpop.f32.mrf.mxu0
        %v3233 = vadd.f32 %v3213, %v3232
        %3234 = vdwg.mxu0
        %3235 = vmatpush.msra.mxu0 %v3062
        %3236 = vmatpush.msra.mxu0 %v3055
        %3237 = vmatpush.msra.mxu0 %v3048
        %3238 = vmatpush.msra.mxu0 %v3041
        %3239 = vmatpush.msra.mxu0 %v3034
        %3240 = vmatpush.msra.mxu0 %v3027
        %3241 = vmatpush.msra.mxu0 %v3020
        %3242 = vmatpush.msra.mxu0 %v3013
        %3243 = vmatpush.msra.mxu0 %v3006
        %3244 = vmatpush.msra.mxu0 %v2999
        %3245 = vmatpush.msra.mxu0 %v2992
        %3246 = vmatpush.msra.mxu0 %v2985
        %3247 = vmatpush.msra.mxu0 %v2978
        %3248 = vmatpush.msra.mxu0 %v2971
        %3249 = vmatpush.msra.mxu0 %v2964
        %3250 = vmatpush.msra.mxu0 %v2957
        %3251 = vmatmul.f32.gmra.mxu0 %v264
        %v3252 = vpop.f32.mrf.mxu0
        %v3253 = vadd.f32 %v3182, %v3252
        %3254 = vdwg.mxu0
        %3255 = vmatpush.msra.mxu0 %v3174
        %3256 = vmatpush.msra.mxu0 %v3167
        %3257 = vmatpush.msra.mxu0 %v3160
        %3258 = vmatpush.msra.mxu0 %v3153
        %3259 = vmatpush.msra.mxu0 %v3146
        %3260 = vmatpush.msra.mxu0 %v3139
        %3261 = vmatpush.msra.mxu0 %v3132
        %3262 = vmatpush.msra.mxu0 %v3125
        %3263 = vmatpush.msra.mxu0 %v3118
        %3264 = vmatpush.msra.mxu0 %v3111
        %3265 = vmatpush.msra.mxu0 %v3104
        %3266 = vmatpush.msra.mxu0 %v3097
        %3267 = vmatpush.msra.mxu0 %v3090
        %3268 = vmatpush.msra.mxu0 %v3083
        %3269 = vmatpush.msra.mxu0 %v3076
        %3270 = vmatpush.msra.mxu0 %v3069
        %3271 = vmatmul.f32.gmra.mxu0 %v265
        %v3272 = vpop.f32.mrf.mxu0
        %v3273 = vadd.f32 %v3253, %v3272
        %3274 = vdwg.mxu0
        %3275 = vmatpush.msra.mxu0 %v3063
        %3276 = vmatpush.msra.mxu0 %v3056
        %3277 = vmatpush.msra.mxu0 %v3049
        %3278 = vmatpush.msra.mxu0 %v3042
        %3279 = vmatpush.msra.mxu0 %v3035
        %3280 = vmatpush.msra.mxu0 %v3028
        %3281 = vmatpush.msra.mxu0 %v3021
        %3282 = vmatpush.msra.mxu0 %v3014
        %3283 = vmatpush.msra.mxu0 %v3007
        %3284 = vmatpush.msra.mxu0 %v3000
        %3285 = vmatpush.msra.mxu0 %v2993
        %3286 = vmatpush.msra.mxu0 %v2986
        %3287 = vmatpush.msra.mxu0 %v2979
        %3288 = vmatpush.msra.mxu0 %v2972
        %3289 = vmatpush.msra.mxu0 %v2965
        %3290 = vmatpush.msra.mxu0 %v2958
        %3291 = vmatmul.f32.gmra.mxu0 %v264
        %v3292 = vpop.f32.mrf.mxu0
        %v3293 = vadd.f32 %v3183, %v3292
        %3294 = vdwg.mxu0
        %3295 = vmatpush.msra.mxu0 %v3175
        %3296 = vmatpush.msra.mxu0 %v3168
        %3297 = vmatpush.msra.mxu0 %v3161
        %3298 = vmatpush.msra.mxu0 %v3154
        %3299 = vmatpush.msra.mxu0 %v3147
        %3300 = vmatpush.msra.mxu0 %v3140
        %3301 = vmatpush.msra.mxu0 %v3133
        %3302 = vmatpush.msra.mxu0 %v3126
        %3303 = vmatpush.msra.mxu0 %v3119
        %3304 = vmatpush.msra.mxu0 %v3112
        %3305 = vmatpush.msra.mxu0 %v3105
        %3306 = vmatpush.msra.mxu0 %v3098
        %3307 = vmatpush.msra.mxu0 %v3091
        %3308 = vmatpush.msra.mxu0 %v3084
        %3309 = vmatpush.msra.mxu0 %v3077
        %3310 = vmatpush.msra.mxu0 %v3070
        %3311 = vmatmul.f32.gmra.mxu0 %v265
        %v3312 = vpop.f32.mrf.mxu0
        %v3313 = vadd.f32 %v3293, %v3312
        %3314 = vdwg.mxu0
        %3315 = vmatpush.msra.mxu0 %v3064
        %3316 = vmatpush.msra.mxu0 %v3057
        %3317 = vmatpush.msra.mxu0 %v3050
        %3318 = vmatpush.msra.mxu0 %v3043
        %3319 = vmatpush.msra.mxu0 %v3036
        %3320 = vmatpush.msra.mxu0 %v3029
        %3321 = vmatpush.msra.mxu0 %v3022
        %3322 = vmatpush.msra.mxu0 %v3015
        %3323 = vmatpush.msra.mxu0 %v3008
        %3324 = vmatpush.msra.mxu0 %v3001
        %3325 = vmatpush.msra.mxu0 %v2994
        %3326 = vmatpush.msra.mxu0 %v2987
        %3327 = vmatpush.msra.mxu0 %v2980
        %3328 = vmatpush.msra.mxu0 %v2973
        %3329 = vmatpush.msra.mxu0 %v2966
        %3330 = vmatpush.msra.mxu0 %v2959
        %3331 = vmatmul.f32.gmra.mxu0 %v264
        %v3332 = vpop.f32.mrf.mxu0
        %v3333 = vadd.f32 %v3184, %v3332
        %3334 = vdwg.mxu0
        %3335 = vmatpush.msra.mxu0 %v3176
        %3336 = vmatpush.msra.mxu0 %v3169
        %3337 = vmatpush.msra.mxu0 %v3162
        %3338 = vmatpush.msra.mxu0 %v3155
        %3339 = vmatpush.msra.mxu0 %v3148
        %3340 = vmatpush.msra.mxu0 %v3141
        %3341 = vmatpush.msra.mxu0 %v3134
        %3342 = vmatpush.msra.mxu0 %v3127
        %3343 = vmatpush.msra.mxu0 %v3120
        %3344 = vmatpush.msra.mxu0 %v3113
        %3345 = vmatpush.msra.mxu0 %v3106
        %3346 = vmatpush.msra.mxu0 %v3099
        %3347 = vmatpush.msra.mxu0 %v3092
        %3348 = vmatpush.msra.mxu0 %v3085
        %3349 = vmatpush.msra.mxu0 %v3078
        %3350 = vmatpush.msra.mxu0 %v3071
        %3351 = vmatmul.f32.gmra.mxu0 %v265
        %v3352 = vpop.f32.mrf.mxu0
        %v3353 = vadd.f32 %v3333, %v3352
        %3354 = vdwg.mxu0
        %3355 = vmatpush.msra.mxu0 %v3065
        %3356 = vmatpush.msra.mxu0 %v3058
        %3357 = vmatpush.msra.mxu0 %v3051
        %3358 = vmatpush.msra.mxu0 %v3044
        %3359 = vmatpush.msra.mxu0 %v3037
        %3360 = vmatpush.msra.mxu0 %v3030
        %3361 = vmatpush.msra.mxu0 %v3023
        %3362 = vmatpush.msra.mxu0 %v3016
        %3363 = vmatpush.msra.mxu0 %v3009
        %3364 = vmatpush.msra.mxu0 %v3002
        %3365 = vmatpush.msra.mxu0 %v2995
        %3366 = vmatpush.msra.mxu0 %v2988
        %3367 = vmatpush.msra.mxu0 %v2981
        %3368 = vmatpush.msra.mxu0 %v2974
        %3369 = vmatpush.msra.mxu0 %v2967
        %3370 = vmatpush.msra.mxu0 %v2960
        %3371 = vmatmul.f32.gmra.mxu0 %v264
        %v3372 = vpop.f32.mrf.mxu0
        %v3373 = vadd.f32 %v3185, %v3372
        %3374 = vdwg.mxu0
        %3375 = vmatpush.msra.mxu0 %v3177
        %3376 = vmatpush.msra.mxu0 %v3170
        %3377 = vmatpush.msra.mxu0 %v3163
        %3378 = vmatpush.msra.mxu0 %v3156
        %3379 = vmatpush.msra.mxu0 %v3149
        %3380 = vmatpush.msra.mxu0 %v3142
        %3381 = vmatpush.msra.mxu0 %v3135
        %3382 = vmatpush.msra.mxu0 %v3128
        %3383 = vmatpush.msra.mxu0 %v3121
        %3384 = vmatpush.msra.mxu0 %v3114
        %3385 = vmatpush.msra.mxu0 %v3107
        %3386 = vmatpush.msra.mxu0 %v3100
        %3387 = vmatpush.msra.mxu0 %v3093
        %3388 = vmatpush.msra.mxu0 %v3086
        %3389 = vmatpush.msra.mxu0 %v3079
        %3390 = vmatpush.msra.mxu0 %v3072
        %3391 = vmatmul.f32.gmra.mxu0 %v265
        %v3392 = vpop.f32.mrf.mxu0
        %v3393 = vadd.f32 %v3373, %v3392
        %3394 = vdwg.mxu0
        %3395 = vmatpush.msra.mxu0 %v3066
        %3396 = vmatpush.msra.mxu0 %v3059
        %3397 = vmatpush.msra.mxu0 %v3052
        %3398 = vmatpush.msra.mxu0 %v3045
        %3399 = vmatpush.msra.mxu0 %v3038
        %3400 = vmatpush.msra.mxu0 %v3031
        %3401 = vmatpush.msra.mxu0 %v3024
        %3402 = vmatpush.msra.mxu0 %v3017
        %3403 = vmatpush.msra.mxu0 %v3010
        %3404 = vmatpush.msra.mxu0 %v3003
        %3405 = vmatpush.msra.mxu0 %v2996
        %3406 = vmatpush.msra.mxu0 %v2989
        %3407 = vmatpush.msra.mxu0 %v2982
        %3408 = vmatpush.msra.mxu0 %v2975
        %3409 = vmatpush.msra.mxu0 %v2968
        %3410 = vmatpush.msra.mxu0 %v2961
        %3411 = vmatmul.f32.gmra.mxu0 %v264
        %v3412 = vpop.f32.mrf.mxu0
        %v3413 = vadd.f32 %v3186, %v3412
        %3414 = vdwg.mxu0
        %3415 = vmatpush.msra.mxu0 %v3178
        %3416 = vmatpush.msra.mxu0 %v3171
        %3417 = vmatpush.msra.mxu0 %v3164
        %3418 = vmatpush.msra.mxu0 %v3157
        %3419 = vmatpush.msra.mxu0 %v3150
        %3420 = vmatpush.msra.mxu0 %v3143
        %3421 = vmatpush.msra.mxu0 %v3136
        %3422 = vmatpush.msra.mxu0 %v3129
        %3423 = vmatpush.msra.mxu0 %v3122
        %3424 = vmatpush.msra.mxu0 %v3115
        %3425 = vmatpush.msra.mxu0 %v3108
        %3426 = vmatpush.msra.mxu0 %v3101
        %3427 = vmatpush.msra.mxu0 %v3094
        %3428 = vmatpush.msra.mxu0 %v3087
        %3429 = vmatpush.msra.mxu0 %v3080
        %3430 = vmatpush.msra.mxu0 %v3073
        %3431 = vmatmul.f32.gmra.mxu0 %v265
        %v3432 = vpop.f32.mrf.mxu0
        %v3433 = vadd.f32 %v3413, %v3432
        %3434 = vdwg.mxu0
        %3435 = vmatpush.msra.mxu0 %v3067
        %3436 = vmatpush.msra.mxu0 %v3060
        %3437 = vmatpush.msra.mxu0 %v3053
        %3438 = vmatpush.msra.mxu0 %v3046
        %3439 = vmatpush.msra.mxu0 %v3039
        %3440 = vmatpush.msra.mxu0 %v3032
        %3441 = vmatpush.msra.mxu0 %v3025
        %3442 = vmatpush.msra.mxu0 %v3018
        %3443 = vmatpush.msra.mxu0 %v3011
        %3444 = vmatpush.msra.mxu0 %v3004
        %3445 = vmatpush.msra.mxu0 %v2997
        %3446 = vmatpush.msra.mxu0 %v2990
        %3447 = vmatpush.msra.mxu0 %v2983
        %3448 = vmatpush.msra.mxu0 %v2976
        %3449 = vmatpush.msra.mxu0 %v2969
        %3450 = vmatpush.msra.mxu0 %v2962
        %3451 = vmatmul.f32.gmra.mxu0 %v264
        %v3452 = vpop.f32.mrf.mxu0
        %v3453 = vadd.f32 %v3187, %v3452
        %3454 = vdwg.mxu0
        %3455 = vmatpush.msra.mxu0 %v3179
        %3456 = vmatpush.msra.mxu0 %v3172
        %3457 = vmatpush.msra.mxu0 %v3165
        %3458 = vmatpush.msra.mxu0 %v3158
        %3459 = vmatpush.msra.mxu0 %v3151
        %3460 = vmatpush.msra.mxu0 %v3144
        %3461 = vmatpush.msra.mxu0 %v3137
        %3462 = vmatpush.msra.mxu0 %v3130
        %3463 = vmatpush.msra.mxu0 %v3123
        %3464 = vmatpush.msra.mxu0 %v3116
        %3465 = vmatpush.msra.mxu0 %v3109
        %3466 = vmatpush.msra.mxu0 %v3102
        %3467 = vmatpush.msra.mxu0 %v3095
        %3468 = vmatpush.msra.mxu0 %v3088
        %3469 = vmatpush.msra.mxu0 %v3081
        %3470 = vmatpush.msra.mxu0 %v3074
        %3471 = vmatmul.f32.gmra.mxu0 %v265
        %v3472 = vpop.f32.mrf.mxu0
        %v3473 = vadd.f32 %v3453, %v3472
        %3474 = vdwg.mxu0
        %v3475 = vtanh.pop %v3233
        %v3476 = vtanh.pop %v3273
        %v3477 = vtanh.pop %v3313
        %v3478 = vtanh.pop %v3353
        %v3479 = vtanh.pop %v3393
        %v3480 = vtanh.pop %v3433
        %v3481 = vtanh.pop %v3473
        %v3482 = vmul.f32 %v2948, %v3475
        %v3483 = vmul.f32 %v2949, %v3476
        %v3484 = vmul.f32 %v2950, %v3477
        %v3485 = vmul.f32 %v2951, %v3478
        %v3486 = vmul.f32 %v2952, %v3479
        %v3487 = vmul.f32 %v2953, %v3480
        %v3488 = vmul.f32 %v2954, %v3481
        %v3489 = vadd.f32 %v2413, %v3482
        %v3490 = vadd.f32 %v2414, %v3483
        %v3491 = vadd.f32 %v2415, %v3484
        %v3492 = vadd.f32 %v2416, %v3485
        %v3493 = vadd.f32 %v2417, %v3486
        %v3494 = vadd.f32 %v2418, %v3487
        %v3495 = vadd.f32 %v2419, %v3488
        %v3496 = vtanh.pop %v3489
        %v3497 = vtanh.pop %v3490
        %v3498 = vtanh.pop %v3491
        %v3499 = vtanh.pop %v3492
        %v3500 = vtanh.pop %v3493
        %v3501 = vtanh.pop %v3494
        %v3502 = vtanh.pop %v3495
        %3503 = vst [vmem:[%s258] sm:$0xff] %v3496
        %3504 = vst [vmem:[%s258 + $0x8] sm:$0xff] %v3497
        %3505 = vst [vmem:[%s258 + $0x10] sm:$0xff] %v3498
        %3506 = vst [vmem:[%s258 + $0x18] sm:$0xff] %v3499
        %3507 = vst [vmem:[%s258 + $0x20] sm:$0xff] %v3500
        %3508 = vst [vmem:[%s258 + $0x28] sm:$0xff] %v3501
        %3509 = vst [vmem:[%s258 + $0x30] sm:$0xff] %v3502
        %s3510 = sand.u32 %s117, 1
        %s3511 = scalar_lea.sflag [#allocation4], %s3510
        %s3512 = sand.u32 %s117, 1
        %s3513 = smul.addr %s3512, 56
        %s3514 = scalar_lea.vmem [#allocation9], %s3513
        // Predicated region
        $region53: #{tpu_custom_call.1} parent=35 // pred_check
          %p3515 = pneg %p127
        $region54: #{tpu_custom_call.1} parent=35 // pred_check_branch
          %3517 = sbr.rel (%p3515) target = $region56
        $region55: #{tpu_custom_call.1} parent=35 // pred_region
          %s3518 = smul.u32 7, %s20
          %3520 = vsyncadd %s3511, 0
          %s3521 = smul.addr %s3518, 8
          %s3522 = scalar_lea.hbm %s4, %s3521
          %s3524 = sshll.u32 %s3514, 4
          %s3525 = int_to_ptr.vmem [resolvable:$true] %s3524
          %s3526 = sshll.u32 %s3522, 4
          %s3527 = int_to_ptr.hbm [resolvable:$true] %s3526
          %3529 = dma.vmem_to_hbm [thread:$0]  %s3525, 896, %s3527, %s3511
        $region56: #{tpu_custom_call.1} parent=35 // pred_fallthru
          _
      $region36: #{tpu_custom_call.1} parent=5 // pred_fallthru
        _
      %p3530 = scmp.le.s32.totalorder 2, %s15
      // Predicated region
      $region57: #{tpu_custom_call.1} parent=5 // pred_check
        %p3531 = pneg %p3530
      $region58: #{tpu_custom_call.1} parent=5 // pred_check_branch
        %3533 = sbr.rel (%p3531) target = $region60
      $region59: #{tpu_custom_call.1} parent=5 // pred_region
        %s3534 = ssub.s32 %s15, 2
        // Predicated region
        $region61: #{tpu_custom_call.1} parent=59 // pred_check
          %p3535 = pneg %p133
        $region62: #{tpu_custom_call.1} parent=59 // pred_check_branch
          %3537 = sbr.rel (%p3535) target = $region64
        $region63: #{tpu_custom_call.1} parent=59 // pred_region
          %s3538 = sand.u32 %s118, 1
          %s3539 = scalar_lea.sflag [#allocation4], %s3538
          %s3540 = sand.u32 %s118, 1
          %s3541 = smul.addr %s3540, 56
          %s3542 = scalar_lea.vmem [#allocation9], %s3541
          %3544 = dma.done %s3539, 896
        $region64: #{tpu_custom_call.1} parent=59 // pred_fallthru
          _
      $region60: #{tpu_custom_call.1} parent=5 // pred_fallthru
        _
    $region6: #{tpu_custom_call.1} parent=1 // loop_footer
      %s19 = sadd.s32 1, %s15
    $region7: #{tpu_custom_call.1} parent=1 // loop_footer_branch
      %14 = sbr.rel target = $region3
    $region8: #{tpu_custom_call.1} parent=1 // loop_exit
      _
    %3545 = vsyncpa [#allocation3], 1
    %s3546 = scalar_lea.sflag [#allocation3], 1
    %3547 = vsyncpa %s3546, 1
    %3548 = vsyncpa [#allocation6], 1
    %3549 = vsyncpa [#allocation4], 1
    %s3550 = scalar_lea.sflag [#allocation4], 1
    %3551 = vsyncpa %s3550, 1

</llo_original>
